<compile_context>
chip_gen: v5e
topology: v5e:2x2
jax: 0.10.0
libtpu: 0.0.40
codegen_flags: <defaults>
</compile_context>

<pallas_src>
import functools

import jax
import jax.numpy as jnp
from jax.experimental import pallas as pl
from jax.experimental.pallas import tpu as pltpu

EPS = 1e-5


def _round_up(x, m):
    return (x + m - 1) // m * m


# ------------------- Pallas kernel: ConvTranspose2d(k=2, s=2) -------------------
# A stride-2 / kernel-2 transposed conv is 4 independent 1x1 convs (one per output
# parity p = 2*ph + pw):
#   up[co, n, 2h+ph, 2w+pw] = sum_ci W[ci, co, ph, pw] * x[ci, n, h, w] + b[co]
# x2d : (Ci_pad, Lin)        channels on sublanes, flattened (n,h,w) on lanes
# w4  : (4, Co_pad, Ci_pad)  w4[p, co, ci] = W_torch[ci, co, ph, pw]
# b   : (Co_pad, 1)
# out : (4, Co_pad, Lin)
def _upsample_kernel(x_ref, w_ref, b_ref, o_ref):
    x = x_ref[...]
    b = b_ref[...]
    for q in range(o_ref.shape[0]):
        o_ref[q] = jnp.dot(w_ref[q], x, preferred_element_type=jnp.float32) + b


def _upsample_call(x2d, w4, b):
    npar, co_p, _ = w4.shape
    lin = x2d.shape[1]
    return pl.pallas_call(
        _upsample_kernel,
        out_shape=jax.ShapeDtypeStruct((npar, co_p, lin), jnp.float32),
    )(x2d, w4, b)


# ------------- Pallas kernel: fused conv1+BN1+act+conv2+BN2+act -----------------
# Activations are (C_pad, LB) with LB = guard + LP + guard, LP = round_up(N*S, 128),
# S = (H+2)*(W+2).  Image n's zero-framed (H+2, W+2) frame occupies lanes
# [guard + n*S, guard + (n+1)*S); the valid HxW image sits at frame rows/cols 1..H,
# 1..W and the frame border lanes are exact zeros (they ARE the conv zero padding).
# A 3x3 tap (kh, kw) is then the constant lane shift d = (kh-1)*(W+2) + (kw-1), i.e.
# a plain static slice x[:, guard+d : guard+d+LP] of the guarded buffer.  Outputs are
# computed for all LP lanes and the (1, LP) validity mask zeroes border/pad lanes,
# which also makes the BN batch statistics exact (divide by n_valid = N*H*W).
def _conv_block_kernel(up_ref, skip_ref, mask_ref,
                       w1u_ref, w1s_ref, b1_ref, g1_ref, be1_ref,
                       w2_ref, b2_ref, g2_ref, be2_ref,
                       o_ref, h_ref, *, guard, wp, n_valid, act):
    lp = o_ref.shape[1]
    mask = mask_ref[...]                                   # (1, LP) in {0, 1}
    shifts = [(kh - 1) * wp + (kw - 1) for kh in range(3) for kw in range(3)]

    def conv3x3(branches):
        # branches: list of (tap-weight ref (9, C, C), guarded activation ref (C, LB))
        acc = None
        for w_r, x_r in branches:
            for t, d in enumerate(shifts):
                tap = x_r[:, guard + d: guard + d + lp]    # static lane-shifted slice
                part = jnp.dot(w_r[t], tap, preferred_element_type=jnp.float32)
                acc = part if acc is None else acc + part
        return acc

    def bias_bn_act(y, b, g, be):
        y = (y + b) * mask                                  # conv bias; zero border lanes
        inv_n = 1.0 / n_valid
        mean = jnp.sum(y, axis=1, keepdims=True) * inv_n
        cen = (y - mean) * mask
        var = jnp.sum(cen * cen, axis=1, keepdims=True) * inv_n   # biased, training mode
        z = cen * jax.lax.rsqrt(var + EPS) * g + be
        z = jnp.maximum(z, 0.0) if act == "relu" else z * jax.nn.sigmoid(z)
        return z * mask                                     # border back to exact zero

    # conv1: up-branch + skip-branch accumulated (no concatenated tensor is formed)
    h1 = bias_bn_act(conv3x3([(w1u_ref, up_ref), (w1s_ref, skip_ref)]),
                     b1_ref[...], g1_ref[...], be1_ref[...])

    # Stage the framed intermediate in a guarded VMEM scratch so conv2's taps are the
    # same plain lane slices -- no HBM round trip for the intermediate activation.
    h_ref[...] = jnp.zeros(h_ref.shape, jnp.float32)
    h_ref[:, guard:guard + lp] = h1

    h2 = bias_bn_act(conv3x3([(w2_ref, h_ref)]),
                     b2_ref[...], g2_ref[...], be2_ref[...])
    o_ref[...] = h2


def _conv_block_call(args, *, guard, lp, wp, n_valid, act):
    co_p, lb = args[0].shape
    kern = functools.partial(_conv_block_kernel, guard=guard, wp=wp,
                             n_valid=n_valid, act=act)
    return pl.pallas_call(
        kern,
        out_shape=jax.ShapeDtypeStruct((co_p, lp), jnp.float32),
        scratch_shapes=[pltpu.VMEM((co_p, lb), jnp.float32)],
    )(*args)


# ---------------------------------- wrapper ----------------------------------

def decoder_block_fwd(inputs_nchw, skip_nchw, p, act="relu"):
    """decoder_block forward.  NCHW in / NCHW out (PyTorch convention)."""
    f32 = jnp.float32
    N, Ci, Hi, Wi = inputs_nchw.shape
    Co = p["up_w"].shape[1]
    H, W = 2 * Hi, 2 * Wi                      # high-res spatial (== skip spatial)
    assert skip_nchw.shape == (N, Co, H, W), skip_nchw.shape
    Hp, Wp = H + 2, W + 2                      # zero-framed spatial
    S = Hp * Wp
    G = 128                                    # zero guard (keeps tap slices in-bounds)
    LP = _round_up(N * S, 128)                 # lane-dense compute width
    LB = LP + 2 * G                            # guarded buffer width
    n_valid = N * H * W
    ci_p = _round_up(Ci, 8)
    co_p = _round_up(Co, 8)

    # ---- 1. ConvTranspose2d(k=2, s=2): 4 parity matmuls (Pallas) ----
    lin = _round_up(N * Hi * Wi, 128)
    x2d = jnp.transpose(inputs_nchw.astype(f32), (1, 0, 2, 3)).reshape(Ci, N * Hi * Wi)
    x2d = jnp.pad(x2d, ((0, ci_p - Ci), (0, lin - N * Hi * Wi)))
    w4 = jnp.transpose(p["up_w"].astype(f32), (2, 3, 1, 0)).reshape(4, Co, Ci)
    w4 = jnp.pad(w4, ((0, 0), (0, co_p - Co), (0, ci_p - Ci)))
    bup = jnp.pad(p["up_b"].astype(f32), (0, co_p - Co)).reshape(co_p, 1)
    u = _upsample_call(x2d, w4, bup)[:, :Co, :N * Hi * Wi]      # (4, Co, N*Hi*Wi)

    # pixel-shuffle + zero-frame + flatten: cheap XLA layout glue on a <5 KB tensor
    u = u.reshape(2, 2, Co, N, Hi, Wi)                           # (ph, pw, co, n, h, w)
    u = jnp.transpose(u, (2, 3, 4, 0, 5, 1)).reshape(Co, N, H, W)

    def to_guarded_flat(t_cnhw):                                 # (Co,N,H,W) -> (co_p, LB)
        t = jnp.pad(t_cnhw, ((0, co_p - Co), (0, 0), (1, 1), (1, 1)))
        return jnp.pad(t.reshape(co_p, N * S), ((0, 0), (G, LB - G - N * S)))

    up_flat = to_guarded_flat(u)
    skip_flat = to_guarded_flat(jnp.transpose(skip_nchw.astype(f32), (1, 0, 2, 3)))

    mask = jnp.pad(jnp.ones((N, H, W), f32), ((0, 0), (1, 1), (1, 1)))
    mask = jnp.pad(mask.reshape(1, N * S), ((0, 0), (0, LP - N * S)))

    # conv weights -> (tap=kh*3+kw, co_p, cin_slice_p); torch.cat([up, skip], C) is
    # realized as two weight slices feeding one accumulator.
    def conv_w(w, lo, hi):
        cin = hi - lo
        wt = jnp.transpose(w.astype(f32), (2, 3, 0, 1)).reshape(9, w.shape[0], w.shape[1])
        wt = wt[:, :, lo:hi]
        return jnp.pad(wt, ((0, 0), (0, co_p - w.shape[0]), (0, co_p - cin)))

    def col(v):
        return jnp.pad(v.astype(f32), (0, co_p - Co)).reshape(co_p, 1)

    args = (up_flat, skip_flat, mask,
            conv_w(p["w1"], 0, Co), conv_w(p["w1"], Co, 2 * Co),
            col(p["b1"]), col(p["g1"]), col(p["be1"]),
            conv_w(p["w2"], 0, Co),
            col(p["b2"]), col(p["g2"]), col(p["be2"]))

    # ---- 2. fused conv1 + BN1 + act + conv2 + BN2 + act (single Pallas call) ----
    y = _conv_block_call(args, guard=G, lp=LP, wp=Wp, n_valid=n_valid, act=act)
    y = y[:, :N * S].reshape(co_p, N, Hp, Wp)[:Co, :, 1:H + 1, 1:W + 1]
    return jnp.transpose(y, (1, 0, 2, 3))                        # back to NCHW


# ---------------------------- pure-JAX reference -----------------------------

def _ref_forward(inputs_nchw, skip_nchw, p, act="relu"):
    x = jnp.transpose(inputs_nchw, (0, 2, 3, 1)).astype(jnp.float32)
    skip = jnp.transpose(skip_nchw, (0, 2, 3, 1)).astype(jnp.float32)
    N, H, W, _ = x.shape
    Co = p["up_w"].shape[1]
    z = jnp.einsum("nhwc,cokl->nhwklo", x, p["up_w"]) + p["up_b"]
    z = jnp.transpose(z, (0, 1, 3, 2, 4, 5)).reshape(N, 2 * H, 2 * W, Co)
    x = jnp.concatenate([z, skip], axis=-1)

    def conv3(x, w, b):
        w_hwio = jnp.transpose(w, (2, 3, 1, 0))
        return jax.lax.conv_general_dilated(
            x, w_hwio, window_strides=(1, 1), padding="SAME",
            dimension_numbers=("NHWC", "HWIO", "NHWC")) + b

    def bn(x, g, be):
        mean = x.mean(axis=(0, 1, 2))
        var = x.var(axis=(0, 1, 2))
        return (x - mean) / jnp.sqrt(var + 1e-5) * g + be

    def activ(x):
        return jnp.maximum(x, 0.0) if act == "relu" else x * jax.nn.sigmoid(x)

    y = activ(bn(conv3(x, p["w1"], p["b1"]), p["g1"], p["be1"]))
    y = activ(bn(conv3(y, p["w2"], p["b2"]), p["g2"], p["be2"]))
    return jnp.transpose(y, (0, 3, 1, 2))


# ----------------------------------- main -----------------------------------

if __name__ == "__main__":
    key = jax.random.PRNGKey(0)
    in_c, out_c = 8, 4
    N, H, W = 2, 8, 8                     # decoder input spatial; skip is 2x larger

    ks = jax.random.split(key, 12)
    params = {
        "up_w": jax.random.normal(ks[0], (in_c, out_c, 2, 2), jnp.float32) * 0.1,
        "up_b": jax.random.normal(ks[1], (out_c,), jnp.float32) * 0.1,
        "w1":   jax.random.normal(ks[2], (out_c, 2 * out_c, 3, 3), jnp.float32) * 0.1,
        "b1":   jax.random.normal(ks[3], (out_c,), jnp.float32) * 0.1,
        "g1":   1.0 + 0.1 * jax.random.normal(ks[4], (out_c,), jnp.float32),
        "be1":  0.1 * jax.random.normal(ks[5], (out_c,), jnp.float32),
        "w2":   jax.random.normal(ks[6], (out_c, out_c, 3, 3), jnp.float32) * 0.1,
        "b2":   jax.random.normal(ks[7], (out_c,), jnp.float32) * 0.1,
        "g2":   1.0 + 0.1 * jax.random.normal(ks[8], (out_c,), jnp.float32),
        "be2":  0.1 * jax.random.normal(ks[9], (out_c,), jnp.float32),
    }

    inputs = jax.random.normal(ks[10], (N, in_c, H, W), jnp.float32)
    skip = jax.random.normal(ks[11], (N, out_c, 2 * H, 2 * W), jnp.float32)

    fwd = jax.jit(decoder_block_fwd, static_argnames=("act",))
    out = jax.block_until_ready(fwd(inputs, skip, params, act="relu"))
    assert out.shape == (N, out_c, 2 * H, 2 * W), out.shape

    ref = jax.block_until_ready(_ref_forward(inputs, skip, params, act="relu"))
    max_err = float(jnp.max(jnp.abs(out - ref)))
    assert max_err < 1e-3, f"mismatch vs reference: {max_err}"

    print("KERNEL_OK")
</pallas_src>

<mosaic_0001>
module attributes {stable_mosaic.version = 11 : i64} {
  func.func @_upsample_kernel(%arg0: memref<8x128xf32, #tpu.memory_space<vmem>>, %arg1: memref<4x8x8xf32, #tpu.memory_space<vmem>>, %arg2: memref<8x1xf32, #tpu.memory_space<vmem>>, %arg3: memref<4x8x128xf32, #tpu.memory_space<vmem>>) attributes {dimension_semantics = [], scalar_prefetch = 0 : i64, scratch_operands = 0 : i64, tpu.core_type = #tpu.core_type<tc>} {
    %c0 = arith.constant 0 : index
    %c0_0 = arith.constant 0 : index
    %0 = vector.load %arg0[%c0, %c0_0] : memref<8x128xf32, #tpu.memory_space<vmem>>, vector<8x128xf32>
    %c0_1 = arith.constant 0 : index
    %c0_2 = arith.constant 0 : index
    %1 = vector.load %arg2[%c0_1, %c0_2] : memref<8x1xf32, #tpu.memory_space<vmem>>, vector<8x1xf32>
    %c0_3 = arith.constant 0 : index
    %c0_4 = arith.constant 0 : index
    %c0_5 = arith.constant 0 : index
    %2 = vector.load %arg1[%c0_3, %c0_4, %c0_5] : memref<4x8x8xf32, #tpu.memory_space<vmem>>, vector<1x8x8xf32>
    %3 = vector.shape_cast %2 : vector<1x8x8xf32> to vector<8x8xf32>
    %cst = arith.constant dense<0.000000e+00> : vector<8x128xf32>
    %4 = tpu.matmul %3, %0, %cst {dimension_numbers = #tpu.dot_dimension_numbers<[1], [0], [0], [1], [0, 0, 1, 1], [], []>} : vector<8x8xf32>, vector<8x128xf32>, vector<8x128xf32> -> vector<8x128xf32>
    %5 = vector.broadcast %1 : vector<8x1xf32> to vector<8x128xf32>
    %6 = arith.addf %4, %5 : vector<8x128xf32>
    %c0_6 = arith.constant 0 : index
    %c0_7 = arith.constant 0 : index
    %c0_8 = arith.constant 0 : index
    %7 = vector.load %arg3[%c0_6, %c0_7, %c0_8] : memref<4x8x128xf32, #tpu.memory_space<vmem>>, vector<1x8x128xf32>
    %8 = vector.shape_cast %7 : vector<1x8x128xf32> to vector<8x128xf32>
    %9 = vector.shape_cast %6 : vector<8x128xf32> to vector<1x8x128xf32>
    tpu.vector_store %arg3[%c0_6, %c0_7, %c0_8], %9 {strides = array<i32>} : memref<4x8x128xf32, #tpu.memory_space<vmem>>, vector<1x8x128xf32>,
    %c1 = arith.constant 1 : index
    %c0_9 = arith.constant 0 : index
    %c0_10 = arith.constant 0 : index
    %10 = vector.load %arg1[%c1, %c0_9, %c0_10] : memref<4x8x8xf32, #tpu.memory_space<vmem>>, vector<1x8x8xf32>
    %11 = vector.shape_cast %10 : vector<1x8x8xf32> to vector<8x8xf32>
    %cst_11 = arith.constant dense<0.000000e+00> : vector<8x128xf32>
    %12 = tpu.matmul %11, %0, %cst_11 {dimension_numbers = #tpu.dot_dimension_numbers<[1], [0], [0], [1], [0, 0, 1, 1], [], []>} : vector<8x8xf32>, vector<8x128xf32>, vector<8x128xf32> -> vector<8x128xf32>
    %13 = vector.broadcast %1 : vector<8x1xf32> to vector<8x128xf32>
    %14 = arith.addf %12, %13 : vector<8x128xf32>
    %c1_12 = arith.constant 1 : index
    %c0_13 = arith.constant 0 : index
    %c0_14 = arith.constant 0 : index
    %15 = vector.load %arg3[%c1_12, %c0_13, %c0_14] : memref<4x8x128xf32, #tpu.memory_space<vmem>>, vector<1x8x128xf32>
    %16 = vector.shape_cast %15 : vector<1x8x128xf32> to vector<8x128xf32>
    %17 = vector.shape_cast %14 : vector<8x128xf32> to vector<1x8x128xf32>
    tpu.vector_store %arg3[%c1_12, %c0_13, %c0_14], %17 {strides = array<i32>} : memref<4x8x128xf32, #tpu.memory_space<vmem>>, vector<1x8x128xf32>,
    %c2 = arith.constant 2 : index
    %c0_15 = arith.constant 0 : index
    %c0_16 = arith.constant 0 : index
    %18 = vector.load %arg1[%c2, %c0_15, %c0_16] : memref<4x8x8xf32, #tpu.memory_space<vmem>>, vector<1x8x8xf32>
    %19 = vector.shape_cast %18 : vector<1x8x8xf32> to vector<8x8xf32>
    %cst_17 = arith.constant dense<0.000000e+00> : vector<8x128xf32>
    %20 = tpu.matmul %19, %0, %cst_17 {dimension_numbers = #tpu.dot_dimension_numbers<[1], [0], [0], [1], [0, 0, 1, 1], [], []>} : vector<8x8xf32>, vector<8x128xf32>, vector<8x128xf32> -> vector<8x128xf32>
    %21 = vector.broadcast %1 : vector<8x1xf32> to vector<8x128xf32>
    %22 = arith.addf %20, %21 : vector<8x128xf32>
    %c2_18 = arith.constant 2 : index
    %c0_19 = arith.constant 0 : index
    %c0_20 = arith.constant 0 : index
    %23 = vector.load %arg3[%c2_18, %c0_19, %c0_20] : memref<4x8x128xf32, #tpu.memory_space<vmem>>, vector<1x8x128xf32>
    %24 = vector.shape_cast %23 : vector<1x8x128xf32> to vector<8x128xf32>
    %25 = vector.shape_cast %22 : vector<8x128xf32> to vector<1x8x128xf32>
    tpu.vector_store %arg3[%c2_18, %c0_19, %c0_20], %25 {strides = array<i32>} : memref<4x8x128xf32, #tpu.memory_space<vmem>>, vector<1x8x128xf32>,
    %c3 = arith.constant 3 : index
    %c0_21 = arith.constant 0 : index
    %c0_22 = arith.constant 0 : index
    %26 = vector.load %arg1[%c3, %c0_21, %c0_22] : memref<4x8x8xf32, #tpu.memory_space<vmem>>, vector<1x8x8xf32>
    %27 = vector.shape_cast %26 : vector<1x8x8xf32> to vector<8x8xf32>
    %cst_23 = arith.constant dense<0.000000e+00> : vector<8x128xf32>
    %28 = tpu.matmul %27, %0, %cst_23 {dimension_numbers = #tpu.dot_dimension_numbers<[1], [0], [0], [1], [0, 0, 1, 1], [], []>} : vector<8x8xf32>, vector<8x128xf32>, vector<8x128xf32> -> vector<8x128xf32>
    %29 = vector.broadcast %1 : vector<8x1xf32> to vector<8x128xf32>
    %30 = arith.addf %28, %29 : vector<8x128xf32>
    %c3_24 = arith.constant 3 : index
    %c0_25 = arith.constant 0 : index
    %c0_26 = arith.constant 0 : index
    %31 = vector.load %arg3[%c3_24, %c0_25, %c0_26] : memref<4x8x128xf32, #tpu.memory_space<vmem>>, vector<1x8x128xf32>
    %32 = vector.shape_cast %31 : vector<1x8x128xf32> to vector<8x128xf32>
    %33 = vector.shape_cast %30 : vector<8x128xf32> to vector<1x8x128xf32>
    tpu.vector_store %arg3[%c3_24, %c0_25, %c0_26], %33 {strides = array<i32>} : memref<4x8x128xf32, #tpu.memory_space<vmem>>, vector<1x8x128xf32>,
    return
  }
}

module attributes {stable_mosaic.version = 11 : i64} {
  func.func @_conv_block_kernel(%arg0: memref<8x1024xf32, #tpu.memory_space<vmem>>, %arg1: memref<8x1024xf32, #tpu.memory_space<vmem>>, %arg2: memref<1x768xf32, #tpu.memory_space<vmem>>, %arg3: memref<9x8x8xf32, #tpu.memory_space<vmem>>, %arg4: memref<9x8x8xf32, #tpu.memory_space<vmem>>, %arg5: memref<8x1xf32, #tpu.memory_space<vmem>>, %arg6: memref<8x1xf32, #tpu.memory_space<vmem>>, %arg7: memref<8x1xf32, #tpu.memory_space<vmem>>, %arg8: memref<9x8x8xf32, #tpu.memory_space<vmem>>, %arg9: memref<8x1xf32, #tpu.memory_space<vmem>>, %arg10: memref<8x1xf32, #tpu.memory_space<vmem>>, %arg11: memref<8x1xf32, #tpu.memory_space<vmem>>, %arg12: memref<8x768xf32, #tpu.memory_space<vmem>>, %arg13: memref<8x1024xf32, #tpu.memory_space<vmem>>) attributes {dimension_semantics = [], scalar_prefetch = 0 : i64, scratch_operands = 1 : i64, tpu.core_type = #tpu.core_type<tc>} {
    %c0 = arith.constant 0 : index
    %c0_0 = arith.constant 0 : index
    %0 = vector.load %arg2[%c0, %c0_0] : memref<1x768xf32, #tpu.memory_space<vmem>>, vector<1x768xf32>
    %c0_1 = arith.constant 0 : index
    %c109 = arith.constant 109 : index
    %1 = vector.load %arg0[%c0_1, %c109] : memref<8x1024xf32, #tpu.memory_space<vmem>>, vector<8x768xf32>
    %c0_2 = arith.constant 0 : index
    %c0_3 = arith.constant 0 : index
    %c0_4 = arith.constant 0 : index
    %2 = vector.load %arg3[%c0_2, %c0_3, %c0_4] : memref<9x8x8xf32, #tpu.memory_space<vmem>>, vector<1x8x8xf32>
    %3 = vector.shape_cast %2 : vector<1x8x8xf32> to vector<8x8xf32>
    %cst = arith.constant dense<0.000000e+00> : vector<8x768xf32>
    %4 = tpu.matmul %3, %1, %cst {dimension_numbers = #tpu.dot_dimension_numbers<[1], [0], [0], [1], [0, 0, 1, 1], [], []>} : vector<8x8xf32>, vector<8x768xf32>, vector<8x768xf32> -> vector<8x768xf32>
    %c0_5 = arith.constant 0 : index
    %c110 = arith.constant 110 : index
    %5 = vector.load %arg0[%c0_5, %c110] : memref<8x1024xf32, #tpu.memory_space<vmem>>, vector<8x768xf32>
    %c1 = arith.constant 1 : index
    %c0_6 = arith.constant 0 : index
    %c0_7 = arith.constant 0 : index
    %6 = vector.load %arg3[%c1, %c0_6, %c0_7] : memref<9x8x8xf32, #tpu.memory_space<vmem>>, vector<1x8x8xf32>
    %7 = vector.shape_cast %6 : vector<1x8x8xf32> to vector<8x8xf32>
    %cst_8 = arith.constant dense<0.000000e+00> : vector<8x768xf32>
    %8 = tpu.matmul %7, %5, %cst_8 {dimension_numbers = #tpu.dot_dimension_numbers<[1], [0], [0], [1], [0, 0, 1, 1], [], []>} : vector<8x8xf32>, vector<8x768xf32>, vector<8x768xf32> -> vector<8x768xf32>
    %9 = arith.addf %4, %8 : vector<8x768xf32>
    %c0_9 = arith.constant 0 : index
    %c111 = arith.constant 111 : index
    %10 = vector.load %arg0[%c0_9, %c111] : memref<8x1024xf32, #tpu.memory_space<vmem>>, vector<8x768xf32>
    %c2 = arith.constant 2 : index
    %c0_10 = arith.constant 0 : index
    %c0_11 = arith.constant 0 : index
    %11 = vector.load %arg3[%c2, %c0_10, %c0_11] : memref<9x8x8xf32, #tpu.memory_space<vmem>>, vector<1x8x8xf32>
    %12 = vector.shape_cast %11 : vector<1x8x8xf32> to vector<8x8xf32>
    %cst_12 = arith.constant dense<0.000000e+00> : vector<8x768xf32>
    %13 = tpu.matmul %12, %10, %cst_12 {dimension_numbers = #tpu.dot_dimension_numbers<[1], [0], [0], [1], [0, 0, 1, 1], [], []>} : vector<8x8xf32>, vector<8x768xf32>, vector<8x768xf32> -> vector<8x768xf32>
    %14 = arith.addf %9, %13 : vector<8x768xf32>
    %c0_13 = arith.constant 0 : index
    %c127 = arith.constant 127 : index
    %15 = vector.load %arg0[%c0_13, %c127] : memref<8x1024xf32, #tpu.memory_space<vmem>>, vector<8x768xf32>
    %c3 = arith.constant 3 : index
    %c0_14 = arith.constant 0 : index
    %c0_15 = arith.constant 0 : index
    %16 = vector.load %arg3[%c3, %c0_14, %c0_15] : memref<9x8x8xf32, #tpu.memory_space<vmem>>, vector<1x8x8xf32>
    %17 = vector.shape_cast %16 : vector<1x8x8xf32> to vector<8x8xf32>
    %cst_16 = arith.constant dense<0.000000e+00> : vector<8x768xf32>
    %18 = tpu.matmul %17, %15, %cst_16 {dimension_numbers = #tpu.dot_dimension_numbers<[1], [0], [0], [1], [0, 0, 1, 1], [], []>} : vector<8x8xf32>, vector<8x768xf32>, vector<8x768xf32> -> vector<8x768xf32>
    %19 = arith.addf %14, %18 : vector<8x768xf32>
    %c0_17 = arith.constant 0 : index
    %c128 = arith.constant 128 : index
    %20 = vector.load %arg0[%c0_17, %c128] : memref<8x1024xf32, #tpu.memory_space<vmem>>, vector<8x768xf32>
    %c4 = arith.constant 4 : index
    %c0_18 = arith.constant 0 : index
    %c0_19 = arith.constant 0 : index
    %21 = vector.load %arg3[%c4, %c0_18, %c0_19] : memref<9x8x8xf32, #tpu.memory_space<vmem>>, vector<1x8x8xf32>
    %22 = vector.shape_cast %21 : vector<1x8x8xf32> to vector<8x8xf32>
    %cst_20 = arith.constant dense<0.000000e+00> : vector<8x768xf32>
    %23 = tpu.matmul %22, %20, %cst_20 {dimension_numbers = #tpu.dot_dimension_numbers<[1], [0], [0], [1], [0, 0, 1, 1], [], []>} : vector<8x8xf32>, vector<8x768xf32>, vector<8x768xf32> -> vector<8x768xf32>
    %24 = arith.addf %19, %23 : vector<8x768xf32>
    %c0_21 = arith.constant 0 : index
    %c129 = arith.constant 129 : index
    %25 = vector.load %arg0[%c0_21, %c129] : memref<8x1024xf32, #tpu.memory_space<vmem>>, vector<8x768xf32>
    %c5 = arith.constant 5 : index
    %c0_22 = arith.constant 0 : index
    %c0_23 = arith.constant 0 : index
    %26 = vector.load %arg3[%c5, %c0_22, %c0_23] : memref<9x8x8xf32, #tpu.memory_space<vmem>>, vector<1x8x8xf32>
    %27 = vector.shape_cast %26 : vector<1x8x8xf32> to vector<8x8xf32>
    %cst_24 = arith.constant dense<0.000000e+00> : vector<8x768xf32>
    %28 = tpu.matmul %27, %25, %cst_24 {dimension_numbers = #tpu.dot_dimension_numbers<[1], [0], [0], [1], [0, 0, 1, 1], [], []>} : vector<8x8xf32>, vector<8x768xf32>, vector<8x768xf32> -> vector<8x768xf32>
    %29 = arith.addf %24, %28 : vector<8x768xf32>
    %c0_25 = arith.constant 0 : index
    %c145 = arith.constant 145 : index
    %30 = vector.load %arg0[%c0_25, %c145] : memref<8x1024xf32, #tpu.memory_space<vmem>>, vector<8x768xf32>
    %c6 = arith.constant 6 : index
    %c0_26 = arith.constant 0 : index
    %c0_27 = arith.constant 0 : index
    %31 = vector.load %arg3[%c6, %c0_26, %c0_27] : memref<9x8x8xf32, #tpu.memory_space<vmem>>, vector<1x8x8xf32>
    %32 = vector.shape_cast %31 : vector<1x8x8xf32> to vector<8x8xf32>
    %cst_28 = arith.constant dense<0.000000e+00> : vector<8x768xf32>
    %33 = tpu.matmul %32, %30, %cst_28 {dimension_numbers = #tpu.dot_dimension_numbers<[1], [0], [0], [1], [0, 0, 1, 1], [], []>} : vector<8x8xf32>, vector<8x768xf32>, vector<8x768xf32> -> vector<8x768xf32>
    %34 = arith.addf %29, %33 : vector<8x768xf32>
    %c0_29 = arith.constant 0 : index
    %c146 = arith.constant 146 : index
    %35 = vector.load %arg0[%c0_29, %c146] : memref<8x1024xf32, #tpu.memory_space<vmem>>, vector<8x768xf32>
    %c7 = arith.constant 7 : index
    %c0_30 = arith.constant 0 : index
    %c0_31 = arith.constant 0 : index
    %36 = vector.load %arg3[%c7, %c0_30, %c0_31] : memref<9x8x8xf32, #tpu.memory_space<vmem>>, vector<1x8x8xf32>
    %37 = vector.shape_cast %36 : vector<1x8x8xf32> to vector<8x8xf32>
    %cst_32 = arith.constant dense<0.000000e+00> : vector<8x768xf32>
    %38 = tpu.matmul %37, %35, %cst_32 {dimension_numbers = #tpu.dot_dimension_numbers<[1], [0], [0], [1], [0, 0, 1, 1], [], []>} : vector<8x8xf32>, vector<8x768xf32>, vector<8x768xf32> -> vector<8x768xf32>
    %39 = arith.addf %34, %38 : vector<8x768xf32>
    %c0_33 = arith.constant 0 : index
    %c147 = arith.constant 147 : index
    %40 = vector.load %arg0[%c0_33, %c147] : memref<8x1024xf32, #tpu.memory_space<vmem>>, vector<8x768xf32>
    %c8 = arith.constant 8 : index
    %c0_34 = arith.constant 0 : index
    %c0_35 = arith.constant 0 : index
    %41 = vector.load %arg3[%c8, %c0_34, %c0_35] : memref<9x8x8xf32, #tpu.memory_space<vmem>>, vector<1x8x8xf32>
    %42 = vector.shape_cast %41 : vector<1x8x8xf32> to vector<8x8xf32>
    %cst_36 = arith.constant dense<0.000000e+00> : vector<8x768xf32>
    %43 = tpu.matmul %42, %40, %cst_36 {dimension_numbers = #tpu.dot_dimension_numbers<[1], [0], [0], [1], [0, 0, 1, 1], [], []>} : vector<8x8xf32>, vector<8x768xf32>, vector<8x768xf32> -> vector<8x768xf32>
    %44 = arith.addf %39, %43 : vector<8x768xf32>
    %c0_37 = arith.constant 0 : index
    %c109_38 = arith.constant 109 : index
    %45 = vector.load %arg1[%c0_37, %c109_38] : memref<8x1024xf32, #tpu.memory_space<vmem>>, vector<8x768xf32>
    %c0_39 = arith.constant 0 : index
    %c0_40 = arith.constant 0 : index
    %c0_41 = arith.constant 0 : index
    %46 = vector.load %arg4[%c0_39, %c0_40, %c0_41] : memref<9x8x8xf32, #tpu.memory_space<vmem>>, vector<1x8x8xf32>
    %47 = vector.shape_cast %46 : vector<1x8x8xf32> to vector<8x8xf32>
    %cst_42 = arith.constant dense<0.000000e+00> : vector<8x768xf32>
    %48 = tpu.matmul %47, %45, %cst_42 {dimension_numbers = #tpu.dot_dimension_numbers<[1], [0], [0], [1], [0, 0, 1, 1], [], []>} : vector<8x8xf32>, vector<8x768xf32>, vector<8x768xf32> -> vector<8x768xf32>
    %49 = arith.addf %44, %48 : vector<8x768xf32>
    %c0_43 = arith.constant 0 : index
    %c110_44 = arith.constant 110 : index
    %50 = vector.load %arg1[%c0_43, %c110_44] : memref<8x1024xf32, #tpu.memory_space<vmem>>, vector<8x768xf32>
    %c1_45 = arith.constant 1 : index
    %c0_46 = arith.constant 0 : index
    %c0_47 = arith.constant 0 : index
    %51 = vector.load %arg4[%c1_45, %c0_46, %c0_47] : memref<9x8x8xf32, #tpu.memory_space<vmem>>, vector<1x8x8xf32>
    %52 = vector.shape_cast %51 : vector<1x8x8xf32> to vector<8x8xf32>
    %cst_48 = arith.constant dense<0.000000e+00> : vector<8x768xf32>
    %53 = tpu.matmul %52, %50, %cst_48 {dimension_numbers = #tpu.dot_dimension_numbers<[1], [0], [0], [1], [0, 0, 1, 1], [], []>} : vector<8x8xf32>, vector<8x768xf32>, vector<8x768xf32> -> vector<8x768xf32>
    %54 = arith.addf %49, %53 : vector<8x768xf32>
    %c0_49 = arith.constant 0 : index
    %c111_50 = arith.constant 111 : index
    %55 = vector.load %arg1[%c0_49, %c111_50] : memref<8x1024xf32, #tpu.memory_space<vmem>>, vector<8x768xf32>
    %c2_51 = arith.constant 2 : index
    %c0_52 = arith.constant 0 : index
    %c0_53 = arith.constant 0 : index
    %56 = vector.load %arg4[%c2_51, %c0_52, %c0_53] : memref<9x8x8xf32, #tpu.memory_space<vmem>>, vector<1x8x8xf32>
    %57 = vector.shape_cast %56 : vector<1x8x8xf32> to vector<8x8xf32>
    %cst_54 = arith.constant dense<0.000000e+00> : vector<8x768xf32>
    %58 = tpu.matmul %57, %55, %cst_54 {dimension_numbers = #tpu.dot_dimension_numbers<[1], [0], [0], [1], [0, 0, 1, 1], [], []>} : vector<8x8xf32>, vector<8x768xf32>, vector<8x768xf32> -> vector<8x768xf32>
    %59 = arith.addf %54, %58 : vector<8x768xf32>
    %c0_55 = arith.constant 0 : index
    %c127_56 = arith.constant 127 : index
    %60 = vector.load %arg1[%c0_55, %c127_56] : memref<8x1024xf32, #tpu.memory_space<vmem>>, vector<8x768xf32>
    %c3_57 = arith.constant 3 : index
    %c0_58 = arith.constant 0 : index
    %c0_59 = arith.constant 0 : index
    %61 = vector.load %arg4[%c3_57, %c0_58, %c0_59] : memref<9x8x8xf32, #tpu.memory_space<vmem>>, vector<1x8x8xf32>
    %62 = vector.shape_cast %61 : vector<1x8x8xf32> to vector<8x8xf32>
    %cst_60 = arith.constant dense<0.000000e+00> : vector<8x768xf32>
    %63 = tpu.matmul %62, %60, %cst_60 {dimension_numbers = #tpu.dot_dimension_numbers<[1], [0], [0], [1], [0, 0, 1, 1], [], []>} : vector<8x8xf32>, vector<8x768xf32>, vector<8x768xf32> -> vector<8x768xf32>
    %64 = arith.addf %59, %63 : vector<8x768xf32>
    %c0_61 = arith.constant 0 : index
    %c128_62 = arith.constant 128 : index
    %65 = vector.load %arg1[%c0_61, %c128_62] : memref<8x1024xf32, #tpu.memory_space<vmem>>, vector<8x768xf32>
    %c4_63 = arith.constant 4 : index
    %c0_64 = arith.constant 0 : index
    %c0_65 = arith.constant 0 : index
    %66 = vector.load %arg4[%c4_63, %c0_64, %c0_65] : memref<9x8x8xf32, #tpu.memory_space<vmem>>, vector<1x8x8xf32>
    %67 = vector.shape_cast %66 : vector<1x8x8xf32> to vector<8x8xf32>
    %cst_66 = arith.constant dense<0.000000e+00> : vector<8x768xf32>
    %68 = tpu.matmul %67, %65, %cst_66 {dimension_numbers = #tpu.dot_dimension_numbers<[1], [0], [0], [1], [0, 0, 1, 1], [], []>} : vector<8x8xf32>, vector<8x768xf32>, vector<8x768xf32> -> vector<8x768xf32>
    %69 = arith.addf %64, %68 : vector<8x768xf32>
    %c0_67 = arith.constant 0 : index
    %c129_68 = arith.constant 129 : index
    %70 = vector.load %arg1[%c0_67, %c129_68] : memref<8x1024xf32, #tpu.memory_space<vmem>>, vector<8x768xf32>
    %c5_69 = arith.constant 5 : index
    %c0_70 = arith.constant 0 : index
    %c0_71 = arith.constant 0 : index
    %71 = vector.load %arg4[%c5_69, %c0_70, %c0_71] : memref<9x8x8xf32, #tpu.memory_space<vmem>>, vector<1x8x8xf32>
    %72 = vector.shape_cast %71 : vector<1x8x8xf32> to vector<8x8xf32>
    %cst_72 = arith.constant dense<0.000000e+00> : vector<8x768xf32>
    %73 = tpu.matmul %72, %70, %cst_72 {dimension_numbers = #tpu.dot_dimension_numbers<[1], [0], [0], [1], [0, 0, 1, 1], [], []>} : vector<8x8xf32>, vector<8x768xf32>, vector<8x768xf32> -> vector<8x768xf32>
    %74 = arith.addf %69, %73 : vector<8x768xf32>
    %c0_73 = arith.constant 0 : index
    %c145_74 = arith.constant 145 : index
    %75 = vector.load %arg1[%c0_73, %c145_74] : memref<8x1024xf32, #tpu.memory_space<vmem>>, vector<8x768xf32>
    %c6_75 = arith.constant 6 : index
    %c0_76 = arith.constant 0 : index
    %c0_77 = arith.constant 0 : index
    %76 = vector.load %arg4[%c6_75, %c0_76, %c0_77] : memref<9x8x8xf32, #tpu.memory_space<vmem>>, vector<1x8x8xf32>
    %77 = vector.shape_cast %76 : vector<1x8x8xf32> to vector<8x8xf32>
    %cst_78 = arith.constant dense<0.000000e+00> : vector<8x768xf32>
    %78 = tpu.matmul %77, %75, %cst_78 {dimension_numbers = #tpu.dot_dimension_numbers<[1], [0], [0], [1], [0, 0, 1, 1], [], []>} : vector<8x8xf32>, vector<8x768xf32>, vector<8x768xf32> -> vector<8x768xf32>
    %79 = arith.addf %74, %78 : vector<8x768xf32>
    %c0_79 = arith.constant 0 : index
    %c146_80 = arith.constant 146 : index
    %80 = vector.load %arg1[%c0_79, %c146_80] : memref<8x1024xf32, #tpu.memory_space<vmem>>, vector<8x768xf32>
    %c7_81 = arith.constant 7 : index
    %c0_82 = arith.constant 0 : index
    %c0_83 = arith.constant 0 : index
    %81 = vector.load %arg4[%c7_81, %c0_82, %c0_83] : memref<9x8x8xf32, #tpu.memory_space<vmem>>, vector<1x8x8xf32>
    %82 = vector.shape_cast %81 : vector<1x8x8xf32> to vector<8x8xf32>
    %cst_84 = arith.constant dense<0.000000e+00> : vector<8x768xf32>
    %83 = tpu.matmul %82, %80, %cst_84 {dimension_numbers = #tpu.dot_dimension_numbers<[1], [0], [0], [1], [0, 0, 1, 1], [], []>} : vector<8x8xf32>, vector<8x768xf32>, vector<8x768xf32> -> vector<8x768xf32>
    %84 = arith.addf %79, %83 : vector<8x768xf32>
    %c0_85 = arith.constant 0 : index
    %c147_86 = arith.constant 147 : index
    %85 = vector.load %arg1[%c0_85, %c147_86] : memref<8x1024xf32, #tpu.memory_space<vmem>>, vector<8x768xf32>
    %c8_87 = arith.constant 8 : index
    %c0_88 = arith.constant 0 : index
    %c0_89 = arith.constant 0 : index
    %86 = vector.load %arg4[%c8_87, %c0_88, %c0_89] : memref<9x8x8xf32, #tpu.memory_space<vmem>>, vector<1x8x8xf32>
    %87 = vector.shape_cast %86 : vector<1x8x8xf32> to vector<8x8xf32>
    %cst_90 = arith.constant dense<0.000000e+00> : vector<8x768xf32>
    %88 = tpu.matmul %87, %85, %cst_90 {dimension_numbers = #tpu.dot_dimension_numbers<[1], [0], [0], [1], [0, 0, 1, 1], [], []>} : vector<8x8xf32>, vector<8x768xf32>, vector<8x768xf32> -> vector<8x768xf32>
    %89 = arith.addf %84, %88 : vector<8x768xf32>
    %c0_91 = arith.constant 0 : index
    %c0_92 = arith.constant 0 : index
    %90 = vector.load %arg5[%c0_91, %c0_92] : memref<8x1xf32, #tpu.memory_space<vmem>>, vector<8x1xf32>
    %c0_93 = arith.constant 0 : index
    %c0_94 = arith.constant 0 : index
    %91 = vector.load %arg6[%c0_93, %c0_94] : memref<8x1xf32, #tpu.memory_space<vmem>>, vector<8x1xf32>
    %c0_95 = arith.constant 0 : index
    %c0_96 = arith.constant 0 : index
    %92 = vector.load %arg7[%c0_95, %c0_96] : memref<8x1xf32, #tpu.memory_space<vmem>>, vector<8x1xf32>
    %93 = vector.broadcast %90 : vector<8x1xf32> to vector<8x768xf32>
    %94 = arith.addf %89, %93 : vector<8x768xf32>
    %95 = vector.broadcast %0 : vector<1x768xf32> to vector<8x768xf32>
    %96 = arith.mulf %94, %95 : vector<8x768xf32>
    %cst_97 = arith.constant dense<0.000000e+00> : vector<8xf32>
    %97 = vector.multi_reduction <add>, %96, %cst_97 [1] : vector<8x768xf32> to vector<8xf32>
    %98 = vector.shape_cast %97 : vector<8xf32> to vector<8x1xf32>
    %cst_98 = arith.constant 0.001953125 : f32
    %99 = vector.broadcast %cst_98 : f32 to vector<8x1xf32>
    %100 = arith.mulf %98, %99 : vector<8x1xf32>
    %101 = vector.broadcast %100 : vector<8x1xf32> to vector<8x768xf32>
    %102 = arith.subf %96, %101 : vector<8x768xf32>
    %103 = vector.broadcast %0 : vector<1x768xf32> to vector<8x768xf32>
    %104 = arith.mulf %102, %103 : vector<8x768xf32>
    %105 = arith.mulf %104, %104 : vector<8x768xf32>
    %cst_99 = arith.constant dense<0.000000e+00> : vector<8xf32>
    %106 = vector.multi_reduction <add>, %105, %cst_99 [1] : vector<8x768xf32> to vector<8xf32>
    %107 = vector.shape_cast %106 : vector<8xf32> to vector<8x1xf32>
    %cst_100 = arith.constant 0.001953125 : f32
    %108 = vector.broadcast %cst_100 : f32 to vector<8x1xf32>
    %109 = arith.mulf %107, %108 : vector<8x1xf32>
    %cst_101 = arith.constant 9.99999974E-6 : f32
    %110 = vector.broadcast %cst_101 : f32 to vector<8x1xf32>
    %111 = arith.addf %109, %110 : vector<8x1xf32>
    %112 = math.rsqrt %111 : vector<8x1xf32>
    %113 = vector.broadcast %112 : vector<8x1xf32> to vector<8x768xf32>
    %114 = arith.mulf %104, %113 : vector<8x768xf32>
    %115 = vector.broadcast %91 : vector<8x1xf32> to vector<8x768xf32>
    %116 = arith.mulf %114, %115 : vector<8x768xf32>
    %117 = vector.broadcast %92 : vector<8x1xf32> to vector<8x768xf32>
    %118 = arith.addf %116, %117 : vector<8x768xf32>
    %cst_102 = arith.constant 0.000000e+00 : f32
    %119 = vector.broadcast %cst_102 : f32 to vector<8x768xf32>
    %120 = arith.maximumf %118, %119 : vector<8x768xf32>
    %121 = vector.broadcast %0 : vector<1x768xf32> to vector<8x768xf32>
    %122 = arith.mulf %120, %121 : vector<8x768xf32>
    %cst_103 = arith.constant 0.000000e+00 : f32
    %123 = vector.broadcast %cst_103 : f32 to vector<8x1024xf32>
    %c0_104 = arith.constant 0 : index
    %c0_105 = arith.constant 0 : index
    %124 = vector.load %arg13[%c0_104, %c0_105] : memref<8x1024xf32, #tpu.memory_space<vmem>>, vector<8x1024xf32>
    tpu.vector_store %arg13[%c0_104, %c0_105], %123 {strides = array<i32>} : memref<8x1024xf32, #tpu.memory_space<vmem>>, vector<8x1024xf32>,
    %c0_106 = arith.constant 0 : index
    %c128_107 = arith.constant 128 : index
    %125 = vector.load %arg13[%c0_106, %c128_107] : memref<8x1024xf32, #tpu.memory_space<vmem>>, vector<8x768xf32>
    tpu.vector_store %arg13[%c0_106, %c128_107], %122 {strides = array<i32>} : memref<8x1024xf32, #tpu.memory_space<vmem>>, vector<8x768xf32>,
    %c0_108 = arith.constant 0 : index
    %c109_109 = arith.constant 109 : index
    %126 = vector.load %arg13[%c0_108, %c109_109] : memref<8x1024xf32, #tpu.memory_space<vmem>>, vector<8x768xf32>
    %c0_110 = arith.constant 0 : index
    %c0_111 = arith.constant 0 : index
    %c0_112 = arith.constant 0 : index
    %127 = vector.load %arg8[%c0_110, %c0_111, %c0_112] : memref<9x8x8xf32, #tpu.memory_space<vmem>>, vector<1x8x8xf32>
    %128 = vector.shape_cast %127 : vector<1x8x8xf32> to vector<8x8xf32>
    %cst_113 = arith.constant dense<0.000000e+00> : vector<8x768xf32>
    %129 = tpu.matmul %128, %126, %cst_113 {dimension_numbers = #tpu.dot_dimension_numbers<[1], [0], [0], [1], [0, 0, 1, 1], [], []>} : vector<8x8xf32>, vector<8x768xf32>, vector<8x768xf32> -> vector<8x768xf32>
    %c0_114 = arith.constant 0 : index
    %c110_115 = arith.constant 110 : index
    %130 = vector.load %arg13[%c0_114, %c110_115] : memref<8x1024xf32, #tpu.memory_space<vmem>>, vector<8x768xf32>
    %c1_116 = arith.constant 1 : index
    %c0_117 = arith.constant 0 : index
    %c0_118 = arith.constant 0 : index
    %131 = vector.load %arg8[%c1_116, %c0_117, %c0_118] : memref<9x8x8xf32, #tpu.memory_space<vmem>>, vector<1x8x8xf32>
    %132 = vector.shape_cast %131 : vector<1x8x8xf32> to vector<8x8xf32>
    %cst_119 = arith.constant dense<0.000000e+00> : vector<8x768xf32>
    %133 = tpu.matmul %132, %130, %cst_119 {dimension_numbers = #tpu.dot_dimension_numbers<[1], [0], [0], [1], [0, 0, 1, 1], [], []>} : vector<8x8xf32>, vector<8x768xf32>, vector<8x768xf32> -> vector<8x768xf32>
    %134 = arith.addf %129, %133 : vector<8x768xf32>
    %c0_120 = arith.constant 0 : index
    %c111_121 = arith.constant 111 : index
    %135 = vector.load %arg13[%c0_120, %c111_121] : memref<8x1024xf32, #tpu.memory_space<vmem>>, vector<8x768xf32>
    %c2_122 = arith.constant 2 : index
    %c0_123 = arith.constant 0 : index
    %c0_124 = arith.constant 0 : index
    %136 = vector.load %arg8[%c2_122, %c0_123, %c0_124] : memref<9x8x8xf32, #tpu.memory_space<vmem>>, vector<1x8x8xf32>
    %137 = vector.shape_cast %136 : vector<1x8x8xf32> to vector<8x8xf32>
    %cst_125 = arith.constant dense<0.000000e+00> : vector<8x768xf32>
    %138 = tpu.matmul %137, %135, %cst_125 {dimension_numbers = #tpu.dot_dimension_numbers<[1], [0], [0], [1], [0, 0, 1, 1], [], []>} : vector<8x8xf32>, vector<8x768xf32>, vector<8x768xf32> -> vector<8x768xf32>
    %139 = arith.addf %134, %138 : vector<8x768xf32>
    %c0_126 = arith.constant 0 : index
    %c127_127 = arith.constant 127 : index
    %140 = vector.load %arg13[%c0_126, %c127_127] : memref<8x1024xf32, #tpu.memory_space<vmem>>, vector<8x768xf32>
    %c3_128 = arith.constant 3 : index
    %c0_129 = arith.constant 0 : index
    %c0_130 = arith.constant 0 : index
    %141 = vector.load %arg8[%c3_128, %c0_129, %c0_130] : memref<9x8x8xf32, #tpu.memory_space<vmem>>, vector<1x8x8xf32>
    %142 = vector.shape_cast %141 : vector<1x8x8xf32> to vector<8x8xf32>
    %cst_131 = arith.constant dense<0.000000e+00> : vector<8x768xf32>
    %143 = tpu.matmul %142, %140, %cst_131 {dimension_numbers = #tpu.dot_dimension_numbers<[1], [0], [0], [1], [0, 0, 1, 1], [], []>} : vector<8x8xf32>, vector<8x768xf32>, vector<8x768xf32> -> vector<8x768xf32>
    %144 = arith.addf %139, %143 : vector<8x768xf32>
    %c0_132 = arith.constant 0 : index
    %c128_133 = arith.constant 128 : index
    %145 = vector.load %arg13[%c0_132, %c128_133] : memref<8x1024xf32, #tpu.memory_space<vmem>>, vector<8x768xf32>
    %c4_134 = arith.constant 4 : index
    %c0_135 = arith.constant 0 : index
    %c0_136 = arith.constant 0 : index
    %146 = vector.load %arg8[%c4_134, %c0_135, %c0_136] : memref<9x8x8xf32, #tpu.memory_space<vmem>>, vector<1x8x8xf32>
    %147 = vector.shape_cast %146 : vector<1x8x8xf32> to vector<8x8xf32>
    %cst_137 = arith.constant dense<0.000000e+00> : vector<8x768xf32>
    %148 = tpu.matmul %147, %145, %cst_137 {dimension_numbers = #tpu.dot_dimension_numbers<[1], [0], [0], [1], [0, 0, 1, 1], [], []>} : vector<8x8xf32>, vector<8x768xf32>, vector<8x768xf32> -> vector<8x768xf32>
    %149 = arith.addf %144, %148 : vector<8x768xf32>
    %c0_138 = arith.constant 0 : index
    %c129_139 = arith.constant 129 : index
    %150 = vector.load %arg13[%c0_138, %c129_139] : memref<8x1024xf32, #tpu.memory_space<vmem>>, vector<8x768xf32>
    %c5_140 = arith.constant 5 : index
    %c0_141 = arith.constant 0 : index
    %c0_142 = arith.constant 0 : index
    %151 = vector.load %arg8[%c5_140, %c0_141, %c0_142] : memref<9x8x8xf32, #tpu.memory_space<vmem>>, vector<1x8x8xf32>
    %152 = vector.shape_cast %151 : vector<1x8x8xf32> to vector<8x8xf32>
    %cst_143 = arith.constant dense<0.000000e+00> : vector<8x768xf32>
    %153 = tpu.matmul %152, %150, %cst_143 {dimension_numbers = #tpu.dot_dimension_numbers<[1], [0], [0], [1], [0, 0, 1, 1], [], []>} : vector<8x8xf32>, vector<8x768xf32>, vector<8x768xf32> -> vector<8x768xf32>
    %154 = arith.addf %149, %153 : vector<8x768xf32>
    %c0_144 = arith.constant 0 : index
    %c145_145 = arith.constant 145 : index
    %155 = vector.load %arg13[%c0_144, %c145_145] : memref<8x1024xf32, #tpu.memory_space<vmem>>, vector<8x768xf32>
    %c6_146 = arith.constant 6 : index
    %c0_147 = arith.constant 0 : index
    %c0_148 = arith.constant 0 : index
    %156 = vector.load %arg8[%c6_146, %c0_147, %c0_148] : memref<9x8x8xf32, #tpu.memory_space<vmem>>, vector<1x8x8xf32>
    %157 = vector.shape_cast %156 : vector<1x8x8xf32> to vector<8x8xf32>
    %cst_149 = arith.constant dense<0.000000e+00> : vector<8x768xf32>
    %158 = tpu.matmul %157, %155, %cst_149 {dimension_numbers = #tpu.dot_dimension_numbers<[1], [0], [0], [1], [0, 0, 1, 1], [], []>} : vector<8x8xf32>, vector<8x768xf32>, vector<8x768xf32> -> vector<8x768xf32>
    %159 = arith.addf %154, %158 : vector<8x768xf32>
    %c0_150 = arith.constant 0 : index
    %c146_151 = arith.constant 146 : index
    %160 = vector.load %arg13[%c0_150, %c146_151] : memref<8x1024xf32, #tpu.memory_space<vmem>>, vector<8x768xf32>
    %c7_152 = arith.constant 7 : index
    %c0_153 = arith.constant 0 : index
    %c0_154 = arith.constant 0 : index
    %161 = vector.load %arg8[%c7_152, %c0_153, %c0_154] : memref<9x8x8xf32, #tpu.memory_space<vmem>>, vector<1x8x8xf32>
    %162 = vector.shape_cast %161 : vector<1x8x8xf32> to vector<8x8xf32>
    %cst_155 = arith.constant dense<0.000000e+00> : vector<8x768xf32>
    %163 = tpu.matmul %162, %160, %cst_155 {dimension_numbers = #tpu.dot_dimension_numbers<[1], [0], [0], [1], [0, 0, 1, 1], [], []>} : vector<8x8xf32>, vector<8x768xf32>, vector<8x768xf32> -> vector<8x768xf32>
    %164 = arith.addf %159, %163 : vector<8x768xf32>
    %c0_156 = arith.constant 0 : index
    %c147_157 = arith.constant 147 : index
    %165 = vector.load %arg13[%c0_156, %c147_157] : memref<8x1024xf32, #tpu.memory_space<vmem>>, vector<8x768xf32>
    %c8_158 = arith.constant 8 : index
    %c0_159 = arith.constant 0 : index
    %c0_160 = arith.constant 0 : index
    %166 = vector.load %arg8[%c8_158, %c0_159, %c0_160] : memref<9x8x8xf32, #tpu.memory_space<vmem>>, vector<1x8x8xf32>
    %167 = vector.shape_cast %166 : vector<1x8x8xf32> to vector<8x8xf32>
    %cst_161 = arith.constant dense<0.000000e+00> : vector<8x768xf32>
    %168 = tpu.matmul %167, %165, %cst_161 {dimension_numbers = #tpu.dot_dimension_numbers<[1], [0], [0], [1], [0, 0, 1, 1], [], []>} : vector<8x8xf32>, vector<8x768xf32>, vector<8x768xf32> -> vector<8x768xf32>
    %169 = arith.addf %164, %168 : vector<8x768xf32>
    %c0_162 = arith.constant 0 : index
    %c0_163 = arith.constant 0 : index
    %170 = vector.load %arg9[%c0_162, %c0_163] : memref<8x1xf32, #tpu.memory_space<vmem>>, vector<8x1xf32>
    %c0_164 = arith.constant 0 : index
    %c0_165 = arith.constant 0 : index
    %171 = vector.load %arg10[%c0_164, %c0_165] : memref<8x1xf32, #tpu.memory_space<vmem>>, vector<8x1xf32>
    %c0_166 = arith.constant 0 : index
    %c0_167 = arith.constant 0 : index
    %172 = vector.load %arg11[%c0_166, %c0_167] : memref<8x1xf32, #tpu.memory_space<vmem>>, vector<8x1xf32>
    %173 = vector.broadcast %170 : vector<8x1xf32> to vector<8x768xf32>
    %174 = arith.addf %169, %173 : vector<8x768xf32>
    %175 = vector.broadcast %0 : vector<1x768xf32> to vector<8x768xf32>
    %176 = arith.mulf %174, %175 : vector<8x768xf32>
    %cst_168 = arith.constant dense<0.000000e+00> : vector<8xf32>
    %177 = vector.multi_reduction <add>, %176, %cst_168 [1] : vector<8x768xf32> to vector<8xf32>
    %178 = vector.shape_cast %177 : vector<8xf32> to vector<8x1xf32>
    %cst_169 = arith.constant 0.001953125 : f32
    %179 = vector.broadcast %cst_169 : f32 to vector<8x1xf32>
    %180 = arith.mulf %178, %179 : vector<8x1xf32>
    %181 = vector.broadcast %180 : vector<8x1xf32> to vector<8x768xf32>
    %182 = arith.subf %176, %181 : vector<8x768xf32>
    %183 = vector.broadcast %0 : vector<1x768xf32> to vector<8x768xf32>
    %184 = arith.mulf %182, %183 : vector<8x768xf32>
    %185 = arith.mulf %184, %184 : vector<8x768xf32>
    %cst_170 = arith.constant dense<0.000000e+00> : vector<8xf32>
    %186 = vector.multi_reduction <add>, %185, %cst_170 [1] : vector<8x768xf32> to vector<8xf32>
    %187 = vector.shape_cast %186 : vector<8xf32> to vector<8x1xf32>
    %cst_171 = arith.constant 0.001953125 : f32
    %188 = vector.broadcast %cst_171 : f32 to vector<8x1xf32>
    %189 = arith.mulf %187, %188 : vector<8x1xf32>
    %cst_172 = arith.constant 9.99999974E-6 : f32
    %190 = vector.broadcast %cst_172 : f32 to vector<8x1xf32>
    %191 = arith.addf %189, %190 : vector<8x1xf32>
    %192 = math.rsqrt %191 : vector<8x1xf32>
    %193 = vector.broadcast %192 : vector<8x1xf32> to vector<8x768xf32>
    %194 = arith.mulf %184, %193 : vector<8x768xf32>
    %195 = vector.broadcast %171 : vector<8x1xf32> to vector<8x768xf32>
    %196 = arith.mulf %194, %195 : vector<8x768xf32>
    %197 = vector.broadcast %172 : vector<8x1xf32> to vector<8x768xf32>
    %198 = arith.addf %196, %197 : vector<8x768xf32>
    %cst_173 = arith.constant 0.000000e+00 : f32
    %199 = vector.broadcast %cst_173 : f32 to vector<8x768xf32>
    %200 = arith.maximumf %198, %199 : vector<8x768xf32>
    %201 = vector.broadcast %0 : vector<1x768xf32> to vector<8x768xf32>
    %202 = arith.mulf %200, %201 : vector<8x768xf32>
    %c0_174 = arith.constant 0 : index
    %c0_175 = arith.constant 0 : index
    %203 = vector.load %arg12[%c0_174, %c0_175] : memref<8x768xf32, #tpu.memory_space<vmem>>, vector<8x768xf32>
    tpu.vector_store %arg12[%c0_174, %c0_175], %202 {strides = array<i32>} : memref<8x768xf32, #tpu.memory_space<vmem>>, vector<8x768xf32>,
    return
  }
}

</mosaic_0001>

<llo_original>
// kernel: decoder_block_fwd.2
$region0: #{decoder_block_fwd.2}
  #allocation0 [shape = 'u32[]', space=smem, size = 0x4, offset = 0x4, fixed_abs, tag = 'smem constant byte address 0x4 - core index']
  #allocation1 [shape = 'u32[72,128]{1,0:T(1,128)}', space=vmem, size = 0x9000, scoped, tag = 'internal scratch']
  %s0 = inlined_call_operand.vmem [shape: f32[8,128], index: 0, kind: input, shape index: {}]
  %s1 = inlined_call_operand.vmem [shape: f32[4,8,8], index: 1, kind: input, shape index: {}]
  %s2 = inlined_call_operand.vmem [shape: f32[8,1], index: 2, kind: input, shape index: {}]
  %s3 = inlined_call_operand.vmem [shape: f32[4,8,128], index: 3, kind: output, shape index: {}]
  %s4 = sld [smem:[#allocation0]]
  $region22: #{decoder_block_fwd.2} parent=0
    _
  %s6 = ssub.s32 1, %s4
  %s7 = scalar_select 0, %s6, %s4
  // Predicated region
  $region2: #{decoder_block_fwd.2} parent=0 // pred_check
    _
  $region3: #{decoder_block_fwd.2} parent=0 // pred_check_branch
    %9 = sbr.rel (0) target = $region5
  $region4: #{decoder_block_fwd.2} parent=0 // pred_region
    _
  $region5: #{decoder_block_fwd.2} parent=0 // pred_fallthru
    _
  // Predicated region
  $region6: #{decoder_block_fwd.2} parent=0 // pred_check
    _
  $region7: #{decoder_block_fwd.2} parent=0 // pred_check_branch
    %11 = sbr.rel (0) target = $region9
  $region8: #{decoder_block_fwd.2} parent=0 // pred_region
    _
  $region9: #{decoder_block_fwd.2} parent=0 // pred_fallthru
    _
  // Predicated region
  $region10: #{decoder_block_fwd.2} parent=0 // pred_check
    _
  $region11: #{decoder_block_fwd.2} parent=0 // pred_check_branch
    %13 = sbr.rel (0) target = $region13
  $region12: #{decoder_block_fwd.2} parent=0 // pred_region
    _
  $region13: #{decoder_block_fwd.2} parent=0 // pred_fallthru
    _
  %v14 = vld [vmem:[%s0] sm:$0xff]
  %v15 = vld [vmem:[%s2] sm:$0xff]
  %v16 = vld [vmem:[%s1] sm:$0xff]
  %18 = vset.pattern.permute.xlu0 0
  %19 = vperm.xlu0 %18, %v15
  %v20 = vpop.permute.xlu0 %19
  %vm22 = vcmask 64512
  %v24 = vsel %vm22, %v16, 0
  %26 = vmatpush.msra.mxu0 0.0
  %27 = vmatpush.msra.mxu0 0.0
  %28 = vmatpush.msra.mxu0 0.0
  %29 = vmatpush.msra.mxu0 0.0
  %30 = vmatpush.msra.mxu0 0.0
  %31 = vmatpush.msra.mxu0 0.0
  %32 = vmatpush.msra.mxu0 0.0
  %33 = vmatpush.msra.mxu0 0.0
  %34 = vmatpush.msra.mxu0 0.0
  %35 = vmatpush.msra.mxu0 0.0
  %36 = vmatpush.msra.mxu0 0.0
  %37 = vmatpush.msra.mxu0 0.0
  %38 = vmatpush.msra.mxu0 0.0
  %39 = vmatpush.msra.mxu0 0.0
  %40 = vmatpush.msra.mxu0 0.0
  %41 = vmatpush.msra.mxu0 %v14
  %42 = vmatmul.f32.gmra.mxu0 %v24
  %v43 = vpop.f32.mrf.mxu0
  %v44 = vadd.f32 %v20, %v43
  %45 = vdwg.mxu0
  %46 = vst [vmem:[%s3] sm:$0xff] %v44
  %s47 = scalar_lea.vmem %s1, 8
  %v48 = vld [vmem:[%s47] sm:$0xff]
  %v50 = vsel %vm22, %v48, 0
  %52 = vmatpush.msra.mxu0 0.0
  %53 = vmatpush.msra.mxu0 0.0
  %54 = vmatpush.msra.mxu0 0.0
  %55 = vmatpush.msra.mxu0 0.0
  %56 = vmatpush.msra.mxu0 0.0
  %57 = vmatpush.msra.mxu0 0.0
  %58 = vmatpush.msra.mxu0 0.0
  %59 = vmatpush.msra.mxu0 0.0
  %60 = vmatpush.msra.mxu0 0.0
  %61 = vmatpush.msra.mxu0 0.0
  %62 = vmatpush.msra.mxu0 0.0
  %63 = vmatpush.msra.mxu0 0.0
  %64 = vmatpush.msra.mxu0 0.0
  %65 = vmatpush.msra.mxu0 0.0
  %66 = vmatpush.msra.mxu0 0.0
  %67 = vmatpush.msra.mxu0 %v14
  %68 = vmatmul.f32.gmra.mxu0 %v50
  %v69 = vpop.f32.mrf.mxu0
  %v70 = vadd.f32 %v20, %v69
  %71 = vdwg.mxu0
  %s72 = scalar_lea.vmem %s3, 8
  %73 = vst [vmem:[%s72] sm:$0xff] %v70
  %s74 = scalar_lea.vmem %s1, 16
  %v75 = vld [vmem:[%s74] sm:$0xff]
  %v77 = vsel %vm22, %v75, 0
  %79 = vmatpush.msra.mxu0 0.0
  %80 = vmatpush.msra.mxu0 0.0
  %81 = vmatpush.msra.mxu0 0.0
  %82 = vmatpush.msra.mxu0 0.0
  %83 = vmatpush.msra.mxu0 0.0
  %84 = vmatpush.msra.mxu0 0.0
  %85 = vmatpush.msra.mxu0 0.0
  %86 = vmatpush.msra.mxu0 0.0
  %87 = vmatpush.msra.mxu0 0.0
  %88 = vmatpush.msra.mxu0 0.0
  %89 = vmatpush.msra.mxu0 0.0
  %90 = vmatpush.msra.mxu0 0.0
  %91 = vmatpush.msra.mxu0 0.0
  %92 = vmatpush.msra.mxu0 0.0
  %93 = vmatpush.msra.mxu0 0.0
  %94 = vmatpush.msra.mxu0 %v14
  %95 = vmatmul.f32.gmra.mxu0 %v77
  %v96 = vpop.f32.mrf.mxu0
  %v97 = vadd.f32 %v20, %v96
  %98 = vdwg.mxu0
  %s99 = scalar_lea.vmem %s3, 16
  %100 = vst [vmem:[%s99] sm:$0xff] %v97
  %s101 = scalar_lea.vmem %s1, 24
  %v102 = vld [vmem:[%s101] sm:$0xff]
  %v104 = vsel %vm22, %v102, 0
  %106 = vmatpush.msra.mxu0 0.0
  %107 = vmatpush.msra.mxu0 0.0
  %108 = vmatpush.msra.mxu0 0.0
  %109 = vmatpush.msra.mxu0 0.0
  %110 = vmatpush.msra.mxu0 0.0
  %111 = vmatpush.msra.mxu0 0.0
  %112 = vmatpush.msra.mxu0 0.0
  %113 = vmatpush.msra.mxu0 0.0
  %114 = vmatpush.msra.mxu0 0.0
  %115 = vmatpush.msra.mxu0 0.0
  %116 = vmatpush.msra.mxu0 0.0
  %117 = vmatpush.msra.mxu0 0.0
  %118 = vmatpush.msra.mxu0 0.0
  %119 = vmatpush.msra.mxu0 0.0
  %120 = vmatpush.msra.mxu0 0.0
  %121 = vmatpush.msra.mxu0 %v14
  %122 = vmatmul.f32.gmra.mxu0 %v104
  %v123 = vpop.f32.mrf.mxu0
  %v124 = vadd.f32 %v20, %v123
  %125 = vdwg.mxu0
  %s126 = scalar_lea.vmem %s3, 24
  %127 = vst [vmem:[%s126] sm:$0xff] %v124
  // Predicated region
  $region14: #{decoder_block_fwd.2} parent=0 // pred_check
    _
  $region15: #{decoder_block_fwd.2} parent=0 // pred_check_branch
    %129 = sbr.rel (0) target = $region17
  $region16: #{decoder_block_fwd.2} parent=0 // pred_region
    _
  $region17: #{decoder_block_fwd.2} parent=0 // pred_fallthru
    _
  // Predicated region
  $region18: #{decoder_block_fwd.2} parent=0 // pred_check
    _
  $region19: #{decoder_block_fwd.2} parent=0 // pred_check_branch
    %131 = sbr.rel (0) target = $region21
  $region20: #{decoder_block_fwd.2} parent=0 // pred_region
    _
  $region21: #{decoder_block_fwd.2} parent=0 // pred_fallthru
    _

// kernel: decoder_block_fwd.3
$region0: #{decoder_block_fwd.3}
  #allocation0 [shape = 'u32[]', space=smem, size = 0x4, offset = 0x4, fixed_abs, tag = 'smem constant byte address 0x4 - core index']
  #allocation1 [shape = 'u32[72,128]{1,0:T(1,128)}', space=vmem, size = 0x9000, scoped, tag = 'internal scratch']
  #allocation2 [shape = 'f32[8,1024]{1,0:T(8,128)}', space=vmem, size = 0x8000, scoped, tag = 'scratch operand']
  %s0 = inlined_call_operand.vmem [shape: f32[8,1024], index: 0, kind: input, shape index: {}]
  %s1 = inlined_call_operand.vmem [shape: f32[8,1024], index: 1, kind: input, shape index: {}]
  %s2 = inlined_call_operand.vmem [shape: f32[1,768], index: 2, kind: input, shape index: {}]
  %s3 = inlined_call_operand.vmem [shape: f32[9,8,8], index: 3, kind: input, shape index: {}]
  %s4 = inlined_call_operand.vmem [shape: f32[9,8,8], index: 4, kind: input, shape index: {}]
  %s5 = inlined_call_operand.vmem [shape: f32[8,1], index: 5, kind: input, shape index: {}]
  %s6 = inlined_call_operand.vmem [shape: f32[8,1], index: 6, kind: input, shape index: {}]
  %s7 = inlined_call_operand.vmem [shape: f32[8,1], index: 7, kind: input, shape index: {}]
  %s8 = inlined_call_operand.vmem [shape: f32[9,8,8], index: 8, kind: input, shape index: {}]
  %s9 = inlined_call_operand.vmem [shape: f32[8,1], index: 9, kind: input, shape index: {}]
  %s10 = inlined_call_operand.vmem [shape: f32[8,1], index: 10, kind: input, shape index: {}]
  %s11 = inlined_call_operand.vmem [shape: f32[8,1], index: 11, kind: input, shape index: {}]
  %s12 = inlined_call_operand.vmem [shape: f32[8,768], index: 12, kind: output, shape index: {}]
  %s13 = sld [smem:[#allocation0]]
  $region58: #{decoder_block_fwd.3} parent=0
    _
  %s15 = ssub.s32 1, %s13
  %s16 = scalar_select 0, %s15, %s13
  // Predicated region
  $region2: #{decoder_block_fwd.3} parent=0 // pred_check
    _
  $region3: #{decoder_block_fwd.3} parent=0 // pred_check_branch
    %18 = sbr.rel (0) target = $region5
  $region4: #{decoder_block_fwd.3} parent=0 // pred_region
    _
  $region5: #{decoder_block_fwd.3} parent=0 // pred_fallthru
    _
  // Predicated region
  $region6: #{decoder_block_fwd.3} parent=0 // pred_check
    _
  $region7: #{decoder_block_fwd.3} parent=0 // pred_check_branch
    %20 = sbr.rel (0) target = $region9
  $region8: #{decoder_block_fwd.3} parent=0 // pred_region
    _
  $region9: #{decoder_block_fwd.3} parent=0 // pred_fallthru
    _
  // Predicated region
  $region10: #{decoder_block_fwd.3} parent=0 // pred_check
    _
  $region11: #{decoder_block_fwd.3} parent=0 // pred_check_branch
    %22 = sbr.rel (0) target = $region13
  $region12: #{decoder_block_fwd.3} parent=0 // pred_region
    _
  $region13: #{decoder_block_fwd.3} parent=0 // pred_fallthru
    _
  // Predicated region
  $region14: #{decoder_block_fwd.3} parent=0 // pred_check
    _
  $region15: #{decoder_block_fwd.3} parent=0 // pred_check_branch
    %24 = sbr.rel (0) target = $region17
  $region16: #{decoder_block_fwd.3} parent=0 // pred_region
    _
  $region17: #{decoder_block_fwd.3} parent=0 // pred_fallthru
    _
  // Predicated region
  $region18: #{decoder_block_fwd.3} parent=0 // pred_check
    _
  $region19: #{decoder_block_fwd.3} parent=0 // pred_check_branch
    %26 = sbr.rel (0) target = $region21
  $region20: #{decoder_block_fwd.3} parent=0 // pred_region
    _
  $region21: #{decoder_block_fwd.3} parent=0 // pred_fallthru
    _
  // Predicated region
  $region22: #{decoder_block_fwd.3} parent=0 // pred_check
    _
  $region23: #{decoder_block_fwd.3} parent=0 // pred_check_branch
    %28 = sbr.rel (0) target = $region25
  $region24: #{decoder_block_fwd.3} parent=0 // pred_region
    _
  $region25: #{decoder_block_fwd.3} parent=0 // pred_fallthru
    _
  // Predicated region
  $region26: #{decoder_block_fwd.3} parent=0 // pred_check
    _
  $region27: #{decoder_block_fwd.3} parent=0 // pred_check_branch
    %30 = sbr.rel (0) target = $region29
  $region28: #{decoder_block_fwd.3} parent=0 // pred_region
    _
  $region29: #{decoder_block_fwd.3} parent=0 // pred_fallthru
    _
  // Predicated region
  $region30: #{decoder_block_fwd.3} parent=0 // pred_check
    _
  $region31: #{decoder_block_fwd.3} parent=0 // pred_check_branch
    %32 = sbr.rel (0) target = $region33
  $region32: #{decoder_block_fwd.3} parent=0 // pred_region
    _
  $region33: #{decoder_block_fwd.3} parent=0 // pred_fallthru
    _
  // Predicated region
  $region34: #{decoder_block_fwd.3} parent=0 // pred_check
    _
  $region35: #{decoder_block_fwd.3} parent=0 // pred_check_branch
    %34 = sbr.rel (0) target = $region37
  $region36: #{decoder_block_fwd.3} parent=0 // pred_region
    _
  $region37: #{decoder_block_fwd.3} parent=0 // pred_fallthru
    _
  // Predicated region
  $region38: #{decoder_block_fwd.3} parent=0 // pred_check
    _
  $region39: #{decoder_block_fwd.3} parent=0 // pred_check_branch
    %36 = sbr.rel (0) target = $region41
  $region40: #{decoder_block_fwd.3} parent=0 // pred_region
    _
  $region41: #{decoder_block_fwd.3} parent=0 // pred_fallthru
    _
  // Predicated region
  $region42: #{decoder_block_fwd.3} parent=0 // pred_check
    _
  $region43: #{decoder_block_fwd.3} parent=0 // pred_check_branch
    %38 = sbr.rel (0) target = $region45
  $region44: #{decoder_block_fwd.3} parent=0 // pred_region
    _
  $region45: #{decoder_block_fwd.3} parent=0 // pred_fallthru
    _
  // Predicated region
  $region46: #{decoder_block_fwd.3} parent=0 // pred_check
    _
  $region47: #{decoder_block_fwd.3} parent=0 // pred_check_branch
    %40 = sbr.rel (0) target = $region49
  $region48: #{decoder_block_fwd.3} parent=0 // pred_region
    _
  $region49: #{decoder_block_fwd.3} parent=0 // pred_fallthru
    _
  %v41 = vld [vmem:[%s2] sm:$0x3f]
  %v42 = vld [vmem:[%s0] sm:$0xff]
  %v43 = vld [vmem:[%s0 + $0x8] sm:$0xff]
  %v44 = vld [vmem:[%s0 + $0x10] sm:$0xff]
  %v45 = vld [vmem:[%s0 + $0x18] sm:$0xff]
  %v46 = vld [vmem:[%s0 + $0x20] sm:$0xff]
  %v47 = vld [vmem:[%s0 + $0x28] sm:$0xff]
  %v48 = vld [vmem:[%s0 + $0x30] sm:$0xff]
  %v49 = vld [vmem:[%s3] sm:$0xff]
  %s50 = scalar_lea.vmem %s3, 8
  %v51 = vld [vmem:[%s50] sm:$0xff]
  %59 = vrot.lane.b32.xlu0 %v42, 18
  %v60 = vpop.permute.xlu0 %59
  %61 = vrot.lane.b32.xlu0 %v43, 18
  %v62 = vpop.permute.xlu0 %61
  %63 = vrot.lane.b32.xlu0 %v44, 18
  %v64 = vpop.permute.xlu0 %63
  %65 = vrot.lane.b32.xlu0 %v45, 18
  %v66 = vpop.permute.xlu0 %65
  %67 = vrot.lane.b32.xlu0 %v46, 18
  %v68 = vpop.permute.xlu0 %67
  %69 = vrot.lane.b32.xlu0 %v47, 18
  %v70 = vpop.permute.xlu0 %69
  %71 = vrot.lane.b32.xlu0 %v48, 18
  %v72 = vpop.permute.xlu0 %71
  %vm73 = vcmask 146432
  %v74 = vsel %vm73, %v60, %v62
  %v75 = vsel %vm73, %v62, %v64
  %v76 = vsel %vm73, %v64, %v66
  %v77 = vsel %vm73, %v66, %v68
  %v78 = vsel %vm73, %v68, %v70
  %v79 = vsel %vm73, %v70, %v72
  %vm86 = vcmask 64512
  %v88 = vsel %vm86, %v51, 0
  %90 = vmatpush.msra.mxu0 0.0
  %91 = vmatpush.msra.mxu0 0.0
  %92 = vmatpush.msra.mxu0 0.0
  %93 = vmatpush.msra.mxu0 0.0
  %94 = vmatpush.msra.mxu0 0.0
  %95 = vmatpush.msra.mxu0 0.0
  %96 = vmatpush.msra.mxu0 0.0
  %97 = vmatpush.msra.mxu0 0.0
  %98 = vmatpush.msra.mxu0 0.0
  %99 = vmatpush.msra.mxu0 0.0
  %100 = vmatpush.msra.mxu0 0.0
  %101 = vmatpush.msra.mxu0 0.0
  %102 = vmatpush.msra.mxu0 0.0
  %103 = vmatpush.msra.mxu0 0.0
  %104 = vmatpush.msra.mxu0 0.0
  %105 = vmatpush.msra.mxu0 %v74
  %106 = vmatmul.f32.gmra.mxu0 %v88
  %v107 = vpop.f32.mrf.mxu0
  %v108 = vadd.f32 0.0, %v107
  %109 = vdwg.mxu0
  %110 = vmatpush.msra.mxu0 0.0
  %111 = vmatpush.msra.mxu0 0.0
  %112 = vmatpush.msra.mxu0 0.0
  %113 = vmatpush.msra.mxu0 0.0
  %114 = vmatpush.msra.mxu0 0.0
  %115 = vmatpush.msra.mxu0 0.0
  %116 = vmatpush.msra.mxu0 0.0
  %117 = vmatpush.msra.mxu0 0.0
  %118 = vmatpush.msra.mxu0 0.0
  %119 = vmatpush.msra.mxu0 0.0
  %120 = vmatpush.msra.mxu0 0.0
  %121 = vmatpush.msra.mxu0 0.0
  %122 = vmatpush.msra.mxu0 0.0
  %123 = vmatpush.msra.mxu0 0.0
  %124 = vmatpush.msra.mxu0 0.0
  %125 = vmatpush.msra.mxu0 %v75
  %126 = vmatmul.f32.gmra.mxu0 %v88
  %v127 = vpop.f32.mrf.mxu0
  %v128 = vadd.f32 0.0, %v127
  %129 = vdwg.mxu0
  %130 = vmatpush.msra.mxu0 0.0
  %131 = vmatpush.msra.mxu0 0.0
  %132 = vmatpush.msra.mxu0 0.0
  %133 = vmatpush.msra.mxu0 0.0
  %134 = vmatpush.msra.mxu0 0.0
  %135 = vmatpush.msra.mxu0 0.0
  %136 = vmatpush.msra.mxu0 0.0
  %137 = vmatpush.msra.mxu0 0.0
  %138 = vmatpush.msra.mxu0 0.0
  %139 = vmatpush.msra.mxu0 0.0
  %140 = vmatpush.msra.mxu0 0.0
  %141 = vmatpush.msra.mxu0 0.0
  %142 = vmatpush.msra.mxu0 0.0
  %143 = vmatpush.msra.mxu0 0.0
  %144 = vmatpush.msra.mxu0 0.0
  %145 = vmatpush.msra.mxu0 %v76
  %146 = vmatmul.f32.gmra.mxu0 %v88
  %v147 = vpop.f32.mrf.mxu0
  %v148 = vadd.f32 0.0, %v147
  %149 = vdwg.mxu0
  %150 = vmatpush.msra.mxu0 0.0
  %151 = vmatpush.msra.mxu0 0.0
  %152 = vmatpush.msra.mxu0 0.0
  %153 = vmatpush.msra.mxu0 0.0
  %154 = vmatpush.msra.mxu0 0.0
  %155 = vmatpush.msra.mxu0 0.0
  %156 = vmatpush.msra.mxu0 0.0
  %157 = vmatpush.msra.mxu0 0.0
  %158 = vmatpush.msra.mxu0 0.0
  %159 = vmatpush.msra.mxu0 0.0
  %160 = vmatpush.msra.mxu0 0.0
  %161 = vmatpush.msra.mxu0 0.0
  %162 = vmatpush.msra.mxu0 0.0
  %163 = vmatpush.msra.mxu0 0.0
  %164 = vmatpush.msra.mxu0 0.0
  %165 = vmatpush.msra.mxu0 %v77
  %166 = vmatmul.f32.gmra.mxu0 %v88
  %v167 = vpop.f32.mrf.mxu0
  %v168 = vadd.f32 0.0, %v167
  %169 = vdwg.mxu0
  %170 = vmatpush.msra.mxu0 0.0
  %171 = vmatpush.msra.mxu0 0.0
  %172 = vmatpush.msra.mxu0 0.0
  %173 = vmatpush.msra.mxu0 0.0
  %174 = vmatpush.msra.mxu0 0.0
  %175 = vmatpush.msra.mxu0 0.0
  %176 = vmatpush.msra.mxu0 0.0
  %177 = vmatpush.msra.mxu0 0.0
  %178 = vmatpush.msra.mxu0 0.0
  %179 = vmatpush.msra.mxu0 0.0
  %180 = vmatpush.msra.mxu0 0.0
  %181 = vmatpush.msra.mxu0 0.0
  %182 = vmatpush.msra.mxu0 0.0
  %183 = vmatpush.msra.mxu0 0.0
  %184 = vmatpush.msra.mxu0 0.0
  %185 = vmatpush.msra.mxu0 %v78
  %186 = vmatmul.f32.gmra.mxu0 %v88
  %v187 = vpop.f32.mrf.mxu0
  %v188 = vadd.f32 0.0, %v187
  %189 = vdwg.mxu0
  %190 = vmatpush.msra.mxu0 0.0
  %191 = vmatpush.msra.mxu0 0.0
  %192 = vmatpush.msra.mxu0 0.0
  %193 = vmatpush.msra.mxu0 0.0
  %194 = vmatpush.msra.mxu0 0.0
  %195 = vmatpush.msra.mxu0 0.0
  %196 = vmatpush.msra.mxu0 0.0
  %197 = vmatpush.msra.mxu0 0.0
  %198 = vmatpush.msra.mxu0 0.0
  %199 = vmatpush.msra.mxu0 0.0
  %200 = vmatpush.msra.mxu0 0.0
  %201 = vmatpush.msra.mxu0 0.0
  %202 = vmatpush.msra.mxu0 0.0
  %203 = vmatpush.msra.mxu0 0.0
  %204 = vmatpush.msra.mxu0 0.0
  %205 = vmatpush.msra.mxu0 %v79
  %206 = vmatmul.f32.gmra.mxu0 %v88
  %v207 = vpop.f32.mrf.mxu0
  %v208 = vadd.f32 0.0, %v207
  %209 = vdwg.mxu0
  %210 = vrot.lane.b32.xlu0 %v42, 19
  %v211 = vpop.permute.xlu0 %210
  %212 = vrot.lane.b32.xlu0 %v43, 19
  %v213 = vpop.permute.xlu0 %212
  %214 = vrot.lane.b32.xlu0 %v44, 19
  %v215 = vpop.permute.xlu0 %214
  %216 = vrot.lane.b32.xlu0 %v45, 19
  %v217 = vpop.permute.xlu0 %216
  %218 = vrot.lane.b32.xlu0 %v46, 19
  %v219 = vpop.permute.xlu0 %218
  %220 = vrot.lane.b32.xlu0 %v47, 19
  %v221 = vpop.permute.xlu0 %220
  %222 = vrot.lane.b32.xlu0 %v48, 19
  %v223 = vpop.permute.xlu0 %222
  %vm224 = vcmask 154624
  %v225 = vsel %vm224, %v211, %v213
  %v226 = vsel %vm224, %v213, %v215
  %v227 = vsel %vm224, %v215, %v217
  %v228 = vsel %vm224, %v217, %v219
  %v229 = vsel %vm224, %v219, %v221
  %v230 = vsel %vm224, %v221, %v223
  %v238 = vsel %vm86, %v49, 0
  %240 = vmatpush.msra.mxu0 0.0
  %241 = vmatpush.msra.mxu0 0.0
  %242 = vmatpush.msra.mxu0 0.0
  %243 = vmatpush.msra.mxu0 0.0
  %244 = vmatpush.msra.mxu0 0.0
  %245 = vmatpush.msra.mxu0 0.0
  %246 = vmatpush.msra.mxu0 0.0
  %247 = vmatpush.msra.mxu0 0.0
  %248 = vmatpush.msra.mxu0 0.0
  %249 = vmatpush.msra.mxu0 0.0
  %250 = vmatpush.msra.mxu0 0.0
  %251 = vmatpush.msra.mxu0 0.0
  %252 = vmatpush.msra.mxu0 0.0
  %253 = vmatpush.msra.mxu0 0.0
  %254 = vmatpush.msra.mxu0 0.0
  %255 = vmatpush.msra.mxu0 %v225
  %256 = vmatmul.f32.gmra.mxu0 %v238
  %v257 = vpop.f32.mrf.mxu0
  %v258 = vadd.f32 %v108, %v257
  %259 = vdwg.mxu0
  %260 = vmatpush.msra.mxu0 0.0
  %261 = vmatpush.msra.mxu0 0.0
  %262 = vmatpush.msra.mxu0 0.0
  %263 = vmatpush.msra.mxu0 0.0
  %264 = vmatpush.msra.mxu0 0.0
  %265 = vmatpush.msra.mxu0 0.0
  %266 = vmatpush.msra.mxu0 0.0
  %267 = vmatpush.msra.mxu0 0.0
  %268 = vmatpush.msra.mxu0 0.0
  %269 = vmatpush.msra.mxu0 0.0
  %270 = vmatpush.msra.mxu0 0.0
  %271 = vmatpush.msra.mxu0 0.0
  %272 = vmatpush.msra.mxu0 0.0
  %273 = vmatpush.msra.mxu0 0.0
  %274 = vmatpush.msra.mxu0 0.0
  %275 = vmatpush.msra.mxu0 %v226
  %276 = vmatmul.f32.gmra.mxu0 %v238
  %v277 = vpop.f32.mrf.mxu0
  %v278 = vadd.f32 %v128, %v277
  %279 = vdwg.mxu0
  %280 = vmatpush.msra.mxu0 0.0
  %281 = vmatpush.msra.mxu0 0.0
  %282 = vmatpush.msra.mxu0 0.0
  %283 = vmatpush.msra.mxu0 0.0
  %284 = vmatpush.msra.mxu0 0.0
  %285 = vmatpush.msra.mxu0 0.0
  %286 = vmatpush.msra.mxu0 0.0
  %287 = vmatpush.msra.mxu0 0.0
  %288 = vmatpush.msra.mxu0 0.0
  %289 = vmatpush.msra.mxu0 0.0
  %290 = vmatpush.msra.mxu0 0.0
  %291 = vmatpush.msra.mxu0 0.0
  %292 = vmatpush.msra.mxu0 0.0
  %293 = vmatpush.msra.mxu0 0.0
  %294 = vmatpush.msra.mxu0 0.0
  %295 = vmatpush.msra.mxu0 %v227
  %296 = vmatmul.f32.gmra.mxu0 %v238
  %v297 = vpop.f32.mrf.mxu0
  %v298 = vadd.f32 %v148, %v297
  %299 = vdwg.mxu0
  %300 = vmatpush.msra.mxu0 0.0
  %301 = vmatpush.msra.mxu0 0.0
  %302 = vmatpush.msra.mxu0 0.0
  %303 = vmatpush.msra.mxu0 0.0
  %304 = vmatpush.msra.mxu0 0.0
  %305 = vmatpush.msra.mxu0 0.0
  %306 = vmatpush.msra.mxu0 0.0
  %307 = vmatpush.msra.mxu0 0.0
  %308 = vmatpush.msra.mxu0 0.0
  %309 = vmatpush.msra.mxu0 0.0
  %310 = vmatpush.msra.mxu0 0.0
  %311 = vmatpush.msra.mxu0 0.0
  %312 = vmatpush.msra.mxu0 0.0
  %313 = vmatpush.msra.mxu0 0.0
  %314 = vmatpush.msra.mxu0 0.0
  %315 = vmatpush.msra.mxu0 %v228
  %316 = vmatmul.f32.gmra.mxu0 %v238
  %v317 = vpop.f32.mrf.mxu0
  %v318 = vadd.f32 %v168, %v317
  %319 = vdwg.mxu0
  %320 = vmatpush.msra.mxu0 0.0
  %321 = vmatpush.msra.mxu0 0.0
  %322 = vmatpush.msra.mxu0 0.0
  %323 = vmatpush.msra.mxu0 0.0
  %324 = vmatpush.msra.mxu0 0.0
  %325 = vmatpush.msra.mxu0 0.0
  %326 = vmatpush.msra.mxu0 0.0
  %327 = vmatpush.msra.mxu0 0.0
  %328 = vmatpush.msra.mxu0 0.0
  %329 = vmatpush.msra.mxu0 0.0
  %330 = vmatpush.msra.mxu0 0.0
  %331 = vmatpush.msra.mxu0 0.0
  %332 = vmatpush.msra.mxu0 0.0
  %333 = vmatpush.msra.mxu0 0.0
  %334 = vmatpush.msra.mxu0 0.0
  %335 = vmatpush.msra.mxu0 %v229
  %336 = vmatmul.f32.gmra.mxu0 %v238
  %v337 = vpop.f32.mrf.mxu0
  %v338 = vadd.f32 %v188, %v337
  %339 = vdwg.mxu0
  %340 = vmatpush.msra.mxu0 0.0
  %341 = vmatpush.msra.mxu0 0.0
  %342 = vmatpush.msra.mxu0 0.0
  %343 = vmatpush.msra.mxu0 0.0
  %344 = vmatpush.msra.mxu0 0.0
  %345 = vmatpush.msra.mxu0 0.0
  %346 = vmatpush.msra.mxu0 0.0
  %347 = vmatpush.msra.mxu0 0.0
  %348 = vmatpush.msra.mxu0 0.0
  %349 = vmatpush.msra.mxu0 0.0
  %350 = vmatpush.msra.mxu0 0.0
  %351 = vmatpush.msra.mxu0 0.0
  %352 = vmatpush.msra.mxu0 0.0
  %353 = vmatpush.msra.mxu0 0.0
  %354 = vmatpush.msra.mxu0 0.0
  %355 = vmatpush.msra.mxu0 %v230
  %356 = vmatmul.f32.gmra.mxu0 %v238
  %v357 = vpop.f32.mrf.mxu0
  %v358 = vadd.f32 %v208, %v357
  %359 = vdwg.mxu0
  %s360 = scalar_lea.vmem %s3, 16
  %v361 = vld [vmem:[%s360] sm:$0xff]
  %362 = vrot.lane.b32.xlu0 %v42, 17
  %v363 = vpop.permute.xlu0 %362
  %364 = vrot.lane.b32.xlu0 %v43, 17
  %v365 = vpop.permute.xlu0 %364
  %366 = vrot.lane.b32.xlu0 %v44, 17
  %v367 = vpop.permute.xlu0 %366
  %368 = vrot.lane.b32.xlu0 %v45, 17
  %v369 = vpop.permute.xlu0 %368
  %370 = vrot.lane.b32.xlu0 %v46, 17
  %v371 = vpop.permute.xlu0 %370
  %372 = vrot.lane.b32.xlu0 %v47, 17
  %v373 = vpop.permute.xlu0 %372
  %374 = vrot.lane.b32.xlu0 %v48, 17
  %v375 = vpop.permute.xlu0 %374
  %vm376 = vcmask 138240
  %v377 = vsel %vm376, %v363, %v365
  %v378 = vsel %vm376, %v365, %v367
  %v379 = vsel %vm376, %v367, %v369
  %v380 = vsel %vm376, %v369, %v371
  %v381 = vsel %vm376, %v371, %v373
  %v382 = vsel %vm376, %v373, %v375
  %v390 = vsel %vm86, %v361, 0
  %392 = vmatpush.msra.mxu0 0.0
  %393 = vmatpush.msra.mxu0 0.0
  %394 = vmatpush.msra.mxu0 0.0
  %395 = vmatpush.msra.mxu0 0.0
  %396 = vmatpush.msra.mxu0 0.0
  %397 = vmatpush.msra.mxu0 0.0
  %398 = vmatpush.msra.mxu0 0.0
  %399 = vmatpush.msra.mxu0 0.0
  %400 = vmatpush.msra.mxu0 0.0
  %401 = vmatpush.msra.mxu0 0.0
  %402 = vmatpush.msra.mxu0 0.0
  %403 = vmatpush.msra.mxu0 0.0
  %404 = vmatpush.msra.mxu0 0.0
  %405 = vmatpush.msra.mxu0 0.0
  %406 = vmatpush.msra.mxu0 0.0
  %407 = vmatpush.msra.mxu0 %v377
  %408 = vmatmul.f32.gmra.mxu0 %v390
  %v409 = vpop.f32.mrf.mxu0
  %v410 = vadd.f32 0.0, %v409
  %411 = vdwg.mxu0
  %412 = vmatpush.msra.mxu0 0.0
  %413 = vmatpush.msra.mxu0 0.0
  %414 = vmatpush.msra.mxu0 0.0
  %415 = vmatpush.msra.mxu0 0.0
  %416 = vmatpush.msra.mxu0 0.0
  %417 = vmatpush.msra.mxu0 0.0
  %418 = vmatpush.msra.mxu0 0.0
  %419 = vmatpush.msra.mxu0 0.0
  %420 = vmatpush.msra.mxu0 0.0
  %421 = vmatpush.msra.mxu0 0.0
  %422 = vmatpush.msra.mxu0 0.0
  %423 = vmatpush.msra.mxu0 0.0
  %424 = vmatpush.msra.mxu0 0.0
  %425 = vmatpush.msra.mxu0 0.0
  %426 = vmatpush.msra.mxu0 0.0
  %427 = vmatpush.msra.mxu0 %v378
  %428 = vmatmul.f32.gmra.mxu0 %v390
  %v429 = vpop.f32.mrf.mxu0
  %v430 = vadd.f32 0.0, %v429
  %431 = vdwg.mxu0
  %432 = vmatpush.msra.mxu0 0.0
  %433 = vmatpush.msra.mxu0 0.0
  %434 = vmatpush.msra.mxu0 0.0
  %435 = vmatpush.msra.mxu0 0.0
  %436 = vmatpush.msra.mxu0 0.0
  %437 = vmatpush.msra.mxu0 0.0
  %438 = vmatpush.msra.mxu0 0.0
  %439 = vmatpush.msra.mxu0 0.0
  %440 = vmatpush.msra.mxu0 0.0
  %441 = vmatpush.msra.mxu0 0.0
  %442 = vmatpush.msra.mxu0 0.0
  %443 = vmatpush.msra.mxu0 0.0
  %444 = vmatpush.msra.mxu0 0.0
  %445 = vmatpush.msra.mxu0 0.0
  %446 = vmatpush.msra.mxu0 0.0
  %447 = vmatpush.msra.mxu0 %v379
  %448 = vmatmul.f32.gmra.mxu0 %v390
  %v449 = vpop.f32.mrf.mxu0
  %v450 = vadd.f32 0.0, %v449
  %451 = vdwg.mxu0
  %452 = vmatpush.msra.mxu0 0.0
  %453 = vmatpush.msra.mxu0 0.0
  %454 = vmatpush.msra.mxu0 0.0
  %455 = vmatpush.msra.mxu0 0.0
  %456 = vmatpush.msra.mxu0 0.0
  %457 = vmatpush.msra.mxu0 0.0
  %458 = vmatpush.msra.mxu0 0.0
  %459 = vmatpush.msra.mxu0 0.0
  %460 = vmatpush.msra.mxu0 0.0
  %461 = vmatpush.msra.mxu0 0.0
  %462 = vmatpush.msra.mxu0 0.0
  %463 = vmatpush.msra.mxu0 0.0
  %464 = vmatpush.msra.mxu0 0.0
  %465 = vmatpush.msra.mxu0 0.0
  %466 = vmatpush.msra.mxu0 0.0
  %467 = vmatpush.msra.mxu0 %v380
  %468 = vmatmul.f32.gmra.mxu0 %v390
  %v469 = vpop.f32.mrf.mxu0
  %v470 = vadd.f32 0.0, %v469
  %471 = vdwg.mxu0
  %472 = vmatpush.msra.mxu0 0.0
  %473 = vmatpush.msra.mxu0 0.0
  %474 = vmatpush.msra.mxu0 0.0
  %475 = vmatpush.msra.mxu0 0.0
  %476 = vmatpush.msra.mxu0 0.0
  %477 = vmatpush.msra.mxu0 0.0
  %478 = vmatpush.msra.mxu0 0.0
  %479 = vmatpush.msra.mxu0 0.0
  %480 = vmatpush.msra.mxu0 0.0
  %481 = vmatpush.msra.mxu0 0.0
  %482 = vmatpush.msra.mxu0 0.0
  %483 = vmatpush.msra.mxu0 0.0
  %484 = vmatpush.msra.mxu0 0.0
  %485 = vmatpush.msra.mxu0 0.0
  %486 = vmatpush.msra.mxu0 0.0
  %487 = vmatpush.msra.mxu0 %v381
  %488 = vmatmul.f32.gmra.mxu0 %v390
  %v489 = vpop.f32.mrf.mxu0
  %v490 = vadd.f32 0.0, %v489
  %491 = vdwg.mxu0
  %492 = vmatpush.msra.mxu0 0.0
  %493 = vmatpush.msra.mxu0 0.0
  %494 = vmatpush.msra.mxu0 0.0
  %495 = vmatpush.msra.mxu0 0.0
  %496 = vmatpush.msra.mxu0 0.0
  %497 = vmatpush.msra.mxu0 0.0
  %498 = vmatpush.msra.mxu0 0.0
  %499 = vmatpush.msra.mxu0 0.0
  %500 = vmatpush.msra.mxu0 0.0
  %501 = vmatpush.msra.mxu0 0.0
  %502 = vmatpush.msra.mxu0 0.0
  %503 = vmatpush.msra.mxu0 0.0
  %504 = vmatpush.msra.mxu0 0.0
  %505 = vmatpush.msra.mxu0 0.0
  %506 = vmatpush.msra.mxu0 0.0
  %507 = vmatpush.msra.mxu0 %v382
  %508 = vmatmul.f32.gmra.mxu0 %v390
  %v509 = vpop.f32.mrf.mxu0
  %v510 = vadd.f32 0.0, %v509
  %511 = vdwg.mxu0
  %v512 = vadd.f32 %v258, %v410
  %v513 = vadd.f32 %v278, %v430
  %v514 = vadd.f32 %v298, %v450
  %v515 = vadd.f32 %v318, %v470
  %v516 = vadd.f32 %v338, %v490
  %v517 = vadd.f32 %v358, %v510
  %s518 = scalar_lea.vmem %s3, 24
  %v519 = vld [vmem:[%s518] sm:$0xff]
  %520 = vrot.lane.b32.xlu0 %v42, 1
  %v521 = vpop.permute.xlu0 %520
  %522 = vrot.lane.b32.xlu0 %v43, 1
  %v523 = vpop.permute.xlu0 %522
  %524 = vrot.lane.b32.xlu0 %v44, 1
  %v525 = vpop.permute.xlu0 %524
  %526 = vrot.lane.b32.xlu0 %v45, 1
  %v527 = vpop.permute.xlu0 %526
  %528 = vrot.lane.b32.xlu0 %v46, 1
  %v529 = vpop.permute.xlu0 %528
  %530 = vrot.lane.b32.xlu0 %v47, 1
  %v531 = vpop.permute.xlu0 %530
  %532 = vrot.lane.b32.xlu0 %v48, 1
  %v533 = vpop.permute.xlu0 %532
  %vm534 = vcmask 7168
  %v535 = vsel %vm534, %v521, %v523
  %v536 = vsel %vm534, %v523, %v525
  %v537 = vsel %vm534, %v525, %v527
  %v538 = vsel %vm534, %v527, %v529
  %v539 = vsel %vm534, %v529, %v531
  %v540 = vsel %vm534, %v531, %v533
  %v548 = vsel %vm86, %v519, 0
  %550 = vmatpush.msra.mxu0 0.0
  %551 = vmatpush.msra.mxu0 0.0
  %552 = vmatpush.msra.mxu0 0.0
  %553 = vmatpush.msra.mxu0 0.0
  %554 = vmatpush.msra.mxu0 0.0
  %555 = vmatpush.msra.mxu0 0.0
  %556 = vmatpush.msra.mxu0 0.0
  %557 = vmatpush.msra.mxu0 0.0
  %558 = vmatpush.msra.mxu0 0.0
  %559 = vmatpush.msra.mxu0 0.0
  %560 = vmatpush.msra.mxu0 0.0
  %561 = vmatpush.msra.mxu0 0.0
  %562 = vmatpush.msra.mxu0 0.0
  %563 = vmatpush.msra.mxu0 0.0
  %564 = vmatpush.msra.mxu0 0.0
  %565 = vmatpush.msra.mxu0 %v535
  %566 = vmatmul.f32.gmra.mxu0 %v548
  %v567 = vpop.f32.mrf.mxu0
  %v568 = vadd.f32 0.0, %v567
  %569 = vdwg.mxu0
  %570 = vmatpush.msra.mxu0 0.0
  %571 = vmatpush.msra.mxu0 0.0
  %572 = vmatpush.msra.mxu0 0.0
  %573 = vmatpush.msra.mxu0 0.0
  %574 = vmatpush.msra.mxu0 0.0
  %575 = vmatpush.msra.mxu0 0.0
  %576 = vmatpush.msra.mxu0 0.0
  %577 = vmatpush.msra.mxu0 0.0
  %578 = vmatpush.msra.mxu0 0.0
  %579 = vmatpush.msra.mxu0 0.0
  %580 = vmatpush.msra.mxu0 0.0
  %581 = vmatpush.msra.mxu0 0.0
  %582 = vmatpush.msra.mxu0 0.0
  %583 = vmatpush.msra.mxu0 0.0
  %584 = vmatpush.msra.mxu0 0.0
  %585 = vmatpush.msra.mxu0 %v536
  %586 = vmatmul.f32.gmra.mxu0 %v548
  %v587 = vpop.f32.mrf.mxu0
  %v588 = vadd.f32 0.0, %v587
  %589 = vdwg.mxu0
  %590 = vmatpush.msra.mxu0 0.0
  %591 = vmatpush.msra.mxu0 0.0
  %592 = vmatpush.msra.mxu0 0.0
  %593 = vmatpush.msra.mxu0 0.0
  %594 = vmatpush.msra.mxu0 0.0
  %595 = vmatpush.msra.mxu0 0.0
  %596 = vmatpush.msra.mxu0 0.0
  %597 = vmatpush.msra.mxu0 0.0
  %598 = vmatpush.msra.mxu0 0.0
  %599 = vmatpush.msra.mxu0 0.0
  %600 = vmatpush.msra.mxu0 0.0
  %601 = vmatpush.msra.mxu0 0.0
  %602 = vmatpush.msra.mxu0 0.0
  %603 = vmatpush.msra.mxu0 0.0
  %604 = vmatpush.msra.mxu0 0.0
  %605 = vmatpush.msra.mxu0 %v537
  %606 = vmatmul.f32.gmra.mxu0 %v548
  %v607 = vpop.f32.mrf.mxu0
  %v608 = vadd.f32 0.0, %v607
  %609 = vdwg.mxu0
  %610 = vmatpush.msra.mxu0 0.0
  %611 = vmatpush.msra.mxu0 0.0
  %612 = vmatpush.msra.mxu0 0.0
  %613 = vmatpush.msra.mxu0 0.0
  %614 = vmatpush.msra.mxu0 0.0
  %615 = vmatpush.msra.mxu0 0.0
  %616 = vmatpush.msra.mxu0 0.0
  %617 = vmatpush.msra.mxu0 0.0
  %618 = vmatpush.msra.mxu0 0.0
  %619 = vmatpush.msra.mxu0 0.0
  %620 = vmatpush.msra.mxu0 0.0
  %621 = vmatpush.msra.mxu0 0.0
  %622 = vmatpush.msra.mxu0 0.0
  %623 = vmatpush.msra.mxu0 0.0
  %624 = vmatpush.msra.mxu0 0.0
  %625 = vmatpush.msra.mxu0 %v538
  %626 = vmatmul.f32.gmra.mxu0 %v548
  %v627 = vpop.f32.mrf.mxu0
  %v628 = vadd.f32 0.0, %v627
  %629 = vdwg.mxu0
  %630 = vmatpush.msra.mxu0 0.0
  %631 = vmatpush.msra.mxu0 0.0
  %632 = vmatpush.msra.mxu0 0.0
  %633 = vmatpush.msra.mxu0 0.0
  %634 = vmatpush.msra.mxu0 0.0
  %635 = vmatpush.msra.mxu0 0.0
  %636 = vmatpush.msra.mxu0 0.0
  %637 = vmatpush.msra.mxu0 0.0
  %638 = vmatpush.msra.mxu0 0.0
  %639 = vmatpush.msra.mxu0 0.0
  %640 = vmatpush.msra.mxu0 0.0
  %641 = vmatpush.msra.mxu0 0.0
  %642 = vmatpush.msra.mxu0 0.0
  %643 = vmatpush.msra.mxu0 0.0
  %644 = vmatpush.msra.mxu0 0.0
  %645 = vmatpush.msra.mxu0 %v539
  %646 = vmatmul.f32.gmra.mxu0 %v548
  %v647 = vpop.f32.mrf.mxu0
  %v648 = vadd.f32 0.0, %v647
  %649 = vdwg.mxu0
  %650 = vmatpush.msra.mxu0 0.0
  %651 = vmatpush.msra.mxu0 0.0
  %652 = vmatpush.msra.mxu0 0.0
  %653 = vmatpush.msra.mxu0 0.0
  %654 = vmatpush.msra.mxu0 0.0
  %655 = vmatpush.msra.mxu0 0.0
  %656 = vmatpush.msra.mxu0 0.0
  %657 = vmatpush.msra.mxu0 0.0
  %658 = vmatpush.msra.mxu0 0.0
  %659 = vmatpush.msra.mxu0 0.0
  %660 = vmatpush.msra.mxu0 0.0
  %661 = vmatpush.msra.mxu0 0.0
  %662 = vmatpush.msra.mxu0 0.0
  %663 = vmatpush.msra.mxu0 0.0
  %664 = vmatpush.msra.mxu0 0.0
  %665 = vmatpush.msra.mxu0 %v540
  %666 = vmatmul.f32.gmra.mxu0 %v548
  %v667 = vpop.f32.mrf.mxu0
  %v668 = vadd.f32 0.0, %v667
  %669 = vdwg.mxu0
  %v670 = vadd.f32 %v512, %v568
  %v671 = vadd.f32 %v513, %v588
  %v672 = vadd.f32 %v514, %v608
  %v673 = vadd.f32 %v515, %v628
  %v674 = vadd.f32 %v516, %v648
  %v675 = vadd.f32 %v517, %v668
  %s676 = scalar_lea.vmem %s3, 32
  %v677 = vld [vmem:[%s676] sm:$0xff]
  %v679 = vsel %vm86, %v677, 0
  %681 = vmatpush.msra.mxu0 0.0
  %682 = vmatpush.msra.mxu0 0.0
  %683 = vmatpush.msra.mxu0 0.0
  %684 = vmatpush.msra.mxu0 0.0
  %685 = vmatpush.msra.mxu0 0.0
  %686 = vmatpush.msra.mxu0 0.0
  %687 = vmatpush.msra.mxu0 0.0
  %688 = vmatpush.msra.mxu0 0.0
  %689 = vmatpush.msra.mxu0 0.0
  %690 = vmatpush.msra.mxu0 0.0
  %691 = vmatpush.msra.mxu0 0.0
  %692 = vmatpush.msra.mxu0 0.0
  %693 = vmatpush.msra.mxu0 0.0
  %694 = vmatpush.msra.mxu0 0.0
  %695 = vmatpush.msra.mxu0 0.0
  %696 = vmatpush.msra.mxu0 %v43
  %697 = vmatmul.f32.gmra.mxu0 %v679
  %v698 = vpop.f32.mrf.mxu0
  %v699 = vadd.f32 0.0, %v698
  %700 = vdwg.mxu0
  %701 = vmatpush.msra.mxu0 0.0
  %702 = vmatpush.msra.mxu0 0.0
  %703 = vmatpush.msra.mxu0 0.0
  %704 = vmatpush.msra.mxu0 0.0
  %705 = vmatpush.msra.mxu0 0.0
  %706 = vmatpush.msra.mxu0 0.0
  %707 = vmatpush.msra.mxu0 0.0
  %708 = vmatpush.msra.mxu0 0.0
  %709 = vmatpush.msra.mxu0 0.0
  %710 = vmatpush.msra.mxu0 0.0
  %711 = vmatpush.msra.mxu0 0.0
  %712 = vmatpush.msra.mxu0 0.0
  %713 = vmatpush.msra.mxu0 0.0
  %714 = vmatpush.msra.mxu0 0.0
  %715 = vmatpush.msra.mxu0 0.0
  %716 = vmatpush.msra.mxu0 %v44
  %717 = vmatmul.f32.gmra.mxu0 %v679
  %v718 = vpop.f32.mrf.mxu0
  %v719 = vadd.f32 0.0, %v718
  %720 = vdwg.mxu0
  %721 = vmatpush.msra.mxu0 0.0
  %722 = vmatpush.msra.mxu0 0.0
  %723 = vmatpush.msra.mxu0 0.0
  %724 = vmatpush.msra.mxu0 0.0
  %725 = vmatpush.msra.mxu0 0.0
  %726 = vmatpush.msra.mxu0 0.0
  %727 = vmatpush.msra.mxu0 0.0
  %728 = vmatpush.msra.mxu0 0.0
  %729 = vmatpush.msra.mxu0 0.0
  %730 = vmatpush.msra.mxu0 0.0
  %731 = vmatpush.msra.mxu0 0.0
  %732 = vmatpush.msra.mxu0 0.0
  %733 = vmatpush.msra.mxu0 0.0
  %734 = vmatpush.msra.mxu0 0.0
  %735 = vmatpush.msra.mxu0 0.0
  %736 = vmatpush.msra.mxu0 %v45
  %737 = vmatmul.f32.gmra.mxu0 %v679
  %v738 = vpop.f32.mrf.mxu0
  %v739 = vadd.f32 0.0, %v738
  %740 = vdwg.mxu0
  %741 = vmatpush.msra.mxu0 0.0
  %742 = vmatpush.msra.mxu0 0.0
  %743 = vmatpush.msra.mxu0 0.0
  %744 = vmatpush.msra.mxu0 0.0
  %745 = vmatpush.msra.mxu0 0.0
  %746 = vmatpush.msra.mxu0 0.0
  %747 = vmatpush.msra.mxu0 0.0
  %748 = vmatpush.msra.mxu0 0.0
  %749 = vmatpush.msra.mxu0 0.0
  %750 = vmatpush.msra.mxu0 0.0
  %751 = vmatpush.msra.mxu0 0.0
  %752 = vmatpush.msra.mxu0 0.0
  %753 = vmatpush.msra.mxu0 0.0
  %754 = vmatpush.msra.mxu0 0.0
  %755 = vmatpush.msra.mxu0 0.0
  %756 = vmatpush.msra.mxu0 %v46
  %757 = vmatmul.f32.gmra.mxu0 %v679
  %v758 = vpop.f32.mrf.mxu0
  %v759 = vadd.f32 0.0, %v758
  %760 = vdwg.mxu0
  %761 = vmatpush.msra.mxu0 0.0
  %762 = vmatpush.msra.mxu0 0.0
  %763 = vmatpush.msra.mxu0 0.0
  %764 = vmatpush.msra.mxu0 0.0
  %765 = vmatpush.msra.mxu0 0.0
  %766 = vmatpush.msra.mxu0 0.0
  %767 = vmatpush.msra.mxu0 0.0
  %768 = vmatpush.msra.mxu0 0.0
  %769 = vmatpush.msra.mxu0 0.0
  %770 = vmatpush.msra.mxu0 0.0
  %771 = vmatpush.msra.mxu0 0.0
  %772 = vmatpush.msra.mxu0 0.0
  %773 = vmatpush.msra.mxu0 0.0
  %774 = vmatpush.msra.mxu0 0.0
  %775 = vmatpush.msra.mxu0 0.0
  %776 = vmatpush.msra.mxu0 %v47
  %777 = vmatmul.f32.gmra.mxu0 %v679
  %v778 = vpop.f32.mrf.mxu0
  %v779 = vadd.f32 0.0, %v778
  %780 = vdwg.mxu0
  %781 = vmatpush.msra.mxu0 0.0
  %782 = vmatpush.msra.mxu0 0.0
  %783 = vmatpush.msra.mxu0 0.0
  %784 = vmatpush.msra.mxu0 0.0
  %785 = vmatpush.msra.mxu0 0.0
  %786 = vmatpush.msra.mxu0 0.0
  %787 = vmatpush.msra.mxu0 0.0
  %788 = vmatpush.msra.mxu0 0.0
  %789 = vmatpush.msra.mxu0 0.0
  %790 = vmatpush.msra.mxu0 0.0
  %791 = vmatpush.msra.mxu0 0.0
  %792 = vmatpush.msra.mxu0 0.0
  %793 = vmatpush.msra.mxu0 0.0
  %794 = vmatpush.msra.mxu0 0.0
  %795 = vmatpush.msra.mxu0 0.0
  %796 = vmatpush.msra.mxu0 %v48
  %797 = vmatmul.f32.gmra.mxu0 %v679
  %v798 = vpop.f32.mrf.mxu0
  %v799 = vadd.f32 0.0, %v798
  %800 = vdwg.mxu0
  %v801 = vadd.f32 %v670, %v699
  %v802 = vadd.f32 %v671, %v719
  %v803 = vadd.f32 %v672, %v739
  %v804 = vadd.f32 %v673, %v759
  %v805 = vadd.f32 %v674, %v779
  %v806 = vadd.f32 %v675, %v799
  %v807 = vld [vmem:[%s0 + $0x8] sm:$0xff]
  %v808 = vld [vmem:[%s0 + $0x10] sm:$0xff]
  %v809 = vld [vmem:[%s0 + $0x18] sm:$0xff]
  %v810 = vld [vmem:[%s0 + $0x20] sm:$0xff]
  %v811 = vld [vmem:[%s0 + $0x28] sm:$0xff]
  %v812 = vld [vmem:[%s0 + $0x30] sm:$0xff]
  %v813 = vld [vmem:[%s0 + $0x38] sm:$0xff]
  %s814 = scalar_lea.vmem %s3, 40
  %v815 = vld [vmem:[%s814] sm:$0xff]
  %823 = vrot.lane.b32.xlu0 %v807, 127
  %v824 = vpop.permute.xlu0 %823
  %825 = vrot.lane.b32.xlu0 %v808, 127
  %v826 = vpop.permute.xlu0 %825
  %827 = vrot.lane.b32.xlu0 %v809, 127
  %v828 = vpop.permute.xlu0 %827
  %829 = vrot.lane.b32.xlu0 %v810, 127
  %v830 = vpop.permute.xlu0 %829
  %831 = vrot.lane.b32.xlu0 %v811, 127
  %v832 = vpop.permute.xlu0 %831
  %833 = vrot.lane.b32.xlu0 %v812, 127
  %v834 = vpop.permute.xlu0 %833
  %835 = vrot.lane.b32.xlu0 %v813, 127
  %v836 = vpop.permute.xlu0 %835
  %vm837 = vcmask 1039360
  %v838 = vsel %vm837, %v824, %v826
  %v839 = vsel %vm837, %v826, %v828
  %v840 = vsel %vm837, %v828, %v830
  %v841 = vsel %vm837, %v830, %v832
  %v842 = vsel %vm837, %v832, %v834
  %v843 = vsel %vm837, %v834, %v836
  %v851 = vsel %vm86, %v815, 0
  %853 = vmatpush.msra.mxu0 0.0
  %854 = vmatpush.msra.mxu0 0.0
  %855 = vmatpush.msra.mxu0 0.0
  %856 = vmatpush.msra.mxu0 0.0
  %857 = vmatpush.msra.mxu0 0.0
  %858 = vmatpush.msra.mxu0 0.0
  %859 = vmatpush.msra.mxu0 0.0
  %860 = vmatpush.msra.mxu0 0.0
  %861 = vmatpush.msra.mxu0 0.0
  %862 = vmatpush.msra.mxu0 0.0
  %863 = vmatpush.msra.mxu0 0.0
  %864 = vmatpush.msra.mxu0 0.0
  %865 = vmatpush.msra.mxu0 0.0
  %866 = vmatpush.msra.mxu0 0.0
  %867 = vmatpush.msra.mxu0 0.0
  %868 = vmatpush.msra.mxu0 %v838
  %869 = vmatmul.f32.gmra.mxu0 %v851
  %v870 = vpop.f32.mrf.mxu0
  %v871 = vadd.f32 0.0, %v870
  %872 = vdwg.mxu0
  %873 = vmatpush.msra.mxu0 0.0
  %874 = vmatpush.msra.mxu0 0.0
  %875 = vmatpush.msra.mxu0 0.0
  %876 = vmatpush.msra.mxu0 0.0
  %877 = vmatpush.msra.mxu0 0.0
  %878 = vmatpush.msra.mxu0 0.0
  %879 = vmatpush.msra.mxu0 0.0
  %880 = vmatpush.msra.mxu0 0.0
  %881 = vmatpush.msra.mxu0 0.0
  %882 = vmatpush.msra.mxu0 0.0
  %883 = vmatpush.msra.mxu0 0.0
  %884 = vmatpush.msra.mxu0 0.0
  %885 = vmatpush.msra.mxu0 0.0
  %886 = vmatpush.msra.mxu0 0.0
  %887 = vmatpush.msra.mxu0 0.0
  %888 = vmatpush.msra.mxu0 %v839
  %889 = vmatmul.f32.gmra.mxu0 %v851
  %v890 = vpop.f32.mrf.mxu0
  %v891 = vadd.f32 0.0, %v890
  %892 = vdwg.mxu0
  %893 = vmatpush.msra.mxu0 0.0
  %894 = vmatpush.msra.mxu0 0.0
  %895 = vmatpush.msra.mxu0 0.0
  %896 = vmatpush.msra.mxu0 0.0
  %897 = vmatpush.msra.mxu0 0.0
  %898 = vmatpush.msra.mxu0 0.0
  %899 = vmatpush.msra.mxu0 0.0
  %900 = vmatpush.msra.mxu0 0.0
  %901 = vmatpush.msra.mxu0 0.0
  %902 = vmatpush.msra.mxu0 0.0
  %903 = vmatpush.msra.mxu0 0.0
  %904 = vmatpush.msra.mxu0 0.0
  %905 = vmatpush.msra.mxu0 0.0
  %906 = vmatpush.msra.mxu0 0.0
  %907 = vmatpush.msra.mxu0 0.0
  %908 = vmatpush.msra.mxu0 %v840
  %909 = vmatmul.f32.gmra.mxu0 %v851
  %v910 = vpop.f32.mrf.mxu0
  %v911 = vadd.f32 0.0, %v910
  %912 = vdwg.mxu0
  %913 = vmatpush.msra.mxu0 0.0
  %914 = vmatpush.msra.mxu0 0.0
  %915 = vmatpush.msra.mxu0 0.0
  %916 = vmatpush.msra.mxu0 0.0
  %917 = vmatpush.msra.mxu0 0.0
  %918 = vmatpush.msra.mxu0 0.0
  %919 = vmatpush.msra.mxu0 0.0
  %920 = vmatpush.msra.mxu0 0.0
  %921 = vmatpush.msra.mxu0 0.0
  %922 = vmatpush.msra.mxu0 0.0
  %923 = vmatpush.msra.mxu0 0.0
  %924 = vmatpush.msra.mxu0 0.0
  %925 = vmatpush.msra.mxu0 0.0
  %926 = vmatpush.msra.mxu0 0.0
  %927 = vmatpush.msra.mxu0 0.0
  %928 = vmatpush.msra.mxu0 %v841
  %929 = vmatmul.f32.gmra.mxu0 %v851
  %v930 = vpop.f32.mrf.mxu0
  %v931 = vadd.f32 0.0, %v930
  %932 = vdwg.mxu0
  %933 = vmatpush.msra.mxu0 0.0
  %934 = vmatpush.msra.mxu0 0.0
  %935 = vmatpush.msra.mxu0 0.0
  %936 = vmatpush.msra.mxu0 0.0
  %937 = vmatpush.msra.mxu0 0.0
  %938 = vmatpush.msra.mxu0 0.0
  %939 = vmatpush.msra.mxu0 0.0
  %940 = vmatpush.msra.mxu0 0.0
  %941 = vmatpush.msra.mxu0 0.0
  %942 = vmatpush.msra.mxu0 0.0
  %943 = vmatpush.msra.mxu0 0.0
  %944 = vmatpush.msra.mxu0 0.0
  %945 = vmatpush.msra.mxu0 0.0
  %946 = vmatpush.msra.mxu0 0.0
  %947 = vmatpush.msra.mxu0 0.0
  %948 = vmatpush.msra.mxu0 %v842
  %949 = vmatmul.f32.gmra.mxu0 %v851
  %v950 = vpop.f32.mrf.mxu0
  %v951 = vadd.f32 0.0, %v950
  %952 = vdwg.mxu0
  %953 = vmatpush.msra.mxu0 0.0
  %954 = vmatpush.msra.mxu0 0.0
  %955 = vmatpush.msra.mxu0 0.0
  %956 = vmatpush.msra.mxu0 0.0
  %957 = vmatpush.msra.mxu0 0.0
  %958 = vmatpush.msra.mxu0 0.0
  %959 = vmatpush.msra.mxu0 0.0
  %960 = vmatpush.msra.mxu0 0.0
  %961 = vmatpush.msra.mxu0 0.0
  %962 = vmatpush.msra.mxu0 0.0
  %963 = vmatpush.msra.mxu0 0.0
  %964 = vmatpush.msra.mxu0 0.0
  %965 = vmatpush.msra.mxu0 0.0
  %966 = vmatpush.msra.mxu0 0.0
  %967 = vmatpush.msra.mxu0 0.0
  %968 = vmatpush.msra.mxu0 %v843
  %969 = vmatmul.f32.gmra.mxu0 %v851
  %v970 = vpop.f32.mrf.mxu0
  %v971 = vadd.f32 0.0, %v970
  %972 = vdwg.mxu0
  %v973 = vadd.f32 %v801, %v871
  %v974 = vadd.f32 %v802, %v891
  %v975 = vadd.f32 %v803, %v911
  %v976 = vadd.f32 %v804, %v931
  %v977 = vadd.f32 %v805, %v951
  %v978 = vadd.f32 %v806, %v971
  %s979 = scalar_lea.vmem %s3, 48
  %v980 = vld [vmem:[%s979] sm:$0xff]
  %981 = vrot.lane.b32.xlu0 %v807, 111
  %v982 = vpop.permute.xlu0 %981
  %983 = vrot.lane.b32.xlu0 %v808, 111
  %v984 = vpop.permute.xlu0 %983
  %985 = vrot.lane.b32.xlu0 %v809, 111
  %v986 = vpop.permute.xlu0 %985
  %987 = vrot.lane.b32.xlu0 %v810, 111
  %v988 = vpop.permute.xlu0 %987
  %989 = vrot.lane.b32.xlu0 %v811, 111
  %v990 = vpop.permute.xlu0 %989
  %991 = vrot.lane.b32.xlu0 %v812, 111
  %v992 = vpop.permute.xlu0 %991
  %993 = vrot.lane.b32.xlu0 %v813, 111
  %v994 = vpop.permute.xlu0 %993
  %vm995 = vcmask 908288
  %v996 = vsel %vm995, %v982, %v984
  %v997 = vsel %vm995, %v984, %v986
  %v998 = vsel %vm995, %v986, %v988
  %v999 = vsel %vm995, %v988, %v990
  %v1000 = vsel %vm995, %v990, %v992
  %v1001 = vsel %vm995, %v992, %v994
  %v1009 = vsel %vm86, %v980, 0
  %1011 = vmatpush.msra.mxu0 0.0
  %1012 = vmatpush.msra.mxu0 0.0
  %1013 = vmatpush.msra.mxu0 0.0
  %1014 = vmatpush.msra.mxu0 0.0
  %1015 = vmatpush.msra.mxu0 0.0
  %1016 = vmatpush.msra.mxu0 0.0
  %1017 = vmatpush.msra.mxu0 0.0
  %1018 = vmatpush.msra.mxu0 0.0
  %1019 = vmatpush.msra.mxu0 0.0
  %1020 = vmatpush.msra.mxu0 0.0
  %1021 = vmatpush.msra.mxu0 0.0
  %1022 = vmatpush.msra.mxu0 0.0
  %1023 = vmatpush.msra.mxu0 0.0
  %1024 = vmatpush.msra.mxu0 0.0
  %1025 = vmatpush.msra.mxu0 0.0
  %1026 = vmatpush.msra.mxu0 %v996
  %1027 = vmatmul.f32.gmra.mxu0 %v1009
  %v1028 = vpop.f32.mrf.mxu0
  %v1029 = vadd.f32 0.0, %v1028
  %1030 = vdwg.mxu0
  %1031 = vmatpush.msra.mxu0 0.0
  %1032 = vmatpush.msra.mxu0 0.0
  %1033 = vmatpush.msra.mxu0 0.0
  %1034 = vmatpush.msra.mxu0 0.0
  %1035 = vmatpush.msra.mxu0 0.0
  %1036 = vmatpush.msra.mxu0 0.0
  %1037 = vmatpush.msra.mxu0 0.0
  %1038 = vmatpush.msra.mxu0 0.0
  %1039 = vmatpush.msra.mxu0 0.0
  %1040 = vmatpush.msra.mxu0 0.0
  %1041 = vmatpush.msra.mxu0 0.0
  %1042 = vmatpush.msra.mxu0 0.0
  %1043 = vmatpush.msra.mxu0 0.0
  %1044 = vmatpush.msra.mxu0 0.0
  %1045 = vmatpush.msra.mxu0 0.0
  %1046 = vmatpush.msra.mxu0 %v997
  %1047 = vmatmul.f32.gmra.mxu0 %v1009
  %v1048 = vpop.f32.mrf.mxu0
  %v1049 = vadd.f32 0.0, %v1048
  %1050 = vdwg.mxu0
  %1051 = vmatpush.msra.mxu0 0.0
  %1052 = vmatpush.msra.mxu0 0.0
  %1053 = vmatpush.msra.mxu0 0.0
  %1054 = vmatpush.msra.mxu0 0.0
  %1055 = vmatpush.msra.mxu0 0.0
  %1056 = vmatpush.msra.mxu0 0.0
  %1057 = vmatpush.msra.mxu0 0.0
  %1058 = vmatpush.msra.mxu0 0.0
  %1059 = vmatpush.msra.mxu0 0.0
  %1060 = vmatpush.msra.mxu0 0.0
  %1061 = vmatpush.msra.mxu0 0.0
  %1062 = vmatpush.msra.mxu0 0.0
  %1063 = vmatpush.msra.mxu0 0.0
  %1064 = vmatpush.msra.mxu0 0.0
  %1065 = vmatpush.msra.mxu0 0.0
  %1066 = vmatpush.msra.mxu0 %v998
  %1067 = vmatmul.f32.gmra.mxu0 %v1009
  %v1068 = vpop.f32.mrf.mxu0
  %v1069 = vadd.f32 0.0, %v1068
  %1070 = vdwg.mxu0
  %1071 = vmatpush.msra.mxu0 0.0
  %1072 = vmatpush.msra.mxu0 0.0
  %1073 = vmatpush.msra.mxu0 0.0
  %1074 = vmatpush.msra.mxu0 0.0
  %1075 = vmatpush.msra.mxu0 0.0
  %1076 = vmatpush.msra.mxu0 0.0
  %1077 = vmatpush.msra.mxu0 0.0
  %1078 = vmatpush.msra.mxu0 0.0
  %1079 = vmatpush.msra.mxu0 0.0
  %1080 = vmatpush.msra.mxu0 0.0
  %1081 = vmatpush.msra.mxu0 0.0
  %1082 = vmatpush.msra.mxu0 0.0
  %1083 = vmatpush.msra.mxu0 0.0
  %1084 = vmatpush.msra.mxu0 0.0
  %1085 = vmatpush.msra.mxu0 0.0
  %1086 = vmatpush.msra.mxu0 %v999
  %1087 = vmatmul.f32.gmra.mxu0 %v1009
  %v1088 = vpop.f32.mrf.mxu0
  %v1089 = vadd.f32 0.0, %v1088
  %1090 = vdwg.mxu0
  %1091 = vmatpush.msra.mxu0 0.0
  %1092 = vmatpush.msra.mxu0 0.0
  %1093 = vmatpush.msra.mxu0 0.0
  %1094 = vmatpush.msra.mxu0 0.0
  %1095 = vmatpush.msra.mxu0 0.0
  %1096 = vmatpush.msra.mxu0 0.0
  %1097 = vmatpush.msra.mxu0 0.0
  %1098 = vmatpush.msra.mxu0 0.0
  %1099 = vmatpush.msra.mxu0 0.0
  %1100 = vmatpush.msra.mxu0 0.0
  %1101 = vmatpush.msra.mxu0 0.0
  %1102 = vmatpush.msra.mxu0 0.0
  %1103 = vmatpush.msra.mxu0 0.0
  %1104 = vmatpush.msra.mxu0 0.0
  %1105 = vmatpush.msra.mxu0 0.0
  %1106 = vmatpush.msra.mxu0 %v1000
  %1107 = vmatmul.f32.gmra.mxu0 %v1009
  %v1108 = vpop.f32.mrf.mxu0
  %v1109 = vadd.f32 0.0, %v1108
  %1110 = vdwg.mxu0
  %1111 = vmatpush.msra.mxu0 0.0
  %1112 = vmatpush.msra.mxu0 0.0
  %1113 = vmatpush.msra.mxu0 0.0
  %1114 = vmatpush.msra.mxu0 0.0
  %1115 = vmatpush.msra.mxu0 0.0
  %1116 = vmatpush.msra.mxu0 0.0
  %1117 = vmatpush.msra.mxu0 0.0
  %1118 = vmatpush.msra.mxu0 0.0
  %1119 = vmatpush.msra.mxu0 0.0
  %1120 = vmatpush.msra.mxu0 0.0
  %1121 = vmatpush.msra.mxu0 0.0
  %1122 = vmatpush.msra.mxu0 0.0
  %1123 = vmatpush.msra.mxu0 0.0
  %1124 = vmatpush.msra.mxu0 0.0
  %1125 = vmatpush.msra.mxu0 0.0
  %1126 = vmatpush.msra.mxu0 %v1001
  %1127 = vmatmul.f32.gmra.mxu0 %v1009
  %v1128 = vpop.f32.mrf.mxu0
  %v1129 = vadd.f32 0.0, %v1128
  %1130 = vdwg.mxu0
  %v1131 = vadd.f32 %v973, %v1029
  %v1132 = vadd.f32 %v974, %v1049
  %v1133 = vadd.f32 %v975, %v1069
  %v1134 = vadd.f32 %v976, %v1089
  %v1135 = vadd.f32 %v977, %v1109
  %v1136 = vadd.f32 %v978, %v1129
  %s1137 = scalar_lea.vmem %s3, 56
  %v1138 = vld [vmem:[%s1137] sm:$0xff]
  %1139 = vrot.lane.b32.xlu0 %v807, 110
  %v1140 = vpop.permute.xlu0 %1139
  %1141 = vrot.lane.b32.xlu0 %v808, 110
  %v1142 = vpop.permute.xlu0 %1141
  %1143 = vrot.lane.b32.xlu0 %v809, 110
  %v1144 = vpop.permute.xlu0 %1143
  %1145 = vrot.lane.b32.xlu0 %v810, 110
  %v1146 = vpop.permute.xlu0 %1145
  %1147 = vrot.lane.b32.xlu0 %v811, 110
  %v1148 = vpop.permute.xlu0 %1147
  %1149 = vrot.lane.b32.xlu0 %v812, 110
  %v1150 = vpop.permute.xlu0 %1149
  %1151 = vrot.lane.b32.xlu0 %v813, 110
  %v1152 = vpop.permute.xlu0 %1151
  %vm1153 = vcmask 900096
  %v1154 = vsel %vm1153, %v1140, %v1142
  %v1155 = vsel %vm1153, %v1142, %v1144
  %v1156 = vsel %vm1153, %v1144, %v1146
  %v1157 = vsel %vm1153, %v1146, %v1148
  %v1158 = vsel %vm1153, %v1148, %v1150
  %v1159 = vsel %vm1153, %v1150, %v1152
  %v1167 = vsel %vm86, %v1138, 0
  %1169 = vmatpush.msra.mxu0 0.0
  %1170 = vmatpush.msra.mxu0 0.0
  %1171 = vmatpush.msra.mxu0 0.0
  %1172 = vmatpush.msra.mxu0 0.0
  %1173 = vmatpush.msra.mxu0 0.0
  %1174 = vmatpush.msra.mxu0 0.0
  %1175 = vmatpush.msra.mxu0 0.0
  %1176 = vmatpush.msra.mxu0 0.0
  %1177 = vmatpush.msra.mxu0 0.0
  %1178 = vmatpush.msra.mxu0 0.0
  %1179 = vmatpush.msra.mxu0 0.0
  %1180 = vmatpush.msra.mxu0 0.0
  %1181 = vmatpush.msra.mxu0 0.0
  %1182 = vmatpush.msra.mxu0 0.0
  %1183 = vmatpush.msra.mxu0 0.0
  %1184 = vmatpush.msra.mxu0 %v1154
  %1185 = vmatmul.f32.gmra.mxu0 %v1167
  %v1186 = vpop.f32.mrf.mxu0
  %v1187 = vadd.f32 0.0, %v1186
  %1188 = vdwg.mxu0
  %1189 = vmatpush.msra.mxu0 0.0
  %1190 = vmatpush.msra.mxu0 0.0
  %1191 = vmatpush.msra.mxu0 0.0
  %1192 = vmatpush.msra.mxu0 0.0
  %1193 = vmatpush.msra.mxu0 0.0
  %1194 = vmatpush.msra.mxu0 0.0
  %1195 = vmatpush.msra.mxu0 0.0
  %1196 = vmatpush.msra.mxu0 0.0
  %1197 = vmatpush.msra.mxu0 0.0
  %1198 = vmatpush.msra.mxu0 0.0
  %1199 = vmatpush.msra.mxu0 0.0
  %1200 = vmatpush.msra.mxu0 0.0
  %1201 = vmatpush.msra.mxu0 0.0
  %1202 = vmatpush.msra.mxu0 0.0
  %1203 = vmatpush.msra.mxu0 0.0
  %1204 = vmatpush.msra.mxu0 %v1155
  %1205 = vmatmul.f32.gmra.mxu0 %v1167
  %v1206 = vpop.f32.mrf.mxu0
  %v1207 = vadd.f32 0.0, %v1206
  %1208 = vdwg.mxu0
  %1209 = vmatpush.msra.mxu0 0.0
  %1210 = vmatpush.msra.mxu0 0.0
  %1211 = vmatpush.msra.mxu0 0.0
  %1212 = vmatpush.msra.mxu0 0.0
  %1213 = vmatpush.msra.mxu0 0.0
  %1214 = vmatpush.msra.mxu0 0.0
  %1215 = vmatpush.msra.mxu0 0.0
  %1216 = vmatpush.msra.mxu0 0.0
  %1217 = vmatpush.msra.mxu0 0.0
  %1218 = vmatpush.msra.mxu0 0.0
  %1219 = vmatpush.msra.mxu0 0.0
  %1220 = vmatpush.msra.mxu0 0.0
  %1221 = vmatpush.msra.mxu0 0.0
  %1222 = vmatpush.msra.mxu0 0.0
  %1223 = vmatpush.msra.mxu0 0.0
  %1224 = vmatpush.msra.mxu0 %v1156
  %1225 = vmatmul.f32.gmra.mxu0 %v1167
  %v1226 = vpop.f32.mrf.mxu0
  %v1227 = vadd.f32 0.0, %v1226
  %1228 = vdwg.mxu0
  %1229 = vmatpush.msra.mxu0 0.0
  %1230 = vmatpush.msra.mxu0 0.0
  %1231 = vmatpush.msra.mxu0 0.0
  %1232 = vmatpush.msra.mxu0 0.0
  %1233 = vmatpush.msra.mxu0 0.0
  %1234 = vmatpush.msra.mxu0 0.0
  %1235 = vmatpush.msra.mxu0 0.0
  %1236 = vmatpush.msra.mxu0 0.0
  %1237 = vmatpush.msra.mxu0 0.0
  %1238 = vmatpush.msra.mxu0 0.0
  %1239 = vmatpush.msra.mxu0 0.0
  %1240 = vmatpush.msra.mxu0 0.0
  %1241 = vmatpush.msra.mxu0 0.0
  %1242 = vmatpush.msra.mxu0 0.0
  %1243 = vmatpush.msra.mxu0 0.0
  %1244 = vmatpush.msra.mxu0 %v1157
  %1245 = vmatmul.f32.gmra.mxu0 %v1167
  %v1246 = vpop.f32.mrf.mxu0
  %v1247 = vadd.f32 0.0, %v1246
  %1248 = vdwg.mxu0
  %1249 = vmatpush.msra.mxu0 0.0
  %1250 = vmatpush.msra.mxu0 0.0
  %1251 = vmatpush.msra.mxu0 0.0
  %1252 = vmatpush.msra.mxu0 0.0
  %1253 = vmatpush.msra.mxu0 0.0
  %1254 = vmatpush.msra.mxu0 0.0
  %1255 = vmatpush.msra.mxu0 0.0
  %1256 = vmatpush.msra.mxu0 0.0
  %1257 = vmatpush.msra.mxu0 0.0
  %1258 = vmatpush.msra.mxu0 0.0
  %1259 = vmatpush.msra.mxu0 0.0
  %1260 = vmatpush.msra.mxu0 0.0
  %1261 = vmatpush.msra.mxu0 0.0
  %1262 = vmatpush.msra.mxu0 0.0
  %1263 = vmatpush.msra.mxu0 0.0
  %1264 = vmatpush.msra.mxu0 %v1158
  %1265 = vmatmul.f32.gmra.mxu0 %v1167
  %v1266 = vpop.f32.mrf.mxu0
  %v1267 = vadd.f32 0.0, %v1266
  %1268 = vdwg.mxu0
  %1269 = vmatpush.msra.mxu0 0.0
  %1270 = vmatpush.msra.mxu0 0.0
  %1271 = vmatpush.msra.mxu0 0.0
  %1272 = vmatpush.msra.mxu0 0.0
  %1273 = vmatpush.msra.mxu0 0.0
  %1274 = vmatpush.msra.mxu0 0.0
  %1275 = vmatpush.msra.mxu0 0.0
  %1276 = vmatpush.msra.mxu0 0.0
  %1277 = vmatpush.msra.mxu0 0.0
  %1278 = vmatpush.msra.mxu0 0.0
  %1279 = vmatpush.msra.mxu0 0.0
  %1280 = vmatpush.msra.mxu0 0.0
  %1281 = vmatpush.msra.mxu0 0.0
  %1282 = vmatpush.msra.mxu0 0.0
  %1283 = vmatpush.msra.mxu0 0.0
  %1284 = vmatpush.msra.mxu0 %v1159
  %1285 = vmatmul.f32.gmra.mxu0 %v1167
  %v1286 = vpop.f32.mrf.mxu0
  %v1287 = vadd.f32 0.0, %v1286
  %1288 = vdwg.mxu0
  %v1289 = vadd.f32 %v1131, %v1187
  %v1290 = vadd.f32 %v1132, %v1207
  %v1291 = vadd.f32 %v1133, %v1227
  %v1292 = vadd.f32 %v1134, %v1247
  %v1293 = vadd.f32 %v1135, %v1267
  %v1294 = vadd.f32 %v1136, %v1287
  %s1295 = scalar_lea.vmem %s3, 64
  %v1296 = vld [vmem:[%s1295] sm:$0xff]
  %1297 = vrot.lane.b32.xlu0 %v807, 109
  %v1298 = vpop.permute.xlu0 %1297
  %1299 = vrot.lane.b32.xlu0 %v808, 109
  %v1300 = vpop.permute.xlu0 %1299
  %1301 = vrot.lane.b32.xlu0 %v809, 109
  %v1302 = vpop.permute.xlu0 %1301
  %1303 = vrot.lane.b32.xlu0 %v810, 109
  %v1304 = vpop.permute.xlu0 %1303
  %1305 = vrot.lane.b32.xlu0 %v811, 109
  %v1306 = vpop.permute.xlu0 %1305
  %1307 = vrot.lane.b32.xlu0 %v812, 109
  %v1308 = vpop.permute.xlu0 %1307
  %1309 = vrot.lane.b32.xlu0 %v813, 109
  %v1310 = vpop.permute.xlu0 %1309
  %vm1311 = vcmask 891904
  %v1312 = vsel %vm1311, %v1298, %v1300
  %v1313 = vsel %vm1311, %v1300, %v1302
  %v1314 = vsel %vm1311, %v1302, %v1304
  %v1315 = vsel %vm1311, %v1304, %v1306
  %v1316 = vsel %vm1311, %v1306, %v1308
  %v1317 = vsel %vm1311, %v1308, %v1310
  %v1325 = vsel %vm86, %v1296, 0
  %1327 = vmatpush.msra.mxu0 0.0
  %1328 = vmatpush.msra.mxu0 0.0
  %1329 = vmatpush.msra.mxu0 0.0
  %1330 = vmatpush.msra.mxu0 0.0
  %1331 = vmatpush.msra.mxu0 0.0
  %1332 = vmatpush.msra.mxu0 0.0
  %1333 = vmatpush.msra.mxu0 0.0
  %1334 = vmatpush.msra.mxu0 0.0
  %1335 = vmatpush.msra.mxu0 0.0
  %1336 = vmatpush.msra.mxu0 0.0
  %1337 = vmatpush.msra.mxu0 0.0
  %1338 = vmatpush.msra.mxu0 0.0
  %1339 = vmatpush.msra.mxu0 0.0
  %1340 = vmatpush.msra.mxu0 0.0
  %1341 = vmatpush.msra.mxu0 0.0
  %1342 = vmatpush.msra.mxu0 %v1312
  %1343 = vmatmul.f32.gmra.mxu0 %v1325
  %v1344 = vpop.f32.mrf.mxu0
  %v1345 = vadd.f32 0.0, %v1344
  %1346 = vdwg.mxu0
  %1347 = vmatpush.msra.mxu0 0.0
  %1348 = vmatpush.msra.mxu0 0.0
  %1349 = vmatpush.msra.mxu0 0.0
  %1350 = vmatpush.msra.mxu0 0.0
  %1351 = vmatpush.msra.mxu0 0.0
  %1352 = vmatpush.msra.mxu0 0.0
  %1353 = vmatpush.msra.mxu0 0.0
  %1354 = vmatpush.msra.mxu0 0.0
  %1355 = vmatpush.msra.mxu0 0.0
  %1356 = vmatpush.msra.mxu0 0.0
  %1357 = vmatpush.msra.mxu0 0.0
  %1358 = vmatpush.msra.mxu0 0.0
  %1359 = vmatpush.msra.mxu0 0.0
  %1360 = vmatpush.msra.mxu0 0.0
  %1361 = vmatpush.msra.mxu0 0.0
  %1362 = vmatpush.msra.mxu0 %v1313
  %1363 = vmatmul.f32.gmra.mxu0 %v1325
  %v1364 = vpop.f32.mrf.mxu0
  %v1365 = vadd.f32 0.0, %v1364
  %1366 = vdwg.mxu0
  %1367 = vmatpush.msra.mxu0 0.0
  %1368 = vmatpush.msra.mxu0 0.0
  %1369 = vmatpush.msra.mxu0 0.0
  %1370 = vmatpush.msra.mxu0 0.0
  %1371 = vmatpush.msra.mxu0 0.0
  %1372 = vmatpush.msra.mxu0 0.0
  %1373 = vmatpush.msra.mxu0 0.0
  %1374 = vmatpush.msra.mxu0 0.0
  %1375 = vmatpush.msra.mxu0 0.0
  %1376 = vmatpush.msra.mxu0 0.0
  %1377 = vmatpush.msra.mxu0 0.0
  %1378 = vmatpush.msra.mxu0 0.0
  %1379 = vmatpush.msra.mxu0 0.0
  %1380 = vmatpush.msra.mxu0 0.0
  %1381 = vmatpush.msra.mxu0 0.0
  %1382 = vmatpush.msra.mxu0 %v1314
  %1383 = vmatmul.f32.gmra.mxu0 %v1325
  %v1384 = vpop.f32.mrf.mxu0
  %v1385 = vadd.f32 0.0, %v1384
  %1386 = vdwg.mxu0
  %1387 = vmatpush.msra.mxu0 0.0
  %1388 = vmatpush.msra.mxu0 0.0
  %1389 = vmatpush.msra.mxu0 0.0
  %1390 = vmatpush.msra.mxu0 0.0
  %1391 = vmatpush.msra.mxu0 0.0
  %1392 = vmatpush.msra.mxu0 0.0
  %1393 = vmatpush.msra.mxu0 0.0
  %1394 = vmatpush.msra.mxu0 0.0
  %1395 = vmatpush.msra.mxu0 0.0
  %1396 = vmatpush.msra.mxu0 0.0
  %1397 = vmatpush.msra.mxu0 0.0
  %1398 = vmatpush.msra.mxu0 0.0
  %1399 = vmatpush.msra.mxu0 0.0
  %1400 = vmatpush.msra.mxu0 0.0
  %1401 = vmatpush.msra.mxu0 0.0
  %1402 = vmatpush.msra.mxu0 %v1315
  %1403 = vmatmul.f32.gmra.mxu0 %v1325
  %v1404 = vpop.f32.mrf.mxu0
  %v1405 = vadd.f32 0.0, %v1404
  %1406 = vdwg.mxu0
  %1407 = vmatpush.msra.mxu0 0.0
  %1408 = vmatpush.msra.mxu0 0.0
  %1409 = vmatpush.msra.mxu0 0.0
  %1410 = vmatpush.msra.mxu0 0.0
  %1411 = vmatpush.msra.mxu0 0.0
  %1412 = vmatpush.msra.mxu0 0.0
  %1413 = vmatpush.msra.mxu0 0.0
  %1414 = vmatpush.msra.mxu0 0.0
  %1415 = vmatpush.msra.mxu0 0.0
  %1416 = vmatpush.msra.mxu0 0.0
  %1417 = vmatpush.msra.mxu0 0.0
  %1418 = vmatpush.msra.mxu0 0.0
  %1419 = vmatpush.msra.mxu0 0.0
  %1420 = vmatpush.msra.mxu0 0.0
  %1421 = vmatpush.msra.mxu0 0.0
  %1422 = vmatpush.msra.mxu0 %v1316
  %1423 = vmatmul.f32.gmra.mxu0 %v1325
  %v1424 = vpop.f32.mrf.mxu0
  %v1425 = vadd.f32 0.0, %v1424
  %1426 = vdwg.mxu0
  %1427 = vmatpush.msra.mxu0 0.0
  %1428 = vmatpush.msra.mxu0 0.0
  %1429 = vmatpush.msra.mxu0 0.0
  %1430 = vmatpush.msra.mxu0 0.0
  %1431 = vmatpush.msra.mxu0 0.0
  %1432 = vmatpush.msra.mxu0 0.0
  %1433 = vmatpush.msra.mxu0 0.0
  %1434 = vmatpush.msra.mxu0 0.0
  %1435 = vmatpush.msra.mxu0 0.0
  %1436 = vmatpush.msra.mxu0 0.0
  %1437 = vmatpush.msra.mxu0 0.0
  %1438 = vmatpush.msra.mxu0 0.0
  %1439 = vmatpush.msra.mxu0 0.0
  %1440 = vmatpush.msra.mxu0 0.0
  %1441 = vmatpush.msra.mxu0 0.0
  %1442 = vmatpush.msra.mxu0 %v1317
  %1443 = vmatmul.f32.gmra.mxu0 %v1325
  %v1444 = vpop.f32.mrf.mxu0
  %v1445 = vadd.f32 0.0, %v1444
  %1446 = vdwg.mxu0
  %v1447 = vadd.f32 %v1289, %v1345
  %v1448 = vadd.f32 %v1290, %v1365
  %v1449 = vadd.f32 %v1291, %v1385
  %v1450 = vadd.f32 %v1292, %v1405
  %v1451 = vadd.f32 %v1293, %v1425
  %v1452 = vadd.f32 %v1294, %v1445
  %v1453 = vld [vmem:[%s1] sm:$0xff]
  %v1454 = vld [vmem:[%s1 + $0x8] sm:$0xff]
  %v1455 = vld [vmem:[%s1 + $0x10] sm:$0xff]
  %v1456 = vld [vmem:[%s1 + $0x18] sm:$0xff]
  %v1457 = vld [vmem:[%s1 + $0x20] sm:$0xff]
  %v1458 = vld [vmem:[%s1 + $0x28] sm:$0xff]
  %v1459 = vld [vmem:[%s1 + $0x30] sm:$0xff]
  %v1460 = vld [vmem:[%s4] sm:$0xff]
  %1468 = vrot.lane.b32.xlu0 %v1453, 19
  %v1469 = vpop.permute.xlu0 %1468
  %1470 = vrot.lane.b32.xlu0 %v1454, 19
  %v1471 = vpop.permute.xlu0 %1470
  %1472 = vrot.lane.b32.xlu0 %v1455, 19
  %v1473 = vpop.permute.xlu0 %1472
  %1474 = vrot.lane.b32.xlu0 %v1456, 19
  %v1475 = vpop.permute.xlu0 %1474
  %1476 = vrot.lane.b32.xlu0 %v1457, 19
  %v1477 = vpop.permute.xlu0 %1476
  %1478 = vrot.lane.b32.xlu0 %v1458, 19
  %v1479 = vpop.permute.xlu0 %1478
  %1480 = vrot.lane.b32.xlu0 %v1459, 19
  %v1481 = vpop.permute.xlu0 %1480
  %v1482 = vsel %vm224, %v1469, %v1471
  %v1483 = vsel %vm224, %v1471, %v1473
  %v1484 = vsel %vm224, %v1473, %v1475
  %v1485 = vsel %vm224, %v1475, %v1477
  %v1486 = vsel %vm224, %v1477, %v1479
  %v1487 = vsel %vm224, %v1479, %v1481
  %v1495 = vsel %vm86, %v1460, 0
  %1497 = vmatpush.msra.mxu0 0.0
  %1498 = vmatpush.msra.mxu0 0.0
  %1499 = vmatpush.msra.mxu0 0.0
  %1500 = vmatpush.msra.mxu0 0.0
  %1501 = vmatpush.msra.mxu0 0.0
  %1502 = vmatpush.msra.mxu0 0.0
  %1503 = vmatpush.msra.mxu0 0.0
  %1504 = vmatpush.msra.mxu0 0.0
  %1505 = vmatpush.msra.mxu0 0.0
  %1506 = vmatpush.msra.mxu0 0.0
  %1507 = vmatpush.msra.mxu0 0.0
  %1508 = vmatpush.msra.mxu0 0.0
  %1509 = vmatpush.msra.mxu0 0.0
  %1510 = vmatpush.msra.mxu0 0.0
  %1511 = vmatpush.msra.mxu0 0.0
  %1512 = vmatpush.msra.mxu0 %v1482
  %1513 = vmatmul.f32.gmra.mxu0 %v1495
  %v1514 = vpop.f32.mrf.mxu0
  %v1515 = vadd.f32 0.0, %v1514
  %1516 = vdwg.mxu0
  %1517 = vmatpush.msra.mxu0 0.0
  %1518 = vmatpush.msra.mxu0 0.0
  %1519 = vmatpush.msra.mxu0 0.0
  %1520 = vmatpush.msra.mxu0 0.0
  %1521 = vmatpush.msra.mxu0 0.0
  %1522 = vmatpush.msra.mxu0 0.0
  %1523 = vmatpush.msra.mxu0 0.0
  %1524 = vmatpush.msra.mxu0 0.0
  %1525 = vmatpush.msra.mxu0 0.0
  %1526 = vmatpush.msra.mxu0 0.0
  %1527 = vmatpush.msra.mxu0 0.0
  %1528 = vmatpush.msra.mxu0 0.0
  %1529 = vmatpush.msra.mxu0 0.0
  %1530 = vmatpush.msra.mxu0 0.0
  %1531 = vmatpush.msra.mxu0 0.0
  %1532 = vmatpush.msra.mxu0 %v1483
  %1533 = vmatmul.f32.gmra.mxu0 %v1495
  %v1534 = vpop.f32.mrf.mxu0
  %v1535 = vadd.f32 0.0, %v1534
  %1536 = vdwg.mxu0
  %1537 = vmatpush.msra.mxu0 0.0
  %1538 = vmatpush.msra.mxu0 0.0
  %1539 = vmatpush.msra.mxu0 0.0
  %1540 = vmatpush.msra.mxu0 0.0
  %1541 = vmatpush.msra.mxu0 0.0
  %1542 = vmatpush.msra.mxu0 0.0
  %1543 = vmatpush.msra.mxu0 0.0
  %1544 = vmatpush.msra.mxu0 0.0
  %1545 = vmatpush.msra.mxu0 0.0
  %1546 = vmatpush.msra.mxu0 0.0
  %1547 = vmatpush.msra.mxu0 0.0
  %1548 = vmatpush.msra.mxu0 0.0
  %1549 = vmatpush.msra.mxu0 0.0
  %1550 = vmatpush.msra.mxu0 0.0
  %1551 = vmatpush.msra.mxu0 0.0
  %1552 = vmatpush.msra.mxu0 %v1484
  %1553 = vmatmul.f32.gmra.mxu0 %v1495
  %v1554 = vpop.f32.mrf.mxu0
  %v1555 = vadd.f32 0.0, %v1554
  %1556 = vdwg.mxu0
  %1557 = vmatpush.msra.mxu0 0.0
  %1558 = vmatpush.msra.mxu0 0.0
  %1559 = vmatpush.msra.mxu0 0.0
  %1560 = vmatpush.msra.mxu0 0.0
  %1561 = vmatpush.msra.mxu0 0.0
  %1562 = vmatpush.msra.mxu0 0.0
  %1563 = vmatpush.msra.mxu0 0.0
  %1564 = vmatpush.msra.mxu0 0.0
  %1565 = vmatpush.msra.mxu0 0.0
  %1566 = vmatpush.msra.mxu0 0.0
  %1567 = vmatpush.msra.mxu0 0.0
  %1568 = vmatpush.msra.mxu0 0.0
  %1569 = vmatpush.msra.mxu0 0.0
  %1570 = vmatpush.msra.mxu0 0.0
  %1571 = vmatpush.msra.mxu0 0.0
  %1572 = vmatpush.msra.mxu0 %v1485
  %1573 = vmatmul.f32.gmra.mxu0 %v1495
  %v1574 = vpop.f32.mrf.mxu0
  %v1575 = vadd.f32 0.0, %v1574
  %1576 = vdwg.mxu0
  %1577 = vmatpush.msra.mxu0 0.0
  %1578 = vmatpush.msra.mxu0 0.0
  %1579 = vmatpush.msra.mxu0 0.0
  %1580 = vmatpush.msra.mxu0 0.0
  %1581 = vmatpush.msra.mxu0 0.0
  %1582 = vmatpush.msra.mxu0 0.0
  %1583 = vmatpush.msra.mxu0 0.0
  %1584 = vmatpush.msra.mxu0 0.0
  %1585 = vmatpush.msra.mxu0 0.0
  %1586 = vmatpush.msra.mxu0 0.0
  %1587 = vmatpush.msra.mxu0 0.0
  %1588 = vmatpush.msra.mxu0 0.0
  %1589 = vmatpush.msra.mxu0 0.0
  %1590 = vmatpush.msra.mxu0 0.0
  %1591 = vmatpush.msra.mxu0 0.0
  %1592 = vmatpush.msra.mxu0 %v1486
  %1593 = vmatmul.f32.gmra.mxu0 %v1495
  %v1594 = vpop.f32.mrf.mxu0
  %v1595 = vadd.f32 0.0, %v1594
  %1596 = vdwg.mxu0
  %1597 = vmatpush.msra.mxu0 0.0
  %1598 = vmatpush.msra.mxu0 0.0
  %1599 = vmatpush.msra.mxu0 0.0
  %1600 = vmatpush.msra.mxu0 0.0
  %1601 = vmatpush.msra.mxu0 0.0
  %1602 = vmatpush.msra.mxu0 0.0
  %1603 = vmatpush.msra.mxu0 0.0
  %1604 = vmatpush.msra.mxu0 0.0
  %1605 = vmatpush.msra.mxu0 0.0
  %1606 = vmatpush.msra.mxu0 0.0
  %1607 = vmatpush.msra.mxu0 0.0
  %1608 = vmatpush.msra.mxu0 0.0
  %1609 = vmatpush.msra.mxu0 0.0
  %1610 = vmatpush.msra.mxu0 0.0
  %1611 = vmatpush.msra.mxu0 0.0
  %1612 = vmatpush.msra.mxu0 %v1487
  %1613 = vmatmul.f32.gmra.mxu0 %v1495
  %v1614 = vpop.f32.mrf.mxu0
  %v1615 = vadd.f32 0.0, %v1614
  %1616 = vdwg.mxu0
  %v1617 = vadd.f32 %v1447, %v1515
  %v1618 = vadd.f32 %v1448, %v1535
  %v1619 = vadd.f32 %v1449, %v1555
  %v1620 = vadd.f32 %v1450, %v1575
  %v1621 = vadd.f32 %v1451, %v1595
  %v1622 = vadd.f32 %v1452, %v1615
  %s1623 = scalar_lea.vmem %s4, 8
  %v1624 = vld [vmem:[%s1623] sm:$0xff]
  %1625 = vrot.lane.b32.xlu0 %v1453, 18
  %v1626 = vpop.permute.xlu0 %1625
  %1627 = vrot.lane.b32.xlu0 %v1454, 18
  %v1628 = vpop.permute.xlu0 %1627
  %1629 = vrot.lane.b32.xlu0 %v1455, 18
  %v1630 = vpop.permute.xlu0 %1629
  %1631 = vrot.lane.b32.xlu0 %v1456, 18
  %v1632 = vpop.permute.xlu0 %1631
  %1633 = vrot.lane.b32.xlu0 %v1457, 18
  %v1634 = vpop.permute.xlu0 %1633
  %1635 = vrot.lane.b32.xlu0 %v1458, 18
  %v1636 = vpop.permute.xlu0 %1635
  %1637 = vrot.lane.b32.xlu0 %v1459, 18
  %v1638 = vpop.permute.xlu0 %1637
  %v1639 = vsel %vm73, %v1626, %v1628
  %v1640 = vsel %vm73, %v1628, %v1630
  %v1641 = vsel %vm73, %v1630, %v1632
  %v1642 = vsel %vm73, %v1632, %v1634
  %v1643 = vsel %vm73, %v1634, %v1636
  %v1644 = vsel %vm73, %v1636, %v1638
  %v1652 = vsel %vm86, %v1624, 0
  %1654 = vmatpush.msra.mxu0 0.0
  %1655 = vmatpush.msra.mxu0 0.0
  %1656 = vmatpush.msra.mxu0 0.0
  %1657 = vmatpush.msra.mxu0 0.0
  %1658 = vmatpush.msra.mxu0 0.0
  %1659 = vmatpush.msra.mxu0 0.0
  %1660 = vmatpush.msra.mxu0 0.0
  %1661 = vmatpush.msra.mxu0 0.0
  %1662 = vmatpush.msra.mxu0 0.0
  %1663 = vmatpush.msra.mxu0 0.0
  %1664 = vmatpush.msra.mxu0 0.0
  %1665 = vmatpush.msra.mxu0 0.0
  %1666 = vmatpush.msra.mxu0 0.0
  %1667 = vmatpush.msra.mxu0 0.0
  %1668 = vmatpush.msra.mxu0 0.0
  %1669 = vmatpush.msra.mxu0 %v1639
  %1670 = vmatmul.f32.gmra.mxu0 %v1652
  %v1671 = vpop.f32.mrf.mxu0
  %v1672 = vadd.f32 0.0, %v1671
  %1673 = vdwg.mxu0
  %1674 = vmatpush.msra.mxu0 0.0
  %1675 = vmatpush.msra.mxu0 0.0
  %1676 = vmatpush.msra.mxu0 0.0
  %1677 = vmatpush.msra.mxu0 0.0
  %1678 = vmatpush.msra.mxu0 0.0
  %1679 = vmatpush.msra.mxu0 0.0
  %1680 = vmatpush.msra.mxu0 0.0
  %1681 = vmatpush.msra.mxu0 0.0
  %1682 = vmatpush.msra.mxu0 0.0
  %1683 = vmatpush.msra.mxu0 0.0
  %1684 = vmatpush.msra.mxu0 0.0
  %1685 = vmatpush.msra.mxu0 0.0
  %1686 = vmatpush.msra.mxu0 0.0
  %1687 = vmatpush.msra.mxu0 0.0
  %1688 = vmatpush.msra.mxu0 0.0
  %1689 = vmatpush.msra.mxu0 %v1640
  %1690 = vmatmul.f32.gmra.mxu0 %v1652
  %v1691 = vpop.f32.mrf.mxu0
  %v1692 = vadd.f32 0.0, %v1691
  %1693 = vdwg.mxu0
  %1694 = vmatpush.msra.mxu0 0.0
  %1695 = vmatpush.msra.mxu0 0.0
  %1696 = vmatpush.msra.mxu0 0.0
  %1697 = vmatpush.msra.mxu0 0.0
  %1698 = vmatpush.msra.mxu0 0.0
  %1699 = vmatpush.msra.mxu0 0.0
  %1700 = vmatpush.msra.mxu0 0.0
  %1701 = vmatpush.msra.mxu0 0.0
  %1702 = vmatpush.msra.mxu0 0.0
  %1703 = vmatpush.msra.mxu0 0.0
  %1704 = vmatpush.msra.mxu0 0.0
  %1705 = vmatpush.msra.mxu0 0.0
  %1706 = vmatpush.msra.mxu0 0.0
  %1707 = vmatpush.msra.mxu0 0.0
  %1708 = vmatpush.msra.mxu0 0.0
  %1709 = vmatpush.msra.mxu0 %v1641
  %1710 = vmatmul.f32.gmra.mxu0 %v1652
  %v1711 = vpop.f32.mrf.mxu0
  %v1712 = vadd.f32 0.0, %v1711
  %1713 = vdwg.mxu0
  %1714 = vmatpush.msra.mxu0 0.0
  %1715 = vmatpush.msra.mxu0 0.0
  %1716 = vmatpush.msra.mxu0 0.0
  %1717 = vmatpush.msra.mxu0 0.0
  %1718 = vmatpush.msra.mxu0 0.0
  %1719 = vmatpush.msra.mxu0 0.0
  %1720 = vmatpush.msra.mxu0 0.0
  %1721 = vmatpush.msra.mxu0 0.0
  %1722 = vmatpush.msra.mxu0 0.0
  %1723 = vmatpush.msra.mxu0 0.0
  %1724 = vmatpush.msra.mxu0 0.0
  %1725 = vmatpush.msra.mxu0 0.0
  %1726 = vmatpush.msra.mxu0 0.0
  %1727 = vmatpush.msra.mxu0 0.0
  %1728 = vmatpush.msra.mxu0 0.0
  %1729 = vmatpush.msra.mxu0 %v1642
  %1730 = vmatmul.f32.gmra.mxu0 %v1652
  %v1731 = vpop.f32.mrf.mxu0
  %v1732 = vadd.f32 0.0, %v1731
  %1733 = vdwg.mxu0
  %1734 = vmatpush.msra.mxu0 0.0
  %1735 = vmatpush.msra.mxu0 0.0
  %1736 = vmatpush.msra.mxu0 0.0
  %1737 = vmatpush.msra.mxu0 0.0
  %1738 = vmatpush.msra.mxu0 0.0
  %1739 = vmatpush.msra.mxu0 0.0
  %1740 = vmatpush.msra.mxu0 0.0
  %1741 = vmatpush.msra.mxu0 0.0
  %1742 = vmatpush.msra.mxu0 0.0
  %1743 = vmatpush.msra.mxu0 0.0
  %1744 = vmatpush.msra.mxu0 0.0
  %1745 = vmatpush.msra.mxu0 0.0
  %1746 = vmatpush.msra.mxu0 0.0
  %1747 = vmatpush.msra.mxu0 0.0
  %1748 = vmatpush.msra.mxu0 0.0
  %1749 = vmatpush.msra.mxu0 %v1643
  %1750 = vmatmul.f32.gmra.mxu0 %v1652
  %v1751 = vpop.f32.mrf.mxu0
  %v1752 = vadd.f32 0.0, %v1751
  %1753 = vdwg.mxu0
  %1754 = vmatpush.msra.mxu0 0.0
  %1755 = vmatpush.msra.mxu0 0.0
  %1756 = vmatpush.msra.mxu0 0.0
  %1757 = vmatpush.msra.mxu0 0.0
  %1758 = vmatpush.msra.mxu0 0.0
  %1759 = vmatpush.msra.mxu0 0.0
  %1760 = vmatpush.msra.mxu0 0.0
  %1761 = vmatpush.msra.mxu0 0.0
  %1762 = vmatpush.msra.mxu0 0.0
  %1763 = vmatpush.msra.mxu0 0.0
  %1764 = vmatpush.msra.mxu0 0.0
  %1765 = vmatpush.msra.mxu0 0.0
  %1766 = vmatpush.msra.mxu0 0.0
  %1767 = vmatpush.msra.mxu0 0.0
  %1768 = vmatpush.msra.mxu0 0.0
  %1769 = vmatpush.msra.mxu0 %v1644
  %1770 = vmatmul.f32.gmra.mxu0 %v1652
  %v1771 = vpop.f32.mrf.mxu0
  %v1772 = vadd.f32 0.0, %v1771
  %1773 = vdwg.mxu0
  %v1774 = vadd.f32 %v1617, %v1672
  %v1775 = vadd.f32 %v1618, %v1692
  %v1776 = vadd.f32 %v1619, %v1712
  %v1777 = vadd.f32 %v1620, %v1732
  %v1778 = vadd.f32 %v1621, %v1752
  %v1779 = vadd.f32 %v1622, %v1772
  %s1780 = scalar_lea.vmem %s4, 16
  %v1781 = vld [vmem:[%s1780] sm:$0xff]
  %1782 = vrot.lane.b32.xlu0 %v1453, 17
  %v1783 = vpop.permute.xlu0 %1782
  %1784 = vrot.lane.b32.xlu0 %v1454, 17
  %v1785 = vpop.permute.xlu0 %1784
  %1786 = vrot.lane.b32.xlu0 %v1455, 17
  %v1787 = vpop.permute.xlu0 %1786
  %1788 = vrot.lane.b32.xlu0 %v1456, 17
  %v1789 = vpop.permute.xlu0 %1788
  %1790 = vrot.lane.b32.xlu0 %v1457, 17
  %v1791 = vpop.permute.xlu0 %1790
  %1792 = vrot.lane.b32.xlu0 %v1458, 17
  %v1793 = vpop.permute.xlu0 %1792
  %1794 = vrot.lane.b32.xlu0 %v1459, 17
  %v1795 = vpop.permute.xlu0 %1794
  %v1796 = vsel %vm376, %v1783, %v1785
  %v1797 = vsel %vm376, %v1785, %v1787
  %v1798 = vsel %vm376, %v1787, %v1789
  %v1799 = vsel %vm376, %v1789, %v1791
  %v1800 = vsel %vm376, %v1791, %v1793
  %v1801 = vsel %vm376, %v1793, %v1795
  %v1809 = vsel %vm86, %v1781, 0
  %1811 = vmatpush.msra.mxu0 0.0
  %1812 = vmatpush.msra.mxu0 0.0
  %1813 = vmatpush.msra.mxu0 0.0
  %1814 = vmatpush.msra.mxu0 0.0
  %1815 = vmatpush.msra.mxu0 0.0
  %1816 = vmatpush.msra.mxu0 0.0
  %1817 = vmatpush.msra.mxu0 0.0
  %1818 = vmatpush.msra.mxu0 0.0
  %1819 = vmatpush.msra.mxu0 0.0
  %1820 = vmatpush.msra.mxu0 0.0
  %1821 = vmatpush.msra.mxu0 0.0
  %1822 = vmatpush.msra.mxu0 0.0
  %1823 = vmatpush.msra.mxu0 0.0
  %1824 = vmatpush.msra.mxu0 0.0
  %1825 = vmatpush.msra.mxu0 0.0
  %1826 = vmatpush.msra.mxu0 %v1796
  %1827 = vmatmul.f32.gmra.mxu0 %v1809
  %v1828 = vpop.f32.mrf.mxu0
  %v1829 = vadd.f32 0.0, %v1828
  %1830 = vdwg.mxu0
  %1831 = vmatpush.msra.mxu0 0.0
  %1832 = vmatpush.msra.mxu0 0.0
  %1833 = vmatpush.msra.mxu0 0.0
  %1834 = vmatpush.msra.mxu0 0.0
  %1835 = vmatpush.msra.mxu0 0.0
  %1836 = vmatpush.msra.mxu0 0.0
  %1837 = vmatpush.msra.mxu0 0.0
  %1838 = vmatpush.msra.mxu0 0.0
  %1839 = vmatpush.msra.mxu0 0.0
  %1840 = vmatpush.msra.mxu0 0.0
  %1841 = vmatpush.msra.mxu0 0.0
  %1842 = vmatpush.msra.mxu0 0.0
  %1843 = vmatpush.msra.mxu0 0.0
  %1844 = vmatpush.msra.mxu0 0.0
  %1845 = vmatpush.msra.mxu0 0.0
  %1846 = vmatpush.msra.mxu0 %v1797
  %1847 = vmatmul.f32.gmra.mxu0 %v1809
  %v1848 = vpop.f32.mrf.mxu0
  %v1849 = vadd.f32 0.0, %v1848
  %1850 = vdwg.mxu0
  %1851 = vmatpush.msra.mxu0 0.0
  %1852 = vmatpush.msra.mxu0 0.0
  %1853 = vmatpush.msra.mxu0 0.0
  %1854 = vmatpush.msra.mxu0 0.0
  %1855 = vmatpush.msra.mxu0 0.0
  %1856 = vmatpush.msra.mxu0 0.0
  %1857 = vmatpush.msra.mxu0 0.0
  %1858 = vmatpush.msra.mxu0 0.0
  %1859 = vmatpush.msra.mxu0 0.0
  %1860 = vmatpush.msra.mxu0 0.0
  %1861 = vmatpush.msra.mxu0 0.0
  %1862 = vmatpush.msra.mxu0 0.0
  %1863 = vmatpush.msra.mxu0 0.0
  %1864 = vmatpush.msra.mxu0 0.0
  %1865 = vmatpush.msra.mxu0 0.0
  %1866 = vmatpush.msra.mxu0 %v1798
  %1867 = vmatmul.f32.gmra.mxu0 %v1809
  %v1868 = vpop.f32.mrf.mxu0
  %v1869 = vadd.f32 0.0, %v1868
  %1870 = vdwg.mxu0
  %1871 = vmatpush.msra.mxu0 0.0
  %1872 = vmatpush.msra.mxu0 0.0
  %1873 = vmatpush.msra.mxu0 0.0
  %1874 = vmatpush.msra.mxu0 0.0
  %1875 = vmatpush.msra.mxu0 0.0
  %1876 = vmatpush.msra.mxu0 0.0
  %1877 = vmatpush.msra.mxu0 0.0
  %1878 = vmatpush.msra.mxu0 0.0
  %1879 = vmatpush.msra.mxu0 0.0
  %1880 = vmatpush.msra.mxu0 0.0
  %1881 = vmatpush.msra.mxu0 0.0
  %1882 = vmatpush.msra.mxu0 0.0
  %1883 = vmatpush.msra.mxu0 0.0
  %1884 = vmatpush.msra.mxu0 0.0
  %1885 = vmatpush.msra.mxu0 0.0
  %1886 = vmatpush.msra.mxu0 %v1799
  %1887 = vmatmul.f32.gmra.mxu0 %v1809
  %v1888 = vpop.f32.mrf.mxu0
  %v1889 = vadd.f32 0.0, %v1888
  %1890 = vdwg.mxu0
  %1891 = vmatpush.msra.mxu0 0.0
  %1892 = vmatpush.msra.mxu0 0.0
  %1893 = vmatpush.msra.mxu0 0.0
  %1894 = vmatpush.msra.mxu0 0.0
  %1895 = vmatpush.msra.mxu0 0.0
  %1896 = vmatpush.msra.mxu0 0.0
  %1897 = vmatpush.msra.mxu0 0.0
  %1898 = vmatpush.msra.mxu0 0.0
  %1899 = vmatpush.msra.mxu0 0.0
  %1900 = vmatpush.msra.mxu0 0.0
  %1901 = vmatpush.msra.mxu0 0.0
  %1902 = vmatpush.msra.mxu0 0.0
  %1903 = vmatpush.msra.mxu0 0.0
  %1904 = vmatpush.msra.mxu0 0.0
  %1905 = vmatpush.msra.mxu0 0.0
  %1906 = vmatpush.msra.mxu0 %v1800
  %1907 = vmatmul.f32.gmra.mxu0 %v1809
  %v1908 = vpop.f32.mrf.mxu0
  %v1909 = vadd.f32 0.0, %v1908
  %1910 = vdwg.mxu0
  %1911 = vmatpush.msra.mxu0 0.0
  %1912 = vmatpush.msra.mxu0 0.0
  %1913 = vmatpush.msra.mxu0 0.0
  %1914 = vmatpush.msra.mxu0 0.0
  %1915 = vmatpush.msra.mxu0 0.0
  %1916 = vmatpush.msra.mxu0 0.0
  %1917 = vmatpush.msra.mxu0 0.0
  %1918 = vmatpush.msra.mxu0 0.0
  %1919 = vmatpush.msra.mxu0 0.0
  %1920 = vmatpush.msra.mxu0 0.0
  %1921 = vmatpush.msra.mxu0 0.0
  %1922 = vmatpush.msra.mxu0 0.0
  %1923 = vmatpush.msra.mxu0 0.0
  %1924 = vmatpush.msra.mxu0 0.0
  %1925 = vmatpush.msra.mxu0 0.0
  %1926 = vmatpush.msra.mxu0 %v1801
  %1927 = vmatmul.f32.gmra.mxu0 %v1809
  %v1928 = vpop.f32.mrf.mxu0
  %v1929 = vadd.f32 0.0, %v1928
  %1930 = vdwg.mxu0
  %v1931 = vadd.f32 %v1774, %v1829
  %v1932 = vadd.f32 %v1775, %v1849
  %v1933 = vadd.f32 %v1776, %v1869
  %v1934 = vadd.f32 %v1777, %v1889
  %v1935 = vadd.f32 %v1778, %v1909
  %v1936 = vadd.f32 %v1779, %v1929
  %s1937 = scalar_lea.vmem %s4, 24
  %v1938 = vld [vmem:[%s1937] sm:$0xff]
  %1939 = vrot.lane.b32.xlu0 %v1453, 1
  %v1940 = vpop.permute.xlu0 %1939
  %1941 = vrot.lane.b32.xlu0 %v1454, 1
  %v1942 = vpop.permute.xlu0 %1941
  %1943 = vrot.lane.b32.xlu0 %v1455, 1
  %v1944 = vpop.permute.xlu0 %1943
  %1945 = vrot.lane.b32.xlu0 %v1456, 1
  %v1946 = vpop.permute.xlu0 %1945
  %1947 = vrot.lane.b32.xlu0 %v1457, 1
  %v1948 = vpop.permute.xlu0 %1947
  %1949 = vrot.lane.b32.xlu0 %v1458, 1
  %v1950 = vpop.permute.xlu0 %1949
  %1951 = vrot.lane.b32.xlu0 %v1459, 1
  %v1952 = vpop.permute.xlu0 %1951
  %v1953 = vsel %vm534, %v1940, %v1942
  %v1954 = vsel %vm534, %v1942, %v1944
  %v1955 = vsel %vm534, %v1944, %v1946
  %v1956 = vsel %vm534, %v1946, %v1948
  %v1957 = vsel %vm534, %v1948, %v1950
  %v1958 = vsel %vm534, %v1950, %v1952
  %v1966 = vsel %vm86, %v1938, 0
  %1968 = vmatpush.msra.mxu0 0.0
  %1969 = vmatpush.msra.mxu0 0.0
  %1970 = vmatpush.msra.mxu0 0.0
  %1971 = vmatpush.msra.mxu0 0.0
  %1972 = vmatpush.msra.mxu0 0.0
  %1973 = vmatpush.msra.mxu0 0.0
  %1974 = vmatpush.msra.mxu0 0.0
  %1975 = vmatpush.msra.mxu0 0.0
  %1976 = vmatpush.msra.mxu0 0.0
  %1977 = vmatpush.msra.mxu0 0.0
  %1978 = vmatpush.msra.mxu0 0.0
  %1979 = vmatpush.msra.mxu0 0.0
  %1980 = vmatpush.msra.mxu0 0.0
  %1981 = vmatpush.msra.mxu0 0.0
  %1982 = vmatpush.msra.mxu0 0.0
  %1983 = vmatpush.msra.mxu0 %v1953
  %1984 = vmatmul.f32.gmra.mxu0 %v1966
  %v1985 = vpop.f32.mrf.mxu0
  %v1986 = vadd.f32 0.0, %v1985
  %1987 = vdwg.mxu0
  %1988 = vmatpush.msra.mxu0 0.0
  %1989 = vmatpush.msra.mxu0 0.0
  %1990 = vmatpush.msra.mxu0 0.0
  %1991 = vmatpush.msra.mxu0 0.0
  %1992 = vmatpush.msra.mxu0 0.0
  %1993 = vmatpush.msra.mxu0 0.0
  %1994 = vmatpush.msra.mxu0 0.0
  %1995 = vmatpush.msra.mxu0 0.0
  %1996 = vmatpush.msra.mxu0 0.0
  %1997 = vmatpush.msra.mxu0 0.0
  %1998 = vmatpush.msra.mxu0 0.0
  %1999 = vmatpush.msra.mxu0 0.0
  %2000 = vmatpush.msra.mxu0 0.0
  %2001 = vmatpush.msra.mxu0 0.0
  %2002 = vmatpush.msra.mxu0 0.0
  %2003 = vmatpush.msra.mxu0 %v1954
  %2004 = vmatmul.f32.gmra.mxu0 %v1966
  %v2005 = vpop.f32.mrf.mxu0
  %v2006 = vadd.f32 0.0, %v2005
  %2007 = vdwg.mxu0
  %2008 = vmatpush.msra.mxu0 0.0
  %2009 = vmatpush.msra.mxu0 0.0
  %2010 = vmatpush.msra.mxu0 0.0
  %2011 = vmatpush.msra.mxu0 0.0
  %2012 = vmatpush.msra.mxu0 0.0
  %2013 = vmatpush.msra.mxu0 0.0
  %2014 = vmatpush.msra.mxu0 0.0
  %2015 = vmatpush.msra.mxu0 0.0
  %2016 = vmatpush.msra.mxu0 0.0
  %2017 = vmatpush.msra.mxu0 0.0
  %2018 = vmatpush.msra.mxu0 0.0
  %2019 = vmatpush.msra.mxu0 0.0
  %2020 = vmatpush.msra.mxu0 0.0
  %2021 = vmatpush.msra.mxu0 0.0
  %2022 = vmatpush.msra.mxu0 0.0
  %2023 = vmatpush.msra.mxu0 %v1955
  %2024 = vmatmul.f32.gmra.mxu0 %v1966
  %v2025 = vpop.f32.mrf.mxu0
  %v2026 = vadd.f32 0.0, %v2025
  %2027 = vdwg.mxu0
  %2028 = vmatpush.msra.mxu0 0.0
  %2029 = vmatpush.msra.mxu0 0.0
  %2030 = vmatpush.msra.mxu0 0.0
  %2031 = vmatpush.msra.mxu0 0.0
  %2032 = vmatpush.msra.mxu0 0.0
  %2033 = vmatpush.msra.mxu0 0.0
  %2034 = vmatpush.msra.mxu0 0.0
  %2035 = vmatpush.msra.mxu0 0.0
  %2036 = vmatpush.msra.mxu0 0.0
  %2037 = vmatpush.msra.mxu0 0.0
  %2038 = vmatpush.msra.mxu0 0.0
  %2039 = vmatpush.msra.mxu0 0.0
  %2040 = vmatpush.msra.mxu0 0.0
  %2041 = vmatpush.msra.mxu0 0.0
  %2042 = vmatpush.msra.mxu0 0.0
  %2043 = vmatpush.msra.mxu0 %v1956
  %2044 = vmatmul.f32.gmra.mxu0 %v1966
  %v2045 = vpop.f32.mrf.mxu0
  %v2046 = vadd.f32 0.0, %v2045
  %2047 = vdwg.mxu0
  %2048 = vmatpush.msra.mxu0 0.0
  %2049 = vmatpush.msra.mxu0 0.0
  %2050 = vmatpush.msra.mxu0 0.0
  %2051 = vmatpush.msra.mxu0 0.0
  %2052 = vmatpush.msra.mxu0 0.0
  %2053 = vmatpush.msra.mxu0 0.0
  %2054 = vmatpush.msra.mxu0 0.0
  %2055 = vmatpush.msra.mxu0 0.0
  %2056 = vmatpush.msra.mxu0 0.0
  %2057 = vmatpush.msra.mxu0 0.0
  %2058 = vmatpush.msra.mxu0 0.0
  %2059 = vmatpush.msra.mxu0 0.0
  %2060 = vmatpush.msra.mxu0 0.0
  %2061 = vmatpush.msra.mxu0 0.0
  %2062 = vmatpush.msra.mxu0 0.0
  %2063 = vmatpush.msra.mxu0 %v1957
  %2064 = vmatmul.f32.gmra.mxu0 %v1966
  %v2065 = vpop.f32.mrf.mxu0
  %v2066 = vadd.f32 0.0, %v2065
  %2067 = vdwg.mxu0
  %2068 = vmatpush.msra.mxu0 0.0
  %2069 = vmatpush.msra.mxu0 0.0
  %2070 = vmatpush.msra.mxu0 0.0
  %2071 = vmatpush.msra.mxu0 0.0
  %2072 = vmatpush.msra.mxu0 0.0
  %2073 = vmatpush.msra.mxu0 0.0
  %2074 = vmatpush.msra.mxu0 0.0
  %2075 = vmatpush.msra.mxu0 0.0
  %2076 = vmatpush.msra.mxu0 0.0
  %2077 = vmatpush.msra.mxu0 0.0
  %2078 = vmatpush.msra.mxu0 0.0
  %2079 = vmatpush.msra.mxu0 0.0
  %2080 = vmatpush.msra.mxu0 0.0
  %2081 = vmatpush.msra.mxu0 0.0
  %2082 = vmatpush.msra.mxu0 0.0
  %2083 = vmatpush.msra.mxu0 %v1958
  %2084 = vmatmul.f32.gmra.mxu0 %v1966
  %v2085 = vpop.f32.mrf.mxu0
  %v2086 = vadd.f32 0.0, %v2085
  %2087 = vdwg.mxu0
  %v2088 = vadd.f32 %v1931, %v1986
  %v2089 = vadd.f32 %v1932, %v2006
  %v2090 = vadd.f32 %v1933, %v2026
  %v2091 = vadd.f32 %v1934, %v2046
  %v2092 = vadd.f32 %v1935, %v2066
  %v2093 = vadd.f32 %v1936, %v2086
  %s2094 = scalar_lea.vmem %s4, 32
  %v2095 = vld [vmem:[%s2094] sm:$0xff]
  %v2097 = vsel %vm86, %v2095, 0
  %2099 = vmatpush.msra.mxu0 0.0
  %2100 = vmatpush.msra.mxu0 0.0
  %2101 = vmatpush.msra.mxu0 0.0
  %2102 = vmatpush.msra.mxu0 0.0
  %2103 = vmatpush.msra.mxu0 0.0
  %2104 = vmatpush.msra.mxu0 0.0
  %2105 = vmatpush.msra.mxu0 0.0
  %2106 = vmatpush.msra.mxu0 0.0
  %2107 = vmatpush.msra.mxu0 0.0
  %2108 = vmatpush.msra.mxu0 0.0
  %2109 = vmatpush.msra.mxu0 0.0
  %2110 = vmatpush.msra.mxu0 0.0
  %2111 = vmatpush.msra.mxu0 0.0
  %2112 = vmatpush.msra.mxu0 0.0
  %2113 = vmatpush.msra.mxu0 0.0
  %2114 = vmatpush.msra.mxu0 %v1454
  %2115 = vmatmul.f32.gmra.mxu0 %v2097
  %v2116 = vpop.f32.mrf.mxu0
  %v2117 = vadd.f32 0.0, %v2116
  %2118 = vdwg.mxu0
  %2119 = vmatpush.msra.mxu0 0.0
  %2120 = vmatpush.msra.mxu0 0.0
  %2121 = vmatpush.msra.mxu0 0.0
  %2122 = vmatpush.msra.mxu0 0.0
  %2123 = vmatpush.msra.mxu0 0.0
  %2124 = vmatpush.msra.mxu0 0.0
  %2125 = vmatpush.msra.mxu0 0.0
  %2126 = vmatpush.msra.mxu0 0.0
  %2127 = vmatpush.msra.mxu0 0.0
  %2128 = vmatpush.msra.mxu0 0.0
  %2129 = vmatpush.msra.mxu0 0.0
  %2130 = vmatpush.msra.mxu0 0.0
  %2131 = vmatpush.msra.mxu0 0.0
  %2132 = vmatpush.msra.mxu0 0.0
  %2133 = vmatpush.msra.mxu0 0.0
  %2134 = vmatpush.msra.mxu0 %v1455
  %2135 = vmatmul.f32.gmra.mxu0 %v2097
  %v2136 = vpop.f32.mrf.mxu0
  %v2137 = vadd.f32 0.0, %v2136
  %2138 = vdwg.mxu0
  %2139 = vmatpush.msra.mxu0 0.0
  %2140 = vmatpush.msra.mxu0 0.0
  %2141 = vmatpush.msra.mxu0 0.0
  %2142 = vmatpush.msra.mxu0 0.0
  %2143 = vmatpush.msra.mxu0 0.0
  %2144 = vmatpush.msra.mxu0 0.0
  %2145 = vmatpush.msra.mxu0 0.0
  %2146 = vmatpush.msra.mxu0 0.0
  %2147 = vmatpush.msra.mxu0 0.0
  %2148 = vmatpush.msra.mxu0 0.0
  %2149 = vmatpush.msra.mxu0 0.0
  %2150 = vmatpush.msra.mxu0 0.0
  %2151 = vmatpush.msra.mxu0 0.0
  %2152 = vmatpush.msra.mxu0 0.0
  %2153 = vmatpush.msra.mxu0 0.0
  %2154 = vmatpush.msra.mxu0 %v1456
  %2155 = vmatmul.f32.gmra.mxu0 %v2097
  %v2156 = vpop.f32.mrf.mxu0
  %v2157 = vadd.f32 0.0, %v2156
  %2158 = vdwg.mxu0
  %2159 = vmatpush.msra.mxu0 0.0
  %2160 = vmatpush.msra.mxu0 0.0
  %2161 = vmatpush.msra.mxu0 0.0
  %2162 = vmatpush.msra.mxu0 0.0
  %2163 = vmatpush.msra.mxu0 0.0
  %2164 = vmatpush.msra.mxu0 0.0
  %2165 = vmatpush.msra.mxu0 0.0
  %2166 = vmatpush.msra.mxu0 0.0
  %2167 = vmatpush.msra.mxu0 0.0
  %2168 = vmatpush.msra.mxu0 0.0
  %2169 = vmatpush.msra.mxu0 0.0
  %2170 = vmatpush.msra.mxu0 0.0
  %2171 = vmatpush.msra.mxu0 0.0
  %2172 = vmatpush.msra.mxu0 0.0
  %2173 = vmatpush.msra.mxu0 0.0
  %2174 = vmatpush.msra.mxu0 %v1457
  %2175 = vmatmul.f32.gmra.mxu0 %v2097
  %v2176 = vpop.f32.mrf.mxu0
  %v2177 = vadd.f32 0.0, %v2176
  %2178 = vdwg.mxu0
  %2179 = vmatpush.msra.mxu0 0.0
  %2180 = vmatpush.msra.mxu0 0.0
  %2181 = vmatpush.msra.mxu0 0.0
  %2182 = vmatpush.msra.mxu0 0.0
  %2183 = vmatpush.msra.mxu0 0.0
  %2184 = vmatpush.msra.mxu0 0.0
  %2185 = vmatpush.msra.mxu0 0.0
  %2186 = vmatpush.msra.mxu0 0.0
  %2187 = vmatpush.msra.mxu0 0.0
  %2188 = vmatpush.msra.mxu0 0.0
  %2189 = vmatpush.msra.mxu0 0.0
  %2190 = vmatpush.msra.mxu0 0.0
  %2191 = vmatpush.msra.mxu0 0.0
  %2192 = vmatpush.msra.mxu0 0.0
  %2193 = vmatpush.msra.mxu0 0.0
  %2194 = vmatpush.msra.mxu0 %v1458
  %2195 = vmatmul.f32.gmra.mxu0 %v2097
  %v2196 = vpop.f32.mrf.mxu0
  %v2197 = vadd.f32 0.0, %v2196
  %2198 = vdwg.mxu0
  %2199 = vmatpush.msra.mxu0 0.0
  %2200 = vmatpush.msra.mxu0 0.0
  %2201 = vmatpush.msra.mxu0 0.0
  %2202 = vmatpush.msra.mxu0 0.0
  %2203 = vmatpush.msra.mxu0 0.0
  %2204 = vmatpush.msra.mxu0 0.0
  %2205 = vmatpush.msra.mxu0 0.0
  %2206 = vmatpush.msra.mxu0 0.0
  %2207 = vmatpush.msra.mxu0 0.0
  %2208 = vmatpush.msra.mxu0 0.0
  %2209 = vmatpush.msra.mxu0 0.0
  %2210 = vmatpush.msra.mxu0 0.0
  %2211 = vmatpush.msra.mxu0 0.0
  %2212 = vmatpush.msra.mxu0 0.0
  %2213 = vmatpush.msra.mxu0 0.0
  %2214 = vmatpush.msra.mxu0 %v1459
  %2215 = vmatmul.f32.gmra.mxu0 %v2097
  %v2216 = vpop.f32.mrf.mxu0
  %v2217 = vadd.f32 0.0, %v2216
  %2218 = vdwg.mxu0
  %v2219 = vadd.f32 %v2088, %v2117
  %v2220 = vadd.f32 %v2089, %v2137
  %v2221 = vadd.f32 %v2090, %v2157
  %v2222 = vadd.f32 %v2091, %v2177
  %v2223 = vadd.f32 %v2092, %v2197
  %v2224 = vadd.f32 %v2093, %v2217
  %v2225 = vld [vmem:[%s1 + $0x8] sm:$0xff]
  %v2226 = vld [vmem:[%s1 + $0x10] sm:$0xff]
  %v2227 = vld [vmem:[%s1 + $0x18] sm:$0xff]
  %v2228 = vld [vmem:[%s1 + $0x20] sm:$0xff]
  %v2229 = vld [vmem:[%s1 + $0x28] sm:$0xff]
  %v2230 = vld [vmem:[%s1 + $0x30] sm:$0xff]
  %v2231 = vld [vmem:[%s1 + $0x38] sm:$0xff]
  %s2232 = scalar_lea.vmem %s4, 40
  %v2233 = vld [vmem:[%s2232] sm:$0xff]
  %2241 = vrot.lane.b32.xlu0 %v2225, 127
  %v2242 = vpop.permute.xlu0 %2241
  %2243 = vrot.lane.b32.xlu0 %v2226, 127
  %v2244 = vpop.permute.xlu0 %2243
  %2245 = vrot.lane.b32.xlu0 %v2227, 127
  %v2246 = vpop.permute.xlu0 %2245
  %2247 = vrot.lane.b32.xlu0 %v2228, 127
  %v2248 = vpop.permute.xlu0 %2247
  %2249 = vrot.lane.b32.xlu0 %v2229, 127
  %v2250 = vpop.permute.xlu0 %2249
  %2251 = vrot.lane.b32.xlu0 %v2230, 127
  %v2252 = vpop.permute.xlu0 %2251
  %2253 = vrot.lane.b32.xlu0 %v2231, 127
  %v2254 = vpop.permute.xlu0 %2253
  %v2255 = vsel %vm837, %v2242, %v2244
  %v2256 = vsel %vm837, %v2244, %v2246
  %v2257 = vsel %vm837, %v2246, %v2248
  %v2258 = vsel %vm837, %v2248, %v2250
  %v2259 = vsel %vm837, %v2250, %v2252
  %v2260 = vsel %vm837, %v2252, %v2254
  %v2268 = vsel %vm86, %v2233, 0
  %2270 = vmatpush.msra.mxu0 0.0
  %2271 = vmatpush.msra.mxu0 0.0
  %2272 = vmatpush.msra.mxu0 0.0
  %2273 = vmatpush.msra.mxu0 0.0
  %2274 = vmatpush.msra.mxu0 0.0
  %2275 = vmatpush.msra.mxu0 0.0
  %2276 = vmatpush.msra.mxu0 0.0
  %2277 = vmatpush.msra.mxu0 0.0
  %2278 = vmatpush.msra.mxu0 0.0
  %2279 = vmatpush.msra.mxu0 0.0
  %2280 = vmatpush.msra.mxu0 0.0
  %2281 = vmatpush.msra.mxu0 0.0
  %2282 = vmatpush.msra.mxu0 0.0
  %2283 = vmatpush.msra.mxu0 0.0
  %2284 = vmatpush.msra.mxu0 0.0
  %2285 = vmatpush.msra.mxu0 %v2255
  %2286 = vmatmul.f32.gmra.mxu0 %v2268
  %v2287 = vpop.f32.mrf.mxu0
  %v2288 = vadd.f32 0.0, %v2287
  %2289 = vdwg.mxu0
  %2290 = vmatpush.msra.mxu0 0.0
  %2291 = vmatpush.msra.mxu0 0.0
  %2292 = vmatpush.msra.mxu0 0.0
  %2293 = vmatpush.msra.mxu0 0.0
  %2294 = vmatpush.msra.mxu0 0.0
  %2295 = vmatpush.msra.mxu0 0.0
  %2296 = vmatpush.msra.mxu0 0.0
  %2297 = vmatpush.msra.mxu0 0.0
  %2298 = vmatpush.msra.mxu0 0.0
  %2299 = vmatpush.msra.mxu0 0.0
  %2300 = vmatpush.msra.mxu0 0.0
  %2301 = vmatpush.msra.mxu0 0.0
  %2302 = vmatpush.msra.mxu0 0.0
  %2303 = vmatpush.msra.mxu0 0.0
  %2304 = vmatpush.msra.mxu0 0.0
  %2305 = vmatpush.msra.mxu0 %v2256
  %2306 = vmatmul.f32.gmra.mxu0 %v2268
  %v2307 = vpop.f32.mrf.mxu0
  %v2308 = vadd.f32 0.0, %v2307
  %2309 = vdwg.mxu0
  %2310 = vmatpush.msra.mxu0 0.0
  %2311 = vmatpush.msra.mxu0 0.0
  %2312 = vmatpush.msra.mxu0 0.0
  %2313 = vmatpush.msra.mxu0 0.0
  %2314 = vmatpush.msra.mxu0 0.0
  %2315 = vmatpush.msra.mxu0 0.0
  %2316 = vmatpush.msra.mxu0 0.0
  %2317 = vmatpush.msra.mxu0 0.0
  %2318 = vmatpush.msra.mxu0 0.0
  %2319 = vmatpush.msra.mxu0 0.0
  %2320 = vmatpush.msra.mxu0 0.0
  %2321 = vmatpush.msra.mxu0 0.0
  %2322 = vmatpush.msra.mxu0 0.0
  %2323 = vmatpush.msra.mxu0 0.0
  %2324 = vmatpush.msra.mxu0 0.0
  %2325 = vmatpush.msra.mxu0 %v2257
  %2326 = vmatmul.f32.gmra.mxu0 %v2268
  %v2327 = vpop.f32.mrf.mxu0
  %v2328 = vadd.f32 0.0, %v2327
  %2329 = vdwg.mxu0
  %2330 = vmatpush.msra.mxu0 0.0
  %2331 = vmatpush.msra.mxu0 0.0
  %2332 = vmatpush.msra.mxu0 0.0
  %2333 = vmatpush.msra.mxu0 0.0
  %2334 = vmatpush.msra.mxu0 0.0
  %2335 = vmatpush.msra.mxu0 0.0
  %2336 = vmatpush.msra.mxu0 0.0
  %2337 = vmatpush.msra.mxu0 0.0
  %2338 = vmatpush.msra.mxu0 0.0
  %2339 = vmatpush.msra.mxu0 0.0
  %2340 = vmatpush.msra.mxu0 0.0
  %2341 = vmatpush.msra.mxu0 0.0
  %2342 = vmatpush.msra.mxu0 0.0
  %2343 = vmatpush.msra.mxu0 0.0
  %2344 = vmatpush.msra.mxu0 0.0
  %2345 = vmatpush.msra.mxu0 %v2258
  %2346 = vmatmul.f32.gmra.mxu0 %v2268
  %v2347 = vpop.f32.mrf.mxu0
  %v2348 = vadd.f32 0.0, %v2347
  %2349 = vdwg.mxu0
  %2350 = vmatpush.msra.mxu0 0.0
  %2351 = vmatpush.msra.mxu0 0.0
  %2352 = vmatpush.msra.mxu0 0.0
  %2353 = vmatpush.msra.mxu0 0.0
  %2354 = vmatpush.msra.mxu0 0.0
  %2355 = vmatpush.msra.mxu0 0.0
  %2356 = vmatpush.msra.mxu0 0.0
  %2357 = vmatpush.msra.mxu0 0.0
  %2358 = vmatpush.msra.mxu0 0.0
  %2359 = vmatpush.msra.mxu0 0.0
  %2360 = vmatpush.msra.mxu0 0.0
  %2361 = vmatpush.msra.mxu0 0.0
  %2362 = vmatpush.msra.mxu0 0.0
  %2363 = vmatpush.msra.mxu0 0.0
  %2364 = vmatpush.msra.mxu0 0.0
  %2365 = vmatpush.msra.mxu0 %v2259
  %2366 = vmatmul.f32.gmra.mxu0 %v2268
  %v2367 = vpop.f32.mrf.mxu0
  %v2368 = vadd.f32 0.0, %v2367
  %2369 = vdwg.mxu0
  %2370 = vmatpush.msra.mxu0 0.0
  %2371 = vmatpush.msra.mxu0 0.0
  %2372 = vmatpush.msra.mxu0 0.0
  %2373 = vmatpush.msra.mxu0 0.0
  %2374 = vmatpush.msra.mxu0 0.0
  %2375 = vmatpush.msra.mxu0 0.0
  %2376 = vmatpush.msra.mxu0 0.0
  %2377 = vmatpush.msra.mxu0 0.0
  %2378 = vmatpush.msra.mxu0 0.0
  %2379 = vmatpush.msra.mxu0 0.0
  %2380 = vmatpush.msra.mxu0 0.0
  %2381 = vmatpush.msra.mxu0 0.0
  %2382 = vmatpush.msra.mxu0 0.0
  %2383 = vmatpush.msra.mxu0 0.0
  %2384 = vmatpush.msra.mxu0 0.0
  %2385 = vmatpush.msra.mxu0 %v2260
  %2386 = vmatmul.f32.gmra.mxu0 %v2268
  %v2387 = vpop.f32.mrf.mxu0
  %v2388 = vadd.f32 0.0, %v2387
  %2389 = vdwg.mxu0
  %v2390 = vadd.f32 %v2219, %v2288
  %v2391 = vadd.f32 %v2220, %v2308
  %v2392 = vadd.f32 %v2221, %v2328
  %v2393 = vadd.f32 %v2222, %v2348
  %v2394 = vadd.f32 %v2223, %v2368
  %v2395 = vadd.f32 %v2224, %v2388
  %s2396 = scalar_lea.vmem %s4, 48
  %v2397 = vld [vmem:[%s2396] sm:$0xff]
  %2398 = vrot.lane.b32.xlu0 %v2225, 111
  %v2399 = vpop.permute.xlu0 %2398
  %2400 = vrot.lane.b32.xlu0 %v2226, 111
  %v2401 = vpop.permute.xlu0 %2400
  %2402 = vrot.lane.b32.xlu0 %v2227, 111
  %v2403 = vpop.permute.xlu0 %2402
  %2404 = vrot.lane.b32.xlu0 %v2228, 111
  %v2405 = vpop.permute.xlu0 %2404
  %2406 = vrot.lane.b32.xlu0 %v2229, 111
  %v2407 = vpop.permute.xlu0 %2406
  %2408 = vrot.lane.b32.xlu0 %v2230, 111
  %v2409 = vpop.permute.xlu0 %2408
  %2410 = vrot.lane.b32.xlu0 %v2231, 111
  %v2411 = vpop.permute.xlu0 %2410
  %v2412 = vsel %vm995, %v2399, %v2401
  %v2413 = vsel %vm995, %v2401, %v2403
  %v2414 = vsel %vm995, %v2403, %v2405
  %v2415 = vsel %vm995, %v2405, %v2407
  %v2416 = vsel %vm995, %v2407, %v2409
  %v2417 = vsel %vm995, %v2409, %v2411
  %v2425 = vsel %vm86, %v2397, 0
  %2427 = vmatpush.msra.mxu0 0.0
  %2428 = vmatpush.msra.mxu0 0.0
  %2429 = vmatpush.msra.mxu0 0.0
  %2430 = vmatpush.msra.mxu0 0.0
  %2431 = vmatpush.msra.mxu0 0.0
  %2432 = vmatpush.msra.mxu0 0.0
  %2433 = vmatpush.msra.mxu0 0.0
  %2434 = vmatpush.msra.mxu0 0.0
  %2435 = vmatpush.msra.mxu0 0.0
  %2436 = vmatpush.msra.mxu0 0.0
  %2437 = vmatpush.msra.mxu0 0.0
  %2438 = vmatpush.msra.mxu0 0.0
  %2439 = vmatpush.msra.mxu0 0.0
  %2440 = vmatpush.msra.mxu0 0.0
  %2441 = vmatpush.msra.mxu0 0.0
  %2442 = vmatpush.msra.mxu0 %v2412
  %2443 = vmatmul.f32.gmra.mxu0 %v2425
  %v2444 = vpop.f32.mrf.mxu0
  %v2445 = vadd.f32 0.0, %v2444
  %2446 = vdwg.mxu0
  %2447 = vmatpush.msra.mxu0 0.0
  %2448 = vmatpush.msra.mxu0 0.0
  %2449 = vmatpush.msra.mxu0 0.0
  %2450 = vmatpush.msra.mxu0 0.0
  %2451 = vmatpush.msra.mxu0 0.0
  %2452 = vmatpush.msra.mxu0 0.0
  %2453 = vmatpush.msra.mxu0 0.0
  %2454 = vmatpush.msra.mxu0 0.0
  %2455 = vmatpush.msra.mxu0 0.0
  %2456 = vmatpush.msra.mxu0 0.0
  %2457 = vmatpush.msra.mxu0 0.0
  %2458 = vmatpush.msra.mxu0 0.0
  %2459 = vmatpush.msra.mxu0 0.0
  %2460 = vmatpush.msra.mxu0 0.0
  %2461 = vmatpush.msra.mxu0 0.0
  %2462 = vmatpush.msra.mxu0 %v2413
  %2463 = vmatmul.f32.gmra.mxu0 %v2425
  %v2464 = vpop.f32.mrf.mxu0
  %v2465 = vadd.f32 0.0, %v2464
  %2466 = vdwg.mxu0
  %2467 = vmatpush.msra.mxu0 0.0
  %2468 = vmatpush.msra.mxu0 0.0
  %2469 = vmatpush.msra.mxu0 0.0
  %2470 = vmatpush.msra.mxu0 0.0
  %2471 = vmatpush.msra.mxu0 0.0
  %2472 = vmatpush.msra.mxu0 0.0
  %2473 = vmatpush.msra.mxu0 0.0
  %2474 = vmatpush.msra.mxu0 0.0
  %2475 = vmatpush.msra.mxu0 0.0
  %2476 = vmatpush.msra.mxu0 0.0
  %2477 = vmatpush.msra.mxu0 0.0
  %2478 = vmatpush.msra.mxu0 0.0
  %2479 = vmatpush.msra.mxu0 0.0
  %2480 = vmatpush.msra.mxu0 0.0
  %2481 = vmatpush.msra.mxu0 0.0
  %2482 = vmatpush.msra.mxu0 %v2414
  %2483 = vmatmul.f32.gmra.mxu0 %v2425
  %v2484 = vpop.f32.mrf.mxu0
  %v2485 = vadd.f32 0.0, %v2484
  %2486 = vdwg.mxu0
  %2487 = vmatpush.msra.mxu0 0.0
  %2488 = vmatpush.msra.mxu0 0.0
  %2489 = vmatpush.msra.mxu0 0.0
  %2490 = vmatpush.msra.mxu0 0.0
  %2491 = vmatpush.msra.mxu0 0.0
  %2492 = vmatpush.msra.mxu0 0.0
  %2493 = vmatpush.msra.mxu0 0.0
  %2494 = vmatpush.msra.mxu0 0.0
  %2495 = vmatpush.msra.mxu0 0.0
  %2496 = vmatpush.msra.mxu0 0.0
  %2497 = vmatpush.msra.mxu0 0.0
  %2498 = vmatpush.msra.mxu0 0.0
  %2499 = vmatpush.msra.mxu0 0.0
  %2500 = vmatpush.msra.mxu0 0.0
  %2501 = vmatpush.msra.mxu0 0.0
  %2502 = vmatpush.msra.mxu0 %v2415
  %2503 = vmatmul.f32.gmra.mxu0 %v2425
  %v2504 = vpop.f32.mrf.mxu0
  %v2505 = vadd.f32 0.0, %v2504
  %2506 = vdwg.mxu0
  %2507 = vmatpush.msra.mxu0 0.0
  %2508 = vmatpush.msra.mxu0 0.0
  %2509 = vmatpush.msra.mxu0 0.0
  %2510 = vmatpush.msra.mxu0 0.0
  %2511 = vmatpush.msra.mxu0 0.0
  %2512 = vmatpush.msra.mxu0 0.0
  %2513 = vmatpush.msra.mxu0 0.0
  %2514 = vmatpush.msra.mxu0 0.0
  %2515 = vmatpush.msra.mxu0 0.0
  %2516 = vmatpush.msra.mxu0 0.0
  %2517 = vmatpush.msra.mxu0 0.0
  %2518 = vmatpush.msra.mxu0 0.0
  %2519 = vmatpush.msra.mxu0 0.0
  %2520 = vmatpush.msra.mxu0 0.0
  %2521 = vmatpush.msra.mxu0 0.0
  %2522 = vmatpush.msra.mxu0 %v2416
  %2523 = vmatmul.f32.gmra.mxu0 %v2425
  %v2524 = vpop.f32.mrf.mxu0
  %v2525 = vadd.f32 0.0, %v2524
  %2526 = vdwg.mxu0
  %2527 = vmatpush.msra.mxu0 0.0
  %2528 = vmatpush.msra.mxu0 0.0
  %2529 = vmatpush.msra.mxu0 0.0
  %2530 = vmatpush.msra.mxu0 0.0
  %2531 = vmatpush.msra.mxu0 0.0
  %2532 = vmatpush.msra.mxu0 0.0
  %2533 = vmatpush.msra.mxu0 0.0
  %2534 = vmatpush.msra.mxu0 0.0
  %2535 = vmatpush.msra.mxu0 0.0
  %2536 = vmatpush.msra.mxu0 0.0
  %2537 = vmatpush.msra.mxu0 0.0
  %2538 = vmatpush.msra.mxu0 0.0
  %2539 = vmatpush.msra.mxu0 0.0
  %2540 = vmatpush.msra.mxu0 0.0
  %2541 = vmatpush.msra.mxu0 0.0
  %2542 = vmatpush.msra.mxu0 %v2417
  %2543 = vmatmul.f32.gmra.mxu0 %v2425
  %v2544 = vpop.f32.mrf.mxu0
  %v2545 = vadd.f32 0.0, %v2544
  %2546 = vdwg.mxu0
  %v2547 = vadd.f32 %v2390, %v2445
  %v2548 = vadd.f32 %v2391, %v2465
  %v2549 = vadd.f32 %v2392, %v2485
  %v2550 = vadd.f32 %v2393, %v2505
  %v2551 = vadd.f32 %v2394, %v2525
  %v2552 = vadd.f32 %v2395, %v2545
  %s2553 = scalar_lea.vmem %s4, 56
  %v2554 = vld [vmem:[%s2553] sm:$0xff]
  %2555 = vrot.lane.b32.xlu0 %v2225, 110
  %v2556 = vpop.permute.xlu0 %2555
  %2557 = vrot.lane.b32.xlu0 %v2226, 110
  %v2558 = vpop.permute.xlu0 %2557
  %2559 = vrot.lane.b32.xlu0 %v2227, 110
  %v2560 = vpop.permute.xlu0 %2559
  %2561 = vrot.lane.b32.xlu0 %v2228, 110
  %v2562 = vpop.permute.xlu0 %2561
  %2563 = vrot.lane.b32.xlu0 %v2229, 110
  %v2564 = vpop.permute.xlu0 %2563
  %2565 = vrot.lane.b32.xlu0 %v2230, 110
  %v2566 = vpop.permute.xlu0 %2565
  %2567 = vrot.lane.b32.xlu0 %v2231, 110
  %v2568 = vpop.permute.xlu0 %2567
  %v2569 = vsel %vm1153, %v2556, %v2558
  %v2570 = vsel %vm1153, %v2558, %v2560
  %v2571 = vsel %vm1153, %v2560, %v2562
  %v2572 = vsel %vm1153, %v2562, %v2564
  %v2573 = vsel %vm1153, %v2564, %v2566
  %v2574 = vsel %vm1153, %v2566, %v2568
  %v2582 = vsel %vm86, %v2554, 0
  %2584 = vmatpush.msra.mxu0 0.0
  %2585 = vmatpush.msra.mxu0 0.0
  %2586 = vmatpush.msra.mxu0 0.0
  %2587 = vmatpush.msra.mxu0 0.0
  %2588 = vmatpush.msra.mxu0 0.0
  %2589 = vmatpush.msra.mxu0 0.0
  %2590 = vmatpush.msra.mxu0 0.0
  %2591 = vmatpush.msra.mxu0 0.0
  %2592 = vmatpush.msra.mxu0 0.0
  %2593 = vmatpush.msra.mxu0 0.0
  %2594 = vmatpush.msra.mxu0 0.0
  %2595 = vmatpush.msra.mxu0 0.0
  %2596 = vmatpush.msra.mxu0 0.0
  %2597 = vmatpush.msra.mxu0 0.0
  %2598 = vmatpush.msra.mxu0 0.0
  %2599 = vmatpush.msra.mxu0 %v2569
  %2600 = vmatmul.f32.gmra.mxu0 %v2582
  %v2601 = vpop.f32.mrf.mxu0
  %v2602 = vadd.f32 0.0, %v2601
  %2603 = vdwg.mxu0
  %2604 = vmatpush.msra.mxu0 0.0
  %2605 = vmatpush.msra.mxu0 0.0
  %2606 = vmatpush.msra.mxu0 0.0
  %2607 = vmatpush.msra.mxu0 0.0
  %2608 = vmatpush.msra.mxu0 0.0
  %2609 = vmatpush.msra.mxu0 0.0
  %2610 = vmatpush.msra.mxu0 0.0
  %2611 = vmatpush.msra.mxu0 0.0
  %2612 = vmatpush.msra.mxu0 0.0
  %2613 = vmatpush.msra.mxu0 0.0
  %2614 = vmatpush.msra.mxu0 0.0
  %2615 = vmatpush.msra.mxu0 0.0
  %2616 = vmatpush.msra.mxu0 0.0
  %2617 = vmatpush.msra.mxu0 0.0
  %2618 = vmatpush.msra.mxu0 0.0
  %2619 = vmatpush.msra.mxu0 %v2570
  %2620 = vmatmul.f32.gmra.mxu0 %v2582
  %v2621 = vpop.f32.mrf.mxu0
  %v2622 = vadd.f32 0.0, %v2621
  %2623 = vdwg.mxu0
  %2624 = vmatpush.msra.mxu0 0.0
  %2625 = vmatpush.msra.mxu0 0.0
  %2626 = vmatpush.msra.mxu0 0.0
  %2627 = vmatpush.msra.mxu0 0.0
  %2628 = vmatpush.msra.mxu0 0.0
  %2629 = vmatpush.msra.mxu0 0.0
  %2630 = vmatpush.msra.mxu0 0.0
  %2631 = vmatpush.msra.mxu0 0.0
  %2632 = vmatpush.msra.mxu0 0.0
  %2633 = vmatpush.msra.mxu0 0.0
  %2634 = vmatpush.msra.mxu0 0.0
  %2635 = vmatpush.msra.mxu0 0.0
  %2636 = vmatpush.msra.mxu0 0.0
  %2637 = vmatpush.msra.mxu0 0.0
  %2638 = vmatpush.msra.mxu0 0.0
  %2639 = vmatpush.msra.mxu0 %v2571
  %2640 = vmatmul.f32.gmra.mxu0 %v2582
  %v2641 = vpop.f32.mrf.mxu0
  %v2642 = vadd.f32 0.0, %v2641
  %2643 = vdwg.mxu0
  %2644 = vmatpush.msra.mxu0 0.0
  %2645 = vmatpush.msra.mxu0 0.0
  %2646 = vmatpush.msra.mxu0 0.0
  %2647 = vmatpush.msra.mxu0 0.0
  %2648 = vmatpush.msra.mxu0 0.0
  %2649 = vmatpush.msra.mxu0 0.0
  %2650 = vmatpush.msra.mxu0 0.0
  %2651 = vmatpush.msra.mxu0 0.0
  %2652 = vmatpush.msra.mxu0 0.0
  %2653 = vmatpush.msra.mxu0 0.0
  %2654 = vmatpush.msra.mxu0 0.0
  %2655 = vmatpush.msra.mxu0 0.0
  %2656 = vmatpush.msra.mxu0 0.0
  %2657 = vmatpush.msra.mxu0 0.0
  %2658 = vmatpush.msra.mxu0 0.0
  %2659 = vmatpush.msra.mxu0 %v2572
  %2660 = vmatmul.f32.gmra.mxu0 %v2582
  %v2661 = vpop.f32.mrf.mxu0
  %v2662 = vadd.f32 0.0, %v2661
  %2663 = vdwg.mxu0
  %2664 = vmatpush.msra.mxu0 0.0
  %2665 = vmatpush.msra.mxu0 0.0
  %2666 = vmatpush.msra.mxu0 0.0
  %2667 = vmatpush.msra.mxu0 0.0
  %2668 = vmatpush.msra.mxu0 0.0
  %2669 = vmatpush.msra.mxu0 0.0
  %2670 = vmatpush.msra.mxu0 0.0
  %2671 = vmatpush.msra.mxu0 0.0
  %2672 = vmatpush.msra.mxu0 0.0
  %2673 = vmatpush.msra.mxu0 0.0
  %2674 = vmatpush.msra.mxu0 0.0
  %2675 = vmatpush.msra.mxu0 0.0
  %2676 = vmatpush.msra.mxu0 0.0
  %2677 = vmatpush.msra.mxu0 0.0
  %2678 = vmatpush.msra.mxu0 0.0
  %2679 = vmatpush.msra.mxu0 %v2573
  %2680 = vmatmul.f32.gmra.mxu0 %v2582
  %v2681 = vpop.f32.mrf.mxu0
  %v2682 = vadd.f32 0.0, %v2681
  %2683 = vdwg.mxu0
  %2684 = vmatpush.msra.mxu0 0.0
  %2685 = vmatpush.msra.mxu0 0.0
  %2686 = vmatpush.msra.mxu0 0.0
  %2687 = vmatpush.msra.mxu0 0.0
  %2688 = vmatpush.msra.mxu0 0.0
  %2689 = vmatpush.msra.mxu0 0.0
  %2690 = vmatpush.msra.mxu0 0.0
  %2691 = vmatpush.msra.mxu0 0.0
  %2692 = vmatpush.msra.mxu0 0.0
  %2693 = vmatpush.msra.mxu0 0.0
  %2694 = vmatpush.msra.mxu0 0.0
  %2695 = vmatpush.msra.mxu0 0.0
  %2696 = vmatpush.msra.mxu0 0.0
  %2697 = vmatpush.msra.mxu0 0.0
  %2698 = vmatpush.msra.mxu0 0.0
  %2699 = vmatpush.msra.mxu0 %v2574
  %2700 = vmatmul.f32.gmra.mxu0 %v2582
  %v2701 = vpop.f32.mrf.mxu0
  %v2702 = vadd.f32 0.0, %v2701
  %2703 = vdwg.mxu0
  %v2704 = vadd.f32 %v2547, %v2602
  %v2705 = vadd.f32 %v2548, %v2622
  %v2706 = vadd.f32 %v2549, %v2642
  %v2707 = vadd.f32 %v2550, %v2662
  %v2708 = vadd.f32 %v2551, %v2682
  %v2709 = vadd.f32 %v2552, %v2702
  %s2710 = scalar_lea.vmem %s4, 64
  %v2711 = vld [vmem:[%s2710] sm:$0xff]
  %2712 = vrot.lane.b32.xlu0 %v2225, 109
  %v2713 = vpop.permute.xlu0 %2712
  %2714 = vrot.lane.b32.xlu0 %v2226, 109
  %v2715 = vpop.permute.xlu0 %2714
  %2716 = vrot.lane.b32.xlu0 %v2227, 109
  %v2717 = vpop.permute.xlu0 %2716
  %2718 = vrot.lane.b32.xlu0 %v2228, 109
  %v2719 = vpop.permute.xlu0 %2718
  %2720 = vrot.lane.b32.xlu0 %v2229, 109
  %v2721 = vpop.permute.xlu0 %2720
  %2722 = vrot.lane.b32.xlu0 %v2230, 109
  %v2723 = vpop.permute.xlu0 %2722
  %2724 = vrot.lane.b32.xlu0 %v2231, 109
  %v2725 = vpop.permute.xlu0 %2724
  %v2726 = vsel %vm1311, %v2713, %v2715
  %v2727 = vsel %vm1311, %v2715, %v2717
  %v2728 = vsel %vm1311, %v2717, %v2719
  %v2729 = vsel %vm1311, %v2719, %v2721
  %v2730 = vsel %vm1311, %v2721, %v2723
  %v2731 = vsel %vm1311, %v2723, %v2725
  %v2739 = vsel %vm86, %v2711, 0
  %2741 = vmatpush.msra.mxu0 0.0
  %2742 = vmatpush.msra.mxu0 0.0
  %2743 = vmatpush.msra.mxu0 0.0
  %2744 = vmatpush.msra.mxu0 0.0
  %2745 = vmatpush.msra.mxu0 0.0
  %2746 = vmatpush.msra.mxu0 0.0
  %2747 = vmatpush.msra.mxu0 0.0
  %2748 = vmatpush.msra.mxu0 0.0
  %2749 = vmatpush.msra.mxu0 0.0
  %2750 = vmatpush.msra.mxu0 0.0
  %2751 = vmatpush.msra.mxu0 0.0
  %2752 = vmatpush.msra.mxu0 0.0
  %2753 = vmatpush.msra.mxu0 0.0
  %2754 = vmatpush.msra.mxu0 0.0
  %2755 = vmatpush.msra.mxu0 0.0
  %2756 = vmatpush.msra.mxu0 %v2726
  %2757 = vmatmul.f32.gmra.mxu0 %v2739
  %v2758 = vpop.f32.mrf.mxu0
  %v2759 = vadd.f32 0.0, %v2758
  %2760 = vdwg.mxu0
  %2761 = vmatpush.msra.mxu0 0.0
  %2762 = vmatpush.msra.mxu0 0.0
  %2763 = vmatpush.msra.mxu0 0.0
  %2764 = vmatpush.msra.mxu0 0.0
  %2765 = vmatpush.msra.mxu0 0.0
  %2766 = vmatpush.msra.mxu0 0.0
  %2767 = vmatpush.msra.mxu0 0.0
  %2768 = vmatpush.msra.mxu0 0.0
  %2769 = vmatpush.msra.mxu0 0.0
  %2770 = vmatpush.msra.mxu0 0.0
  %2771 = vmatpush.msra.mxu0 0.0
  %2772 = vmatpush.msra.mxu0 0.0
  %2773 = vmatpush.msra.mxu0 0.0
  %2774 = vmatpush.msra.mxu0 0.0
  %2775 = vmatpush.msra.mxu0 0.0
  %2776 = vmatpush.msra.mxu0 %v2727
  %2777 = vmatmul.f32.gmra.mxu0 %v2739
  %v2778 = vpop.f32.mrf.mxu0
  %v2779 = vadd.f32 0.0, %v2778
  %2780 = vdwg.mxu0
  %2781 = vmatpush.msra.mxu0 0.0
  %2782 = vmatpush.msra.mxu0 0.0
  %2783 = vmatpush.msra.mxu0 0.0
  %2784 = vmatpush.msra.mxu0 0.0
  %2785 = vmatpush.msra.mxu0 0.0
  %2786 = vmatpush.msra.mxu0 0.0
  %2787 = vmatpush.msra.mxu0 0.0
  %2788 = vmatpush.msra.mxu0 0.0
  %2789 = vmatpush.msra.mxu0 0.0
  %2790 = vmatpush.msra.mxu0 0.0
  %2791 = vmatpush.msra.mxu0 0.0
  %2792 = vmatpush.msra.mxu0 0.0
  %2793 = vmatpush.msra.mxu0 0.0
  %2794 = vmatpush.msra.mxu0 0.0
  %2795 = vmatpush.msra.mxu0 0.0
  %2796 = vmatpush.msra.mxu0 %v2728
  %2797 = vmatmul.f32.gmra.mxu0 %v2739
  %v2798 = vpop.f32.mrf.mxu0
  %v2799 = vadd.f32 0.0, %v2798
  %2800 = vdwg.mxu0
  %2801 = vmatpush.msra.mxu0 0.0
  %2802 = vmatpush.msra.mxu0 0.0
  %2803 = vmatpush.msra.mxu0 0.0
  %2804 = vmatpush.msra.mxu0 0.0
  %2805 = vmatpush.msra.mxu0 0.0
  %2806 = vmatpush.msra.mxu0 0.0
  %2807 = vmatpush.msra.mxu0 0.0
  %2808 = vmatpush.msra.mxu0 0.0
  %2809 = vmatpush.msra.mxu0 0.0
  %2810 = vmatpush.msra.mxu0 0.0
  %2811 = vmatpush.msra.mxu0 0.0
  %2812 = vmatpush.msra.mxu0 0.0
  %2813 = vmatpush.msra.mxu0 0.0
  %2814 = vmatpush.msra.mxu0 0.0
  %2815 = vmatpush.msra.mxu0 0.0
  %2816 = vmatpush.msra.mxu0 %v2729
  %2817 = vmatmul.f32.gmra.mxu0 %v2739
  %v2818 = vpop.f32.mrf.mxu0
  %v2819 = vadd.f32 0.0, %v2818
  %2820 = vdwg.mxu0
  %2821 = vmatpush.msra.mxu0 0.0
  %2822 = vmatpush.msra.mxu0 0.0
  %2823 = vmatpush.msra.mxu0 0.0
  %2824 = vmatpush.msra.mxu0 0.0
  %2825 = vmatpush.msra.mxu0 0.0
  %2826 = vmatpush.msra.mxu0 0.0
  %2827 = vmatpush.msra.mxu0 0.0
  %2828 = vmatpush.msra.mxu0 0.0
  %2829 = vmatpush.msra.mxu0 0.0
  %2830 = vmatpush.msra.mxu0 0.0
  %2831 = vmatpush.msra.mxu0 0.0
  %2832 = vmatpush.msra.mxu0 0.0
  %2833 = vmatpush.msra.mxu0 0.0
  %2834 = vmatpush.msra.mxu0 0.0
  %2835 = vmatpush.msra.mxu0 0.0
  %2836 = vmatpush.msra.mxu0 %v2730
  %2837 = vmatmul.f32.gmra.mxu0 %v2739
  %v2838 = vpop.f32.mrf.mxu0
  %v2839 = vadd.f32 0.0, %v2838
  %2840 = vdwg.mxu0
  %2841 = vmatpush.msra.mxu0 0.0
  %2842 = vmatpush.msra.mxu0 0.0
  %2843 = vmatpush.msra.mxu0 0.0
  %2844 = vmatpush.msra.mxu0 0.0
  %2845 = vmatpush.msra.mxu0 0.0
  %2846 = vmatpush.msra.mxu0 0.0
  %2847 = vmatpush.msra.mxu0 0.0
  %2848 = vmatpush.msra.mxu0 0.0
  %2849 = vmatpush.msra.mxu0 0.0
  %2850 = vmatpush.msra.mxu0 0.0
  %2851 = vmatpush.msra.mxu0 0.0
  %2852 = vmatpush.msra.mxu0 0.0
  %2853 = vmatpush.msra.mxu0 0.0
  %2854 = vmatpush.msra.mxu0 0.0
  %2855 = vmatpush.msra.mxu0 0.0
  %2856 = vmatpush.msra.mxu0 %v2731
  %2857 = vmatmul.f32.gmra.mxu0 %v2739
  %v2858 = vpop.f32.mrf.mxu0
  %v2859 = vadd.f32 0.0, %v2858
  %2860 = vdwg.mxu0
  %v2861 = vadd.f32 %v2704, %v2759
  %v2862 = vadd.f32 %v2705, %v2779
  %v2863 = vadd.f32 %v2706, %v2799
  %v2864 = vadd.f32 %v2707, %v2819
  %v2865 = vadd.f32 %v2708, %v2839
  %v2866 = vadd.f32 %v2709, %v2859
  %v2867 = vld [vmem:[%s5] sm:$0xff]
  %v2868 = vld [vmem:[%s6] sm:$0xff]
  %v2869 = vld [vmem:[%s7] sm:$0xff]
  %2871 = vset.pattern.permute.xlu0 0
  %2872 = vperm.xlu0 %2871, %v2867
  %v2873 = vpop.permute.xlu0 %2872
  %v2875 = vadd.f32 %v2861, %v2873
  %v2876 = vadd.f32 %v2862, %v2873
  %v2877 = vadd.f32 %v2863, %v2873
  %v2878 = vadd.f32 %v2864, %v2873
  %v2879 = vadd.f32 %v2865, %v2873
  %v2880 = vadd.f32 %v2866, %v2873
  %v2882 = vperm.slane %v41, 0
  %v2883 = vperm.slane %v41, 1
  %v2884 = vperm.slane %v41, 2
  %v2885 = vperm.slane %v41, 3
  %v2886 = vperm.slane %v41, 4
  %v2887 = vperm.slane %v41, 5
  %v2894 = vmul.f32 %v2875, %v2882
  %v2895 = vmul.f32 %v2876, %v2883
  %v2896 = vmul.f32 %v2877, %v2884
  %v2897 = vmul.f32 %v2878, %v2885
  %v2898 = vmul.f32 %v2879, %v2886
  %v2899 = vmul.f32 %v2880, %v2887
  %v2900 = vadd.f32 %v2894, %v2895
  %v2901 = vadd.f32 %v2900, %v2896
  %v2902 = vadd.f32 %v2901, %v2897
  %v2903 = vadd.f32 %v2902, %v2898
  %v2904 = vadd.f32 %v2903, %v2899
  %2905 = vadd.xlane.f32.xlu0 %v2904
  %v2906 = vpop.xlane.xlu0 %2905
  %v2907 = vmul.f32 %v2906, 0.001953125
  %v2908 = vsub.f32 %v2894, %v2907
  %v2909 = vsub.f32 %v2895, %v2907
  %v2910 = vsub.f32 %v2896, %v2907
  %v2911 = vsub.f32 %v2897, %v2907
  %v2912 = vsub.f32 %v2898, %v2907
  %v2913 = vsub.f32 %v2899, %v2907
  %v2914 = vmul.f32 %v2908, %v2882
  %v2915 = vmul.f32 %v2909, %v2883
  %v2916 = vmul.f32 %v2910, %v2884
  %v2917 = vmul.f32 %v2911, %v2885
  %v2918 = vmul.f32 %v2912, %v2886
  %v2919 = vmul.f32 %v2913, %v2887
  %v2920 = vmul.f32 %v2914, %v2914
  %v2921 = vmul.f32 %v2915, %v2915
  %v2922 = vmul.f32 %v2916, %v2916
  %v2923 = vmul.f32 %v2917, %v2917
  %v2924 = vmul.f32 %v2918, %v2918
  %v2925 = vmul.f32 %v2919, %v2919
  %v2926 = vadd.f32 %v2920, %v2921
  %v2927 = vadd.f32 %v2926, %v2922
  %v2928 = vadd.f32 %v2927, %v2923
  %v2929 = vadd.f32 %v2928, %v2924
  %v2930 = vadd.f32 %v2929, %v2925
  %2931 = vadd.xlane.f32.xlu0 %v2930
  %v2932 = vpop.xlane.xlu0 %2931
  %v2933 = vmul.f32 %v2932, 0.001953125
  %v2934 = vadd.f32 %v2933, 1e-05
  %v2935 = vrsqrt.pop %v2934
  %v2936 = vmul.f32 %v2935, %v2934
  %v2937 = vmul.f32 %v2936, %v2935
  %v2938 = vmul.f32 0.5, %v2937
  %v2939 = vsub.f32 1.5, %v2938
  %v2940 = vmul.f32 %v2935, %v2939
  %vm2941 = vweird.f32 %v2934
  %vm2942 = vweird.f32 %v2935
  %vm2943 = vmor %vm2941, %vm2942
  %v2944 = vsel %vm2943, %v2935, %v2940
  %v2945 = vmul.f32 %v2914, %v2944
  %v2946 = vmul.f32 %v2915, %v2944
  %v2947 = vmul.f32 %v2916, %v2944
  %v2948 = vmul.f32 %v2917, %v2944
  %v2949 = vmul.f32 %v2918, %v2944
  %v2950 = vmul.f32 %v2919, %v2944
  %2952 = vset.pattern.permute.xlu0 0
  %2953 = vperm.xlu0 %2952, %v2868
  %v2954 = vpop.permute.xlu0 %2953
  %v2956 = vmul.f32 %v2945, %v2954
  %v2957 = vmul.f32 %v2946, %v2954
  %v2958 = vmul.f32 %v2947, %v2954
  %v2959 = vmul.f32 %v2948, %v2954
  %v2960 = vmul.f32 %v2949, %v2954
  %v2961 = vmul.f32 %v2950, %v2954
  %2963 = vset.pattern.permute.xlu0 0
  %2964 = vperm.xlu0 %2963, %v2869
  %v2965 = vpop.permute.xlu0 %2964
  %v2967 = vadd.f32 %v2956, %v2965
  %v2968 = vadd.f32 %v2957, %v2965
  %v2969 = vadd.f32 %v2958, %v2965
  %v2970 = vadd.f32 %v2959, %v2965
  %v2971 = vadd.f32 %v2960, %v2965
  %v2972 = vadd.f32 %v2961, %v2965
  %v2973 = vmax.f32 %v2967, 0.0
  %v2974 = vmax.f32 %v2968, 0.0
  %v2975 = vmax.f32 %v2969, 0.0
  %v2976 = vmax.f32 %v2970, 0.0
  %v2977 = vmax.f32 %v2971, 0.0
  %v2978 = vmax.f32 %v2972, 0.0
  %v2979 = vmul.f32 %v2973, %v2882
  %v2980 = vmul.f32 %v2974, %v2883
  %v2981 = vmul.f32 %v2975, %v2884
  %v2982 = vmul.f32 %v2976, %v2885
  %v2983 = vmul.f32 %v2977, %v2886
  %v2984 = vmul.f32 %v2978, %v2887
  %2985 = vst [vmem:[#allocation2] sm:$0xff] 0.0
  %2986 = vst [vmem:[#allocation2 + $0x8] sm:$0xff] 0.0
  %2987 = vst [vmem:[#allocation2 + $0x10] sm:$0xff] 0.0
  %2988 = vst [vmem:[#allocation2 + $0x18] sm:$0xff] 0.0
  %2989 = vst [vmem:[#allocation2 + $0x20] sm:$0xff] 0.0
  %2990 = vst [vmem:[#allocation2 + $0x28] sm:$0xff] 0.0
  %2991 = vst [vmem:[#allocation2 + $0x30] sm:$0xff] 0.0
  %2992 = vst [vmem:[#allocation2 + $0x38] sm:$0xff] 0.0
  %2993 = vst [vmem:[#allocation2 + $0x8] sm:$0xff] %v2979
  %2994 = vst [vmem:[#allocation2 + $0x10] sm:$0xff] %v2980
  %2995 = vst [vmem:[#allocation2 + $0x18] sm:$0xff] %v2981
  %2996 = vst [vmem:[#allocation2 + $0x20] sm:$0xff] %v2982
  %2997 = vst [vmem:[#allocation2 + $0x28] sm:$0xff] %v2983
  %2998 = vst [vmem:[#allocation2 + $0x30] sm:$0xff] %v2984
  %v2999 = vld [vmem:[#allocation2] sm:$0xff]
  %v3000 = vld [vmem:[#allocation2 + $0x8] sm:$0xff]
  %v3001 = vld [vmem:[#allocation2 + $0x10] sm:$0xff]
  %v3002 = vld [vmem:[#allocation2 + $0x18] sm:$0xff]
  %v3003 = vld [vmem:[#allocation2 + $0x20] sm:$0xff]
  %v3004 = vld [vmem:[#allocation2 + $0x28] sm:$0xff]
  %v3005 = vld [vmem:[#allocation2 + $0x30] sm:$0xff]
  %v3006 = vld [vmem:[%s8] sm:$0xff]
  %s3007 = scalar_lea.vmem %s8, 8
  %v3008 = vld [vmem:[%s3007] sm:$0xff]
  %3016 = vrot.lane.b32.xlu0 %v2999, 18
  %v3017 = vpop.permute.xlu0 %3016
  %3018 = vrot.lane.b32.xlu0 %v3000, 18
  %v3019 = vpop.permute.xlu0 %3018
  %3020 = vrot.lane.b32.xlu0 %v3001, 18
  %v3021 = vpop.permute.xlu0 %3020
  %3022 = vrot.lane.b32.xlu0 %v3002, 18
  %v3023 = vpop.permute.xlu0 %3022
  %3024 = vrot.lane.b32.xlu0 %v3003, 18
  %v3025 = vpop.permute.xlu0 %3024
  %3026 = vrot.lane.b32.xlu0 %v3004, 18
  %v3027 = vpop.permute.xlu0 %3026
  %3028 = vrot.lane.b32.xlu0 %v3005, 18
  %v3029 = vpop.permute.xlu0 %3028
  %v3030 = vsel %vm73, %v3017, %v3019
  %v3031 = vsel %vm73, %v3019, %v3021
  %v3032 = vsel %vm73, %v3021, %v3023
  %v3033 = vsel %vm73, %v3023, %v3025
  %v3034 = vsel %vm73, %v3025, %v3027
  %v3035 = vsel %vm73, %v3027, %v3029
  %v3043 = vsel %vm86, %v3008, 0
  %3045 = vmatpush.msra.mxu0 0.0
  %3046 = vmatpush.msra.mxu0 0.0
  %3047 = vmatpush.msra.mxu0 0.0
  %3048 = vmatpush.msra.mxu0 0.0
  %3049 = vmatpush.msra.mxu0 0.0
  %3050 = vmatpush.msra.mxu0 0.0
  %3051 = vmatpush.msra.mxu0 0.0
  %3052 = vmatpush.msra.mxu0 0.0
  %3053 = vmatpush.msra.mxu0 0.0
  %3054 = vmatpush.msra.mxu0 0.0
  %3055 = vmatpush.msra.mxu0 0.0
  %3056 = vmatpush.msra.mxu0 0.0
  %3057 = vmatpush.msra.mxu0 0.0
  %3058 = vmatpush.msra.mxu0 0.0
  %3059 = vmatpush.msra.mxu0 0.0
  %3060 = vmatpush.msra.mxu0 %v3030
  %3061 = vmatmul.f32.gmra.mxu0 %v3043
  %v3062 = vpop.f32.mrf.mxu0
  %v3063 = vadd.f32 0.0, %v3062
  %3064 = vdwg.mxu0
  %3065 = vmatpush.msra.mxu0 0.0
  %3066 = vmatpush.msra.mxu0 0.0
  %3067 = vmatpush.msra.mxu0 0.0
  %3068 = vmatpush.msra.mxu0 0.0
  %3069 = vmatpush.msra.mxu0 0.0
  %3070 = vmatpush.msra.mxu0 0.0
  %3071 = vmatpush.msra.mxu0 0.0
  %3072 = vmatpush.msra.mxu0 0.0
  %3073 = vmatpush.msra.mxu0 0.0
  %3074 = vmatpush.msra.mxu0 0.0
  %3075 = vmatpush.msra.mxu0 0.0
  %3076 = vmatpush.msra.mxu0 0.0
  %3077 = vmatpush.msra.mxu0 0.0
  %3078 = vmatpush.msra.mxu0 0.0
  %3079 = vmatpush.msra.mxu0 0.0
  %3080 = vmatpush.msra.mxu0 %v3031
  %3081 = vmatmul.f32.gmra.mxu0 %v3043
  %v3082 = vpop.f32.mrf.mxu0
  %v3083 = vadd.f32 0.0, %v3082
  %3084 = vdwg.mxu0
  %3085 = vmatpush.msra.mxu0 0.0
  %3086 = vmatpush.msra.mxu0 0.0
  %3087 = vmatpush.msra.mxu0 0.0
  %3088 = vmatpush.msra.mxu0 0.0
  %3089 = vmatpush.msra.mxu0 0.0
  %3090 = vmatpush.msra.mxu0 0.0
  %3091 = vmatpush.msra.mxu0 0.0
  %3092 = vmatpush.msra.mxu0 0.0
  %3093 = vmatpush.msra.mxu0 0.0
  %3094 = vmatpush.msra.mxu0 0.0
  %3095 = vmatpush.msra.mxu0 0.0
  %3096 = vmatpush.msra.mxu0 0.0
  %3097 = vmatpush.msra.mxu0 0.0
  %3098 = vmatpush.msra.mxu0 0.0
  %3099 = vmatpush.msra.mxu0 0.0
  %3100 = vmatpush.msra.mxu0 %v3032
  %3101 = vmatmul.f32.gmra.mxu0 %v3043
  %v3102 = vpop.f32.mrf.mxu0
  %v3103 = vadd.f32 0.0, %v3102
  %3104 = vdwg.mxu0
  %3105 = vmatpush.msra.mxu0 0.0
  %3106 = vmatpush.msra.mxu0 0.0
  %3107 = vmatpush.msra.mxu0 0.0
  %3108 = vmatpush.msra.mxu0 0.0
  %3109 = vmatpush.msra.mxu0 0.0
  %3110 = vmatpush.msra.mxu0 0.0
  %3111 = vmatpush.msra.mxu0 0.0
  %3112 = vmatpush.msra.mxu0 0.0
  %3113 = vmatpush.msra.mxu0 0.0
  %3114 = vmatpush.msra.mxu0 0.0
  %3115 = vmatpush.msra.mxu0 0.0
  %3116 = vmatpush.msra.mxu0 0.0
  %3117 = vmatpush.msra.mxu0 0.0
  %3118 = vmatpush.msra.mxu0 0.0
  %3119 = vmatpush.msra.mxu0 0.0
  %3120 = vmatpush.msra.mxu0 %v3033
  %3121 = vmatmul.f32.gmra.mxu0 %v3043
  %v3122 = vpop.f32.mrf.mxu0
  %v3123 = vadd.f32 0.0, %v3122
  %3124 = vdwg.mxu0
  %3125 = vmatpush.msra.mxu0 0.0
  %3126 = vmatpush.msra.mxu0 0.0
  %3127 = vmatpush.msra.mxu0 0.0
  %3128 = vmatpush.msra.mxu0 0.0
  %3129 = vmatpush.msra.mxu0 0.0
  %3130 = vmatpush.msra.mxu0 0.0
  %3131 = vmatpush.msra.mxu0 0.0
  %3132 = vmatpush.msra.mxu0 0.0
  %3133 = vmatpush.msra.mxu0 0.0
  %3134 = vmatpush.msra.mxu0 0.0
  %3135 = vmatpush.msra.mxu0 0.0
  %3136 = vmatpush.msra.mxu0 0.0
  %3137 = vmatpush.msra.mxu0 0.0
  %3138 = vmatpush.msra.mxu0 0.0
  %3139 = vmatpush.msra.mxu0 0.0
  %3140 = vmatpush.msra.mxu0 %v3034
  %3141 = vmatmul.f32.gmra.mxu0 %v3043
  %v3142 = vpop.f32.mrf.mxu0
  %v3143 = vadd.f32 0.0, %v3142
  %3144 = vdwg.mxu0
  %3145 = vmatpush.msra.mxu0 0.0
  %3146 = vmatpush.msra.mxu0 0.0
  %3147 = vmatpush.msra.mxu0 0.0
  %3148 = vmatpush.msra.mxu0 0.0
  %3149 = vmatpush.msra.mxu0 0.0
  %3150 = vmatpush.msra.mxu0 0.0
  %3151 = vmatpush.msra.mxu0 0.0
  %3152 = vmatpush.msra.mxu0 0.0
  %3153 = vmatpush.msra.mxu0 0.0
  %3154 = vmatpush.msra.mxu0 0.0
  %3155 = vmatpush.msra.mxu0 0.0
  %3156 = vmatpush.msra.mxu0 0.0
  %3157 = vmatpush.msra.mxu0 0.0
  %3158 = vmatpush.msra.mxu0 0.0
  %3159 = vmatpush.msra.mxu0 0.0
  %3160 = vmatpush.msra.mxu0 %v3035
  %3161 = vmatmul.f32.gmra.mxu0 %v3043
  %v3162 = vpop.f32.mrf.mxu0
  %v3163 = vadd.f32 0.0, %v3162
  %3164 = vdwg.mxu0
  %3165 = vrot.lane.b32.xlu0 %v2999, 19
  %v3166 = vpop.permute.xlu0 %3165
  %3167 = vrot.lane.b32.xlu0 %v3000, 19
  %v3168 = vpop.permute.xlu0 %3167
  %3169 = vrot.lane.b32.xlu0 %v3001, 19
  %v3170 = vpop.permute.xlu0 %3169
  %3171 = vrot.lane.b32.xlu0 %v3002, 19
  %v3172 = vpop.permute.xlu0 %3171
  %3173 = vrot.lane.b32.xlu0 %v3003, 19
  %v3174 = vpop.permute.xlu0 %3173
  %3175 = vrot.lane.b32.xlu0 %v3004, 19
  %v3176 = vpop.permute.xlu0 %3175
  %3177 = vrot.lane.b32.xlu0 %v3005, 19
  %v3178 = vpop.permute.xlu0 %3177
  %v3179 = vsel %vm224, %v3166, %v3168
  %v3180 = vsel %vm224, %v3168, %v3170
  %v3181 = vsel %vm224, %v3170, %v3172
  %v3182 = vsel %vm224, %v3172, %v3174
  %v3183 = vsel %vm224, %v3174, %v3176
  %v3184 = vsel %vm224, %v3176, %v3178
  %v3192 = vsel %vm86, %v3006, 0
  %3194 = vmatpush.msra.mxu0 0.0
  %3195 = vmatpush.msra.mxu0 0.0
  %3196 = vmatpush.msra.mxu0 0.0
  %3197 = vmatpush.msra.mxu0 0.0
  %3198 = vmatpush.msra.mxu0 0.0
  %3199 = vmatpush.msra.mxu0 0.0
  %3200 = vmatpush.msra.mxu0 0.0
  %3201 = vmatpush.msra.mxu0 0.0
  %3202 = vmatpush.msra.mxu0 0.0
  %3203 = vmatpush.msra.mxu0 0.0
  %3204 = vmatpush.msra.mxu0 0.0
  %3205 = vmatpush.msra.mxu0 0.0
  %3206 = vmatpush.msra.mxu0 0.0
  %3207 = vmatpush.msra.mxu0 0.0
  %3208 = vmatpush.msra.mxu0 0.0
  %3209 = vmatpush.msra.mxu0 %v3179
  %3210 = vmatmul.f32.gmra.mxu0 %v3192
  %v3211 = vpop.f32.mrf.mxu0
  %v3212 = vadd.f32 %v3063, %v3211
  %3213 = vdwg.mxu0
  %3214 = vmatpush.msra.mxu0 0.0
  %3215 = vmatpush.msra.mxu0 0.0
  %3216 = vmatpush.msra.mxu0 0.0
  %3217 = vmatpush.msra.mxu0 0.0
  %3218 = vmatpush.msra.mxu0 0.0
  %3219 = vmatpush.msra.mxu0 0.0
  %3220 = vmatpush.msra.mxu0 0.0
  %3221 = vmatpush.msra.mxu0 0.0
  %3222 = vmatpush.msra.mxu0 0.0
  %3223 = vmatpush.msra.mxu0 0.0
  %3224 = vmatpush.msra.mxu0 0.0
  %3225 = vmatpush.msra.mxu0 0.0
  %3226 = vmatpush.msra.mxu0 0.0
  %3227 = vmatpush.msra.mxu0 0.0
  %3228 = vmatpush.msra.mxu0 0.0
  %3229 = vmatpush.msra.mxu0 %v3180
  %3230 = vmatmul.f32.gmra.mxu0 %v3192
  %v3231 = vpop.f32.mrf.mxu0
  %v3232 = vadd.f32 %v3083, %v3231
  %3233 = vdwg.mxu0
  %3234 = vmatpush.msra.mxu0 0.0
  %3235 = vmatpush.msra.mxu0 0.0
  %3236 = vmatpush.msra.mxu0 0.0
  %3237 = vmatpush.msra.mxu0 0.0
  %3238 = vmatpush.msra.mxu0 0.0
  %3239 = vmatpush.msra.mxu0 0.0
  %3240 = vmatpush.msra.mxu0 0.0
  %3241 = vmatpush.msra.mxu0 0.0
  %3242 = vmatpush.msra.mxu0 0.0
  %3243 = vmatpush.msra.mxu0 0.0
  %3244 = vmatpush.msra.mxu0 0.0
  %3245 = vmatpush.msra.mxu0 0.0
  %3246 = vmatpush.msra.mxu0 0.0
  %3247 = vmatpush.msra.mxu0 0.0
  %3248 = vmatpush.msra.mxu0 0.0
  %3249 = vmatpush.msra.mxu0 %v3181
  %3250 = vmatmul.f32.gmra.mxu0 %v3192
  %v3251 = vpop.f32.mrf.mxu0
  %v3252 = vadd.f32 %v3103, %v3251
  %3253 = vdwg.mxu0
  %3254 = vmatpush.msra.mxu0 0.0
  %3255 = vmatpush.msra.mxu0 0.0
  %3256 = vmatpush.msra.mxu0 0.0
  %3257 = vmatpush.msra.mxu0 0.0
  %3258 = vmatpush.msra.mxu0 0.0
  %3259 = vmatpush.msra.mxu0 0.0
  %3260 = vmatpush.msra.mxu0 0.0
  %3261 = vmatpush.msra.mxu0 0.0
  %3262 = vmatpush.msra.mxu0 0.0
  %3263 = vmatpush.msra.mxu0 0.0
  %3264 = vmatpush.msra.mxu0 0.0
  %3265 = vmatpush.msra.mxu0 0.0
  %3266 = vmatpush.msra.mxu0 0.0
  %3267 = vmatpush.msra.mxu0 0.0
  %3268 = vmatpush.msra.mxu0 0.0
  %3269 = vmatpush.msra.mxu0 %v3182
  %3270 = vmatmul.f32.gmra.mxu0 %v3192
  %v3271 = vpop.f32.mrf.mxu0
  %v3272 = vadd.f32 %v3123, %v3271
  %3273 = vdwg.mxu0
  %3274 = vmatpush.msra.mxu0 0.0
  %3275 = vmatpush.msra.mxu0 0.0
  %3276 = vmatpush.msra.mxu0 0.0
  %3277 = vmatpush.msra.mxu0 0.0
  %3278 = vmatpush.msra.mxu0 0.0
  %3279 = vmatpush.msra.mxu0 0.0
  %3280 = vmatpush.msra.mxu0 0.0
  %3281 = vmatpush.msra.mxu0 0.0
  %3282 = vmatpush.msra.mxu0 0.0
  %3283 = vmatpush.msra.mxu0 0.0
  %3284 = vmatpush.msra.mxu0 0.0
  %3285 = vmatpush.msra.mxu0 0.0
  %3286 = vmatpush.msra.mxu0 0.0
  %3287 = vmatpush.msra.mxu0 0.0
  %3288 = vmatpush.msra.mxu0 0.0
  %3289 = vmatpush.msra.mxu0 %v3183
  %3290 = vmatmul.f32.gmra.mxu0 %v3192
  %v3291 = vpop.f32.mrf.mxu0
  %v3292 = vadd.f32 %v3143, %v3291
  %3293 = vdwg.mxu0
  %3294 = vmatpush.msra.mxu0 0.0
  %3295 = vmatpush.msra.mxu0 0.0
  %3296 = vmatpush.msra.mxu0 0.0
  %3297 = vmatpush.msra.mxu0 0.0
  %3298 = vmatpush.msra.mxu0 0.0
  %3299 = vmatpush.msra.mxu0 0.0
  %3300 = vmatpush.msra.mxu0 0.0
  %3301 = vmatpush.msra.mxu0 0.0
  %3302 = vmatpush.msra.mxu0 0.0
  %3303 = vmatpush.msra.mxu0 0.0
  %3304 = vmatpush.msra.mxu0 0.0
  %3305 = vmatpush.msra.mxu0 0.0
  %3306 = vmatpush.msra.mxu0 0.0
  %3307 = vmatpush.msra.mxu0 0.0
  %3308 = vmatpush.msra.mxu0 0.0
  %3309 = vmatpush.msra.mxu0 %v3184
  %3310 = vmatmul.f32.gmra.mxu0 %v3192
  %v3311 = vpop.f32.mrf.mxu0
  %v3312 = vadd.f32 %v3163, %v3311
  %3313 = vdwg.mxu0
  %s3314 = scalar_lea.vmem %s8, 16
  %v3315 = vld [vmem:[%s3314] sm:$0xff]
  %3316 = vrot.lane.b32.xlu0 %v2999, 17
  %v3317 = vpop.permute.xlu0 %3316
  %3318 = vrot.lane.b32.xlu0 %v3000, 17
  %v3319 = vpop.permute.xlu0 %3318
  %3320 = vrot.lane.b32.xlu0 %v3001, 17
  %v3321 = vpop.permute.xlu0 %3320
  %3322 = vrot.lane.b32.xlu0 %v3002, 17
  %v3323 = vpop.permute.xlu0 %3322
  %3324 = vrot.lane.b32.xlu0 %v3003, 17
  %v3325 = vpop.permute.xlu0 %3324
  %3326 = vrot.lane.b32.xlu0 %v3004, 17
  %v3327 = vpop.permute.xlu0 %3326
  %3328 = vrot.lane.b32.xlu0 %v3005, 17
  %v3329 = vpop.permute.xlu0 %3328
  %v3330 = vsel %vm376, %v3317, %v3319
  %v3331 = vsel %vm376, %v3319, %v3321
  %v3332 = vsel %vm376, %v3321, %v3323
  %v3333 = vsel %vm376, %v3323, %v3325
  %v3334 = vsel %vm376, %v3325, %v3327
  %v3335 = vsel %vm376, %v3327, %v3329
  %v3343 = vsel %vm86, %v3315, 0
  %3345 = vmatpush.msra.mxu0 0.0
  %3346 = vmatpush.msra.mxu0 0.0
  %3347 = vmatpush.msra.mxu0 0.0
  %3348 = vmatpush.msra.mxu0 0.0
  %3349 = vmatpush.msra.mxu0 0.0
  %3350 = vmatpush.msra.mxu0 0.0
  %3351 = vmatpush.msra.mxu0 0.0
  %3352 = vmatpush.msra.mxu0 0.0
  %3353 = vmatpush.msra.mxu0 0.0
  %3354 = vmatpush.msra.mxu0 0.0
  %3355 = vmatpush.msra.mxu0 0.0
  %3356 = vmatpush.msra.mxu0 0.0
  %3357 = vmatpush.msra.mxu0 0.0
  %3358 = vmatpush.msra.mxu0 0.0
  %3359 = vmatpush.msra.mxu0 0.0
  %3360 = vmatpush.msra.mxu0 %v3330
  %3361 = vmatmul.f32.gmra.mxu0 %v3343
  %v3362 = vpop.f32.mrf.mxu0
  %v3363 = vadd.f32 0.0, %v3362
  %3364 = vdwg.mxu0
  %3365 = vmatpush.msra.mxu0 0.0
  %3366 = vmatpush.msra.mxu0 0.0
  %3367 = vmatpush.msra.mxu0 0.0
  %3368 = vmatpush.msra.mxu0 0.0
  %3369 = vmatpush.msra.mxu0 0.0
  %3370 = vmatpush.msra.mxu0 0.0
  %3371 = vmatpush.msra.mxu0 0.0
  %3372 = vmatpush.msra.mxu0 0.0
  %3373 = vmatpush.msra.mxu0 0.0
  %3374 = vmatpush.msra.mxu0 0.0
  %3375 = vmatpush.msra.mxu0 0.0
  %3376 = vmatpush.msra.mxu0 0.0
  %3377 = vmatpush.msra.mxu0 0.0
  %3378 = vmatpush.msra.mxu0 0.0
  %3379 = vmatpush.msra.mxu0 0.0
  %3380 = vmatpush.msra.mxu0 %v3331
  %3381 = vmatmul.f32.gmra.mxu0 %v3343
  %v3382 = vpop.f32.mrf.mxu0
  %v3383 = vadd.f32 0.0, %v3382
  %3384 = vdwg.mxu0
  %3385 = vmatpush.msra.mxu0 0.0
  %3386 = vmatpush.msra.mxu0 0.0
  %3387 = vmatpush.msra.mxu0 0.0
  %3388 = vmatpush.msra.mxu0 0.0
  %3389 = vmatpush.msra.mxu0 0.0
  %3390 = vmatpush.msra.mxu0 0.0
  %3391 = vmatpush.msra.mxu0 0.0
  %3392 = vmatpush.msra.mxu0 0.0
  %3393 = vmatpush.msra.mxu0 0.0
  %3394 = vmatpush.msra.mxu0 0.0
  %3395 = vmatpush.msra.mxu0 0.0
  %3396 = vmatpush.msra.mxu0 0.0
  %3397 = vmatpush.msra.mxu0 0.0
  %3398 = vmatpush.msra.mxu0 0.0
  %3399 = vmatpush.msra.mxu0 0.0
  %3400 = vmatpush.msra.mxu0 %v3332
  %3401 = vmatmul.f32.gmra.mxu0 %v3343
  %v3402 = vpop.f32.mrf.mxu0
  %v3403 = vadd.f32 0.0, %v3402
  %3404 = vdwg.mxu0
  %3405 = vmatpush.msra.mxu0 0.0
  %3406 = vmatpush.msra.mxu0 0.0
  %3407 = vmatpush.msra.mxu0 0.0
  %3408 = vmatpush.msra.mxu0 0.0
  %3409 = vmatpush.msra.mxu0 0.0
  %3410 = vmatpush.msra.mxu0 0.0
  %3411 = vmatpush.msra.mxu0 0.0
  %3412 = vmatpush.msra.mxu0 0.0
  %3413 = vmatpush.msra.mxu0 0.0
  %3414 = vmatpush.msra.mxu0 0.0
  %3415 = vmatpush.msra.mxu0 0.0
  %3416 = vmatpush.msra.mxu0 0.0
  %3417 = vmatpush.msra.mxu0 0.0
  %3418 = vmatpush.msra.mxu0 0.0
  %3419 = vmatpush.msra.mxu0 0.0
  %3420 = vmatpush.msra.mxu0 %v3333
  %3421 = vmatmul.f32.gmra.mxu0 %v3343
  %v3422 = vpop.f32.mrf.mxu0
  %v3423 = vadd.f32 0.0, %v3422
  %3424 = vdwg.mxu0
  %3425 = vmatpush.msra.mxu0 0.0
  %3426 = vmatpush.msra.mxu0 0.0
  %3427 = vmatpush.msra.mxu0 0.0
  %3428 = vmatpush.msra.mxu0 0.0
  %3429 = vmatpush.msra.mxu0 0.0
  %3430 = vmatpush.msra.mxu0 0.0
  %3431 = vmatpush.msra.mxu0 0.0
  %3432 = vmatpush.msra.mxu0 0.0
  %3433 = vmatpush.msra.mxu0 0.0
  %3434 = vmatpush.msra.mxu0 0.0
  %3435 = vmatpush.msra.mxu0 0.0
  %3436 = vmatpush.msra.mxu0 0.0
  %3437 = vmatpush.msra.mxu0 0.0
  %3438 = vmatpush.msra.mxu0 0.0
  %3439 = vmatpush.msra.mxu0 0.0
  %3440 = vmatpush.msra.mxu0 %v3334
  %3441 = vmatmul.f32.gmra.mxu0 %v3343
  %v3442 = vpop.f32.mrf.mxu0
  %v3443 = vadd.f32 0.0, %v3442
  %3444 = vdwg.mxu0
  %3445 = vmatpush.msra.mxu0 0.0
  %3446 = vmatpush.msra.mxu0 0.0
  %3447 = vmatpush.msra.mxu0 0.0
  %3448 = vmatpush.msra.mxu0 0.0
  %3449 = vmatpush.msra.mxu0 0.0
  %3450 = vmatpush.msra.mxu0 0.0
  %3451 = vmatpush.msra.mxu0 0.0
  %3452 = vmatpush.msra.mxu0 0.0
  %3453 = vmatpush.msra.mxu0 0.0
  %3454 = vmatpush.msra.mxu0 0.0
  %3455 = vmatpush.msra.mxu0 0.0
  %3456 = vmatpush.msra.mxu0 0.0
  %3457 = vmatpush.msra.mxu0 0.0
  %3458 = vmatpush.msra.mxu0 0.0
  %3459 = vmatpush.msra.mxu0 0.0
  %3460 = vmatpush.msra.mxu0 %v3335
  %3461 = vmatmul.f32.gmra.mxu0 %v3343
  %v3462 = vpop.f32.mrf.mxu0
  %v3463 = vadd.f32 0.0, %v3462
  %3464 = vdwg.mxu0
  %v3465 = vadd.f32 %v3212, %v3363
  %v3466 = vadd.f32 %v3232, %v3383
  %v3467 = vadd.f32 %v3252, %v3403
  %v3468 = vadd.f32 %v3272, %v3423
  %v3469 = vadd.f32 %v3292, %v3443
  %v3470 = vadd.f32 %v3312, %v3463
  %s3471 = scalar_lea.vmem %s8, 24
  %v3472 = vld [vmem:[%s3471] sm:$0xff]
  %3473 = vrot.lane.b32.xlu0 %v2999, 1
  %v3474 = vpop.permute.xlu0 %3473
  %3475 = vrot.lane.b32.xlu0 %v3000, 1
  %v3476 = vpop.permute.xlu0 %3475
  %3477 = vrot.lane.b32.xlu0 %v3001, 1
  %v3478 = vpop.permute.xlu0 %3477
  %3479 = vrot.lane.b32.xlu0 %v3002, 1
  %v3480 = vpop.permute.xlu0 %3479
  %3481 = vrot.lane.b32.xlu0 %v3003, 1
  %v3482 = vpop.permute.xlu0 %3481
  %3483 = vrot.lane.b32.xlu0 %v3004, 1
  %v3484 = vpop.permute.xlu0 %3483
  %3485 = vrot.lane.b32.xlu0 %v3005, 1
  %v3486 = vpop.permute.xlu0 %3485
  %v3487 = vsel %vm534, %v3474, %v3476
  %v3488 = vsel %vm534, %v3476, %v3478
  %v3489 = vsel %vm534, %v3478, %v3480
  %v3490 = vsel %vm534, %v3480, %v3482
  %v3491 = vsel %vm534, %v3482, %v3484
  %v3492 = vsel %vm534, %v3484, %v3486
  %v3500 = vsel %vm86, %v3472, 0
  %3502 = vmatpush.msra.mxu0 0.0
  %3503 = vmatpush.msra.mxu0 0.0
  %3504 = vmatpush.msra.mxu0 0.0
  %3505 = vmatpush.msra.mxu0 0.0
  %3506 = vmatpush.msra.mxu0 0.0
  %3507 = vmatpush.msra.mxu0 0.0
  %3508 = vmatpush.msra.mxu0 0.0
  %3509 = vmatpush.msra.mxu0 0.0
  %3510 = vmatpush.msra.mxu0 0.0
  %3511 = vmatpush.msra.mxu0 0.0
  %3512 = vmatpush.msra.mxu0 0.0
  %3513 = vmatpush.msra.mxu0 0.0
  %3514 = vmatpush.msra.mxu0 0.0
  %3515 = vmatpush.msra.mxu0 0.0
  %3516 = vmatpush.msra.mxu0 0.0
  %3517 = vmatpush.msra.mxu0 %v3487
  %3518 = vmatmul.f32.gmra.mxu0 %v3500
  %v3519 = vpop.f32.mrf.mxu0
  %v3520 = vadd.f32 0.0, %v3519
  %3521 = vdwg.mxu0
  %3522 = vmatpush.msra.mxu0 0.0
  %3523 = vmatpush.msra.mxu0 0.0
  %3524 = vmatpush.msra.mxu0 0.0
  %3525 = vmatpush.msra.mxu0 0.0
  %3526 = vmatpush.msra.mxu0 0.0
  %3527 = vmatpush.msra.mxu0 0.0
  %3528 = vmatpush.msra.mxu0 0.0
  %3529 = vmatpush.msra.mxu0 0.0
  %3530 = vmatpush.msra.mxu0 0.0
  %3531 = vmatpush.msra.mxu0 0.0
  %3532 = vmatpush.msra.mxu0 0.0
  %3533 = vmatpush.msra.mxu0 0.0
  %3534 = vmatpush.msra.mxu0 0.0
  %3535 = vmatpush.msra.mxu0 0.0
  %3536 = vmatpush.msra.mxu0 0.0
  %3537 = vmatpush.msra.mxu0 %v3488
  %3538 = vmatmul.f32.gmra.mxu0 %v3500
  %v3539 = vpop.f32.mrf.mxu0
  %v3540 = vadd.f32 0.0, %v3539
  %3541 = vdwg.mxu0
  %3542 = vmatpush.msra.mxu0 0.0
  %3543 = vmatpush.msra.mxu0 0.0
  %3544 = vmatpush.msra.mxu0 0.0
  %3545 = vmatpush.msra.mxu0 0.0
  %3546 = vmatpush.msra.mxu0 0.0
  %3547 = vmatpush.msra.mxu0 0.0
  %3548 = vmatpush.msra.mxu0 0.0
  %3549 = vmatpush.msra.mxu0 0.0
  %3550 = vmatpush.msra.mxu0 0.0
  %3551 = vmatpush.msra.mxu0 0.0
  %3552 = vmatpush.msra.mxu0 0.0
  %3553 = vmatpush.msra.mxu0 0.0
  %3554 = vmatpush.msra.mxu0 0.0
  %3555 = vmatpush.msra.mxu0 0.0
  %3556 = vmatpush.msra.mxu0 0.0
  %3557 = vmatpush.msra.mxu0 %v3489
  %3558 = vmatmul.f32.gmra.mxu0 %v3500
  %v3559 = vpop.f32.mrf.mxu0
  %v3560 = vadd.f32 0.0, %v3559
  %3561 = vdwg.mxu0
  %3562 = vmatpush.msra.mxu0 0.0
  %3563 = vmatpush.msra.mxu0 0.0
  %3564 = vmatpush.msra.mxu0 0.0
  %3565 = vmatpush.msra.mxu0 0.0
  %3566 = vmatpush.msra.mxu0 0.0
  %3567 = vmatpush.msra.mxu0 0.0
  %3568 = vmatpush.msra.mxu0 0.0
  %3569 = vmatpush.msra.mxu0 0.0
  %3570 = vmatpush.msra.mxu0 0.0
  %3571 = vmatpush.msra.mxu0 0.0
  %3572 = vmatpush.msra.mxu0 0.0
  %3573 = vmatpush.msra.mxu0 0.0
  %3574 = vmatpush.msra.mxu0 0.0
  %3575 = vmatpush.msra.mxu0 0.0
  %3576 = vmatpush.msra.mxu0 0.0
  %3577 = vmatpush.msra.mxu0 %v3490
  %3578 = vmatmul.f32.gmra.mxu0 %v3500
  %v3579 = vpop.f32.mrf.mxu0
  %v3580 = vadd.f32 0.0, %v3579
  %3581 = vdwg.mxu0
  %3582 = vmatpush.msra.mxu0 0.0
  %3583 = vmatpush.msra.mxu0 0.0
  %3584 = vmatpush.msra.mxu0 0.0
  %3585 = vmatpush.msra.mxu0 0.0
  %3586 = vmatpush.msra.mxu0 0.0
  %3587 = vmatpush.msra.mxu0 0.0
  %3588 = vmatpush.msra.mxu0 0.0
  %3589 = vmatpush.msra.mxu0 0.0
  %3590 = vmatpush.msra.mxu0 0.0
  %3591 = vmatpush.msra.mxu0 0.0
  %3592 = vmatpush.msra.mxu0 0.0
  %3593 = vmatpush.msra.mxu0 0.0
  %3594 = vmatpush.msra.mxu0 0.0
  %3595 = vmatpush.msra.mxu0 0.0
  %3596 = vmatpush.msra.mxu0 0.0
  %3597 = vmatpush.msra.mxu0 %v3491
  %3598 = vmatmul.f32.gmra.mxu0 %v3500
  %v3599 = vpop.f32.mrf.mxu0
  %v3600 = vadd.f32 0.0, %v3599
  %3601 = vdwg.mxu0
  %3602 = vmatpush.msra.mxu0 0.0
  %3603 = vmatpush.msra.mxu0 0.0
  %3604 = vmatpush.msra.mxu0 0.0
  %3605 = vmatpush.msra.mxu0 0.0
  %3606 = vmatpush.msra.mxu0 0.0
  %3607 = vmatpush.msra.mxu0 0.0
  %3608 = vmatpush.msra.mxu0 0.0
  %3609 = vmatpush.msra.mxu0 0.0
  %3610 = vmatpush.msra.mxu0 0.0
  %3611 = vmatpush.msra.mxu0 0.0
  %3612 = vmatpush.msra.mxu0 0.0
  %3613 = vmatpush.msra.mxu0 0.0
  %3614 = vmatpush.msra.mxu0 0.0
  %3615 = vmatpush.msra.mxu0 0.0
  %3616 = vmatpush.msra.mxu0 0.0
  %3617 = vmatpush.msra.mxu0 %v3492
  %3618 = vmatmul.f32.gmra.mxu0 %v3500
  %v3619 = vpop.f32.mrf.mxu0
  %v3620 = vadd.f32 0.0, %v3619
  %3621 = vdwg.mxu0
  %v3622 = vadd.f32 %v3465, %v3520
  %v3623 = vadd.f32 %v3466, %v3540
  %v3624 = vadd.f32 %v3467, %v3560
  %v3625 = vadd.f32 %v3468, %v3580
  %v3626 = vadd.f32 %v3469, %v3600
  %v3627 = vadd.f32 %v3470, %v3620
  %s3628 = scalar_lea.vmem %s8, 32
  %v3629 = vld [vmem:[%s3628] sm:$0xff]
  %v3631 = vsel %vm86, %v3629, 0
  %3633 = vmatpush.msra.mxu0 0.0
  %3634 = vmatpush.msra.mxu0 0.0
  %3635 = vmatpush.msra.mxu0 0.0
  %3636 = vmatpush.msra.mxu0 0.0
  %3637 = vmatpush.msra.mxu0 0.0
  %3638 = vmatpush.msra.mxu0 0.0
  %3639 = vmatpush.msra.mxu0 0.0
  %3640 = vmatpush.msra.mxu0 0.0
  %3641 = vmatpush.msra.mxu0 0.0
  %3642 = vmatpush.msra.mxu0 0.0
  %3643 = vmatpush.msra.mxu0 0.0
  %3644 = vmatpush.msra.mxu0 0.0
  %3645 = vmatpush.msra.mxu0 0.0
  %3646 = vmatpush.msra.mxu0 0.0
  %3647 = vmatpush.msra.mxu0 0.0
  %3648 = vmatpush.msra.mxu0 %v3000
  %3649 = vmatmul.f32.gmra.mxu0 %v3631
  %v3650 = vpop.f32.mrf.mxu0
  %v3651 = vadd.f32 0.0, %v3650
  %3652 = vdwg.mxu0
  %3653 = vmatpush.msra.mxu0 0.0
  %3654 = vmatpush.msra.mxu0 0.0
  %3655 = vmatpush.msra.mxu0 0.0
  %3656 = vmatpush.msra.mxu0 0.0
  %3657 = vmatpush.msra.mxu0 0.0
  %3658 = vmatpush.msra.mxu0 0.0
  %3659 = vmatpush.msra.mxu0 0.0
  %3660 = vmatpush.msra.mxu0 0.0
  %3661 = vmatpush.msra.mxu0 0.0
  %3662 = vmatpush.msra.mxu0 0.0
  %3663 = vmatpush.msra.mxu0 0.0
  %3664 = vmatpush.msra.mxu0 0.0
  %3665 = vmatpush.msra.mxu0 0.0
  %3666 = vmatpush.msra.mxu0 0.0
  %3667 = vmatpush.msra.mxu0 0.0
  %3668 = vmatpush.msra.mxu0 %v3001
  %3669 = vmatmul.f32.gmra.mxu0 %v3631
  %v3670 = vpop.f32.mrf.mxu0
  %v3671 = vadd.f32 0.0, %v3670
  %3672 = vdwg.mxu0
  %3673 = vmatpush.msra.mxu0 0.0
  %3674 = vmatpush.msra.mxu0 0.0
  %3675 = vmatpush.msra.mxu0 0.0
  %3676 = vmatpush.msra.mxu0 0.0
  %3677 = vmatpush.msra.mxu0 0.0
  %3678 = vmatpush.msra.mxu0 0.0
  %3679 = vmatpush.msra.mxu0 0.0
  %3680 = vmatpush.msra.mxu0 0.0
  %3681 = vmatpush.msra.mxu0 0.0
  %3682 = vmatpush.msra.mxu0 0.0
  %3683 = vmatpush.msra.mxu0 0.0
  %3684 = vmatpush.msra.mxu0 0.0
  %3685 = vmatpush.msra.mxu0 0.0
  %3686 = vmatpush.msra.mxu0 0.0
  %3687 = vmatpush.msra.mxu0 0.0
  %3688 = vmatpush.msra.mxu0 %v3002
  %3689 = vmatmul.f32.gmra.mxu0 %v3631
  %v3690 = vpop.f32.mrf.mxu0
  %v3691 = vadd.f32 0.0, %v3690
  %3692 = vdwg.mxu0
  %3693 = vmatpush.msra.mxu0 0.0
  %3694 = vmatpush.msra.mxu0 0.0
  %3695 = vmatpush.msra.mxu0 0.0
  %3696 = vmatpush.msra.mxu0 0.0
  %3697 = vmatpush.msra.mxu0 0.0
  %3698 = vmatpush.msra.mxu0 0.0
  %3699 = vmatpush.msra.mxu0 0.0
  %3700 = vmatpush.msra.mxu0 0.0
  %3701 = vmatpush.msra.mxu0 0.0
  %3702 = vmatpush.msra.mxu0 0.0
  %3703 = vmatpush.msra.mxu0 0.0
  %3704 = vmatpush.msra.mxu0 0.0
  %3705 = vmatpush.msra.mxu0 0.0
  %3706 = vmatpush.msra.mxu0 0.0
  %3707 = vmatpush.msra.mxu0 0.0
  %3708 = vmatpush.msra.mxu0 %v3003
  %3709 = vmatmul.f32.gmra.mxu0 %v3631
  %v3710 = vpop.f32.mrf.mxu0
  %v3711 = vadd.f32 0.0, %v3710
  %3712 = vdwg.mxu0
  %3713 = vmatpush.msra.mxu0 0.0
  %3714 = vmatpush.msra.mxu0 0.0
  %3715 = vmatpush.msra.mxu0 0.0
  %3716 = vmatpush.msra.mxu0 0.0
  %3717 = vmatpush.msra.mxu0 0.0
  %3718 = vmatpush.msra.mxu0 0.0
  %3719 = vmatpush.msra.mxu0 0.0
  %3720 = vmatpush.msra.mxu0 0.0
  %3721 = vmatpush.msra.mxu0 0.0
  %3722 = vmatpush.msra.mxu0 0.0
  %3723 = vmatpush.msra.mxu0 0.0
  %3724 = vmatpush.msra.mxu0 0.0
  %3725 = vmatpush.msra.mxu0 0.0
  %3726 = vmatpush.msra.mxu0 0.0
  %3727 = vmatpush.msra.mxu0 0.0
  %3728 = vmatpush.msra.mxu0 %v3004
  %3729 = vmatmul.f32.gmra.mxu0 %v3631
  %v3730 = vpop.f32.mrf.mxu0
  %v3731 = vadd.f32 0.0, %v3730
  %3732 = vdwg.mxu0
  %3733 = vmatpush.msra.mxu0 0.0
  %3734 = vmatpush.msra.mxu0 0.0
  %3735 = vmatpush.msra.mxu0 0.0
  %3736 = vmatpush.msra.mxu0 0.0
  %3737 = vmatpush.msra.mxu0 0.0
  %3738 = vmatpush.msra.mxu0 0.0
  %3739 = vmatpush.msra.mxu0 0.0
  %3740 = vmatpush.msra.mxu0 0.0
  %3741 = vmatpush.msra.mxu0 0.0
  %3742 = vmatpush.msra.mxu0 0.0
  %3743 = vmatpush.msra.mxu0 0.0
  %3744 = vmatpush.msra.mxu0 0.0
  %3745 = vmatpush.msra.mxu0 0.0
  %3746 = vmatpush.msra.mxu0 0.0
  %3747 = vmatpush.msra.mxu0 0.0
  %3748 = vmatpush.msra.mxu0 %v3005
  %3749 = vmatmul.f32.gmra.mxu0 %v3631
  %v3750 = vpop.f32.mrf.mxu0
  %v3751 = vadd.f32 0.0, %v3750
  %3752 = vdwg.mxu0
  %v3753 = vadd.f32 %v3622, %v3651
  %v3754 = vadd.f32 %v3623, %v3671
  %v3755 = vadd.f32 %v3624, %v3691
  %v3756 = vadd.f32 %v3625, %v3711
  %v3757 = vadd.f32 %v3626, %v3731
  %v3758 = vadd.f32 %v3627, %v3751
  %v3759 = vld [vmem:[#allocation2 + $0x8] sm:$0xff]
  %v3760 = vld [vmem:[#allocation2 + $0x10] sm:$0xff]
  %v3761 = vld [vmem:[#allocation2 + $0x18] sm:$0xff]
  %v3762 = vld [vmem:[#allocation2 + $0x20] sm:$0xff]
  %v3763 = vld [vmem:[#allocation2 + $0x28] sm:$0xff]
  %v3764 = vld [vmem:[#allocation2 + $0x30] sm:$0xff]
  %v3765 = vld [vmem:[#allocation2 + $0x38] sm:$0xff]
  %s3766 = scalar_lea.vmem %s8, 40
  %v3767 = vld [vmem:[%s3766] sm:$0xff]
  %3775 = vrot.lane.b32.xlu0 %v3759, 127
  %v3776 = vpop.permute.xlu0 %3775
  %3777 = vrot.lane.b32.xlu0 %v3760, 127
  %v3778 = vpop.permute.xlu0 %3777
  %3779 = vrot.lane.b32.xlu0 %v3761, 127
  %v3780 = vpop.permute.xlu0 %3779
  %3781 = vrot.lane.b32.xlu0 %v3762, 127
  %v3782 = vpop.permute.xlu0 %3781
  %3783 = vrot.lane.b32.xlu0 %v3763, 127
  %v3784 = vpop.permute.xlu0 %3783
  %3785 = vrot.lane.b32.xlu0 %v3764, 127
  %v3786 = vpop.permute.xlu0 %3785
  %3787 = vrot.lane.b32.xlu0 %v3765, 127
  %v3788 = vpop.permute.xlu0 %3787
  %v3789 = vsel %vm837, %v3776, %v3778
  %v3790 = vsel %vm837, %v3778, %v3780
  %v3791 = vsel %vm837, %v3780, %v3782
  %v3792 = vsel %vm837, %v3782, %v3784
  %v3793 = vsel %vm837, %v3784, %v3786
  %v3794 = vsel %vm837, %v3786, %v3788
  %v3802 = vsel %vm86, %v3767, 0
  %3804 = vmatpush.msra.mxu0 0.0
  %3805 = vmatpush.msra.mxu0 0.0
  %3806 = vmatpush.msra.mxu0 0.0
  %3807 = vmatpush.msra.mxu0 0.0
  %3808 = vmatpush.msra.mxu0 0.0
  %3809 = vmatpush.msra.mxu0 0.0
  %3810 = vmatpush.msra.mxu0 0.0
  %3811 = vmatpush.msra.mxu0 0.0
  %3812 = vmatpush.msra.mxu0 0.0
  %3813 = vmatpush.msra.mxu0 0.0
  %3814 = vmatpush.msra.mxu0 0.0
  %3815 = vmatpush.msra.mxu0 0.0
  %3816 = vmatpush.msra.mxu0 0.0
  %3817 = vmatpush.msra.mxu0 0.0
  %3818 = vmatpush.msra.mxu0 0.0
  %3819 = vmatpush.msra.mxu0 %v3789
  %3820 = vmatmul.f32.gmra.mxu0 %v3802
  %v3821 = vpop.f32.mrf.mxu0
  %v3822 = vadd.f32 0.0, %v3821
  %3823 = vdwg.mxu0
  %3824 = vmatpush.msra.mxu0 0.0
  %3825 = vmatpush.msra.mxu0 0.0
  %3826 = vmatpush.msra.mxu0 0.0
  %3827 = vmatpush.msra.mxu0 0.0
  %3828 = vmatpush.msra.mxu0 0.0
  %3829 = vmatpush.msra.mxu0 0.0
  %3830 = vmatpush.msra.mxu0 0.0
  %3831 = vmatpush.msra.mxu0 0.0
  %3832 = vmatpush.msra.mxu0 0.0
  %3833 = vmatpush.msra.mxu0 0.0
  %3834 = vmatpush.msra.mxu0 0.0
  %3835 = vmatpush.msra.mxu0 0.0
  %3836 = vmatpush.msra.mxu0 0.0
  %3837 = vmatpush.msra.mxu0 0.0
  %3838 = vmatpush.msra.mxu0 0.0
  %3839 = vmatpush.msra.mxu0 %v3790
  %3840 = vmatmul.f32.gmra.mxu0 %v3802
  %v3841 = vpop.f32.mrf.mxu0
  %v3842 = vadd.f32 0.0, %v3841
  %3843 = vdwg.mxu0
  %3844 = vmatpush.msra.mxu0 0.0
  %3845 = vmatpush.msra.mxu0 0.0
  %3846 = vmatpush.msra.mxu0 0.0
  %3847 = vmatpush.msra.mxu0 0.0
  %3848 = vmatpush.msra.mxu0 0.0
  %3849 = vmatpush.msra.mxu0 0.0
  %3850 = vmatpush.msra.mxu0 0.0
  %3851 = vmatpush.msra.mxu0 0.0
  %3852 = vmatpush.msra.mxu0 0.0
  %3853 = vmatpush.msra.mxu0 0.0
  %3854 = vmatpush.msra.mxu0 0.0
  %3855 = vmatpush.msra.mxu0 0.0
  %3856 = vmatpush.msra.mxu0 0.0
  %3857 = vmatpush.msra.mxu0 0.0
  %3858 = vmatpush.msra.mxu0 0.0
  %3859 = vmatpush.msra.mxu0 %v3791
  %3860 = vmatmul.f32.gmra.mxu0 %v3802
  %v3861 = vpop.f32.mrf.mxu0
  %v3862 = vadd.f32 0.0, %v3861
  %3863 = vdwg.mxu0
  %3864 = vmatpush.msra.mxu0 0.0
  %3865 = vmatpush.msra.mxu0 0.0
  %3866 = vmatpush.msra.mxu0 0.0
  %3867 = vmatpush.msra.mxu0 0.0
  %3868 = vmatpush.msra.mxu0 0.0
  %3869 = vmatpush.msra.mxu0 0.0
  %3870 = vmatpush.msra.mxu0 0.0
  %3871 = vmatpush.msra.mxu0 0.0
  %3872 = vmatpush.msra.mxu0 0.0
  %3873 = vmatpush.msra.mxu0 0.0
  %3874 = vmatpush.msra.mxu0 0.0
  %3875 = vmatpush.msra.mxu0 0.0
  %3876 = vmatpush.msra.mxu0 0.0
  %3877 = vmatpush.msra.mxu0 0.0
  %3878 = vmatpush.msra.mxu0 0.0
  %3879 = vmatpush.msra.mxu0 %v3792
  %3880 = vmatmul.f32.gmra.mxu0 %v3802
  %v3881 = vpop.f32.mrf.mxu0
  %v3882 = vadd.f32 0.0, %v3881
  %3883 = vdwg.mxu0
  %3884 = vmatpush.msra.mxu0 0.0
  %3885 = vmatpush.msra.mxu0 0.0
  %3886 = vmatpush.msra.mxu0 0.0
  %3887 = vmatpush.msra.mxu0 0.0
  %3888 = vmatpush.msra.mxu0 0.0
  %3889 = vmatpush.msra.mxu0 0.0
  %3890 = vmatpush.msra.mxu0 0.0
  %3891 = vmatpush.msra.mxu0 0.0
  %3892 = vmatpush.msra.mxu0 0.0
  %3893 = vmatpush.msra.mxu0 0.0
  %3894 = vmatpush.msra.mxu0 0.0
  %3895 = vmatpush.msra.mxu0 0.0
  %3896 = vmatpush.msra.mxu0 0.0
  %3897 = vmatpush.msra.mxu0 0.0
  %3898 = vmatpush.msra.mxu0 0.0
  %3899 = vmatpush.msra.mxu0 %v3793
  %3900 = vmatmul.f32.gmra.mxu0 %v3802
  %v3901 = vpop.f32.mrf.mxu0
  %v3902 = vadd.f32 0.0, %v3901
  %3903 = vdwg.mxu0
  %3904 = vmatpush.msra.mxu0 0.0
  %3905 = vmatpush.msra.mxu0 0.0
  %3906 = vmatpush.msra.mxu0 0.0
  %3907 = vmatpush.msra.mxu0 0.0
  %3908 = vmatpush.msra.mxu0 0.0
  %3909 = vmatpush.msra.mxu0 0.0
  %3910 = vmatpush.msra.mxu0 0.0
  %3911 = vmatpush.msra.mxu0 0.0
  %3912 = vmatpush.msra.mxu0 0.0
  %3913 = vmatpush.msra.mxu0 0.0
  %3914 = vmatpush.msra.mxu0 0.0
  %3915 = vmatpush.msra.mxu0 0.0
  %3916 = vmatpush.msra.mxu0 0.0
  %3917 = vmatpush.msra.mxu0 0.0
  %3918 = vmatpush.msra.mxu0 0.0
  %3919 = vmatpush.msra.mxu0 %v3794
  %3920 = vmatmul.f32.gmra.mxu0 %v3802
  %v3921 = vpop.f32.mrf.mxu0
  %v3922 = vadd.f32 0.0, %v3921
  %3923 = vdwg.mxu0
  %v3924 = vadd.f32 %v3753, %v3822
  %v3925 = vadd.f32 %v3754, %v3842
  %v3926 = vadd.f32 %v3755, %v3862
  %v3927 = vadd.f32 %v3756, %v3882
  %v3928 = vadd.f32 %v3757, %v3902
  %v3929 = vadd.f32 %v3758, %v3922
  %s3930 = scalar_lea.vmem %s8, 48
  %v3931 = vld [vmem:[%s3930] sm:$0xff]
  %3932 = vrot.lane.b32.xlu0 %v3759, 111
  %v3933 = vpop.permute.xlu0 %3932
  %3934 = vrot.lane.b32.xlu0 %v3760, 111
  %v3935 = vpop.permute.xlu0 %3934
  %3936 = vrot.lane.b32.xlu0 %v3761, 111
  %v3937 = vpop.permute.xlu0 %3936
  %3938 = vrot.lane.b32.xlu0 %v3762, 111
  %v3939 = vpop.permute.xlu0 %3938
  %3940 = vrot.lane.b32.xlu0 %v3763, 111
  %v3941 = vpop.permute.xlu0 %3940
  %3942 = vrot.lane.b32.xlu0 %v3764, 111
  %v3943 = vpop.permute.xlu0 %3942
  %3944 = vrot.lane.b32.xlu0 %v3765, 111
  %v3945 = vpop.permute.xlu0 %3944
  %v3946 = vsel %vm995, %v3933, %v3935
  %v3947 = vsel %vm995, %v3935, %v3937
  %v3948 = vsel %vm995, %v3937, %v3939
  %v3949 = vsel %vm995, %v3939, %v3941
  %v3950 = vsel %vm995, %v3941, %v3943
  %v3951 = vsel %vm995, %v3943, %v3945
  %v3959 = vsel %vm86, %v3931, 0
  %3961 = vmatpush.msra.mxu0 0.0
  %3962 = vmatpush.msra.mxu0 0.0
  %3963 = vmatpush.msra.mxu0 0.0
  %3964 = vmatpush.msra.mxu0 0.0
  %3965 = vmatpush.msra.mxu0 0.0
  %3966 = vmatpush.msra.mxu0 0.0
  %3967 = vmatpush.msra.mxu0 0.0
  %3968 = vmatpush.msra.mxu0 0.0
  %3969 = vmatpush.msra.mxu0 0.0
  %3970 = vmatpush.msra.mxu0 0.0
  %3971 = vmatpush.msra.mxu0 0.0
  %3972 = vmatpush.msra.mxu0 0.0
  %3973 = vmatpush.msra.mxu0 0.0
  %3974 = vmatpush.msra.mxu0 0.0
  %3975 = vmatpush.msra.mxu0 0.0
  %3976 = vmatpush.msra.mxu0 %v3946
  %3977 = vmatmul.f32.gmra.mxu0 %v3959
  %v3978 = vpop.f32.mrf.mxu0
  %v3979 = vadd.f32 0.0, %v3978
  %3980 = vdwg.mxu0
  %3981 = vmatpush.msra.mxu0 0.0
  %3982 = vmatpush.msra.mxu0 0.0
  %3983 = vmatpush.msra.mxu0 0.0
  %3984 = vmatpush.msra.mxu0 0.0
  %3985 = vmatpush.msra.mxu0 0.0
  %3986 = vmatpush.msra.mxu0 0.0
  %3987 = vmatpush.msra.mxu0 0.0
  %3988 = vmatpush.msra.mxu0 0.0
  %3989 = vmatpush.msra.mxu0 0.0
  %3990 = vmatpush.msra.mxu0 0.0
  %3991 = vmatpush.msra.mxu0 0.0
  %3992 = vmatpush.msra.mxu0 0.0
  %3993 = vmatpush.msra.mxu0 0.0
  %3994 = vmatpush.msra.mxu0 0.0
  %3995 = vmatpush.msra.mxu0 0.0
  %3996 = vmatpush.msra.mxu0 %v3947
  %3997 = vmatmul.f32.gmra.mxu0 %v3959
  %v3998 = vpop.f32.mrf.mxu0
  %v3999 = vadd.f32 0.0, %v3998
  %4000 = vdwg.mxu0
  %4001 = vmatpush.msra.mxu0 0.0
  %4002 = vmatpush.msra.mxu0 0.0
  %4003 = vmatpush.msra.mxu0 0.0
  %4004 = vmatpush.msra.mxu0 0.0
  %4005 = vmatpush.msra.mxu0 0.0
  %4006 = vmatpush.msra.mxu0 0.0
  %4007 = vmatpush.msra.mxu0 0.0
  %4008 = vmatpush.msra.mxu0 0.0
  %4009 = vmatpush.msra.mxu0 0.0
  %4010 = vmatpush.msra.mxu0 0.0
  %4011 = vmatpush.msra.mxu0 0.0
  %4012 = vmatpush.msra.mxu0 0.0
  %4013 = vmatpush.msra.mxu0 0.0
  %4014 = vmatpush.msra.mxu0 0.0
  %4015 = vmatpush.msra.mxu0 0.0
  %4016 = vmatpush.msra.mxu0 %v3948
  %4017 = vmatmul.f32.gmra.mxu0 %v3959
  %v4018 = vpop.f32.mrf.mxu0
  %v4019 = vadd.f32 0.0, %v4018
  %4020 = vdwg.mxu0
  %4021 = vmatpush.msra.mxu0 0.0
  %4022 = vmatpush.msra.mxu0 0.0
  %4023 = vmatpush.msra.mxu0 0.0
  %4024 = vmatpush.msra.mxu0 0.0
  %4025 = vmatpush.msra.mxu0 0.0
  %4026 = vmatpush.msra.mxu0 0.0
  %4027 = vmatpush.msra.mxu0 0.0
  %4028 = vmatpush.msra.mxu0 0.0
  %4029 = vmatpush.msra.mxu0 0.0
  %4030 = vmatpush.msra.mxu0 0.0
  %4031 = vmatpush.msra.mxu0 0.0
  %4032 = vmatpush.msra.mxu0 0.0
  %4033 = vmatpush.msra.mxu0 0.0
  %4034 = vmatpush.msra.mxu0 0.0
  %4035 = vmatpush.msra.mxu0 0.0
  %4036 = vmatpush.msra.mxu0 %v3949
  %4037 = vmatmul.f32.gmra.mxu0 %v3959
  %v4038 = vpop.f32.mrf.mxu0
  %v4039 = vadd.f32 0.0, %v4038
  %4040 = vdwg.mxu0
  %4041 = vmatpush.msra.mxu0 0.0
  %4042 = vmatpush.msra.mxu0 0.0
  %4043 = vmatpush.msra.mxu0 0.0
  %4044 = vmatpush.msra.mxu0 0.0
  %4045 = vmatpush.msra.mxu0 0.0
  %4046 = vmatpush.msra.mxu0 0.0
  %4047 = vmatpush.msra.mxu0 0.0
  %4048 = vmatpush.msra.mxu0 0.0
  %4049 = vmatpush.msra.mxu0 0.0
  %4050 = vmatpush.msra.mxu0 0.0
  %4051 = vmatpush.msra.mxu0 0.0
  %4052 = vmatpush.msra.mxu0 0.0
  %4053 = vmatpush.msra.mxu0 0.0
  %4054 = vmatpush.msra.mxu0 0.0
  %4055 = vmatpush.msra.mxu0 0.0
  %4056 = vmatpush.msra.mxu0 %v3950
  %4057 = vmatmul.f32.gmra.mxu0 %v3959
  %v4058 = vpop.f32.mrf.mxu0
  %v4059 = vadd.f32 0.0, %v4058
  %4060 = vdwg.mxu0
  %4061 = vmatpush.msra.mxu0 0.0
  %4062 = vmatpush.msra.mxu0 0.0
  %4063 = vmatpush.msra.mxu0 0.0
  %4064 = vmatpush.msra.mxu0 0.0
  %4065 = vmatpush.msra.mxu0 0.0
  %4066 = vmatpush.msra.mxu0 0.0
  %4067 = vmatpush.msra.mxu0 0.0
  %4068 = vmatpush.msra.mxu0 0.0
  %4069 = vmatpush.msra.mxu0 0.0
  %4070 = vmatpush.msra.mxu0 0.0
  %4071 = vmatpush.msra.mxu0 0.0
  %4072 = vmatpush.msra.mxu0 0.0
  %4073 = vmatpush.msra.mxu0 0.0
  %4074 = vmatpush.msra.mxu0 0.0
  %4075 = vmatpush.msra.mxu0 0.0
  %4076 = vmatpush.msra.mxu0 %v3951
  %4077 = vmatmul.f32.gmra.mxu0 %v3959
  %v4078 = vpop.f32.mrf.mxu0
  %v4079 = vadd.f32 0.0, %v4078
  %4080 = vdwg.mxu0
  %v4081 = vadd.f32 %v3924, %v3979
  %v4082 = vadd.f32 %v3925, %v3999
  %v4083 = vadd.f32 %v3926, %v4019
  %v4084 = vadd.f32 %v3927, %v4039
  %v4085 = vadd.f32 %v3928, %v4059
  %v4086 = vadd.f32 %v3929, %v4079
  %s4087 = scalar_lea.vmem %s8, 56
  %v4088 = vld [vmem:[%s4087] sm:$0xff]
  %4089 = vrot.lane.b32.xlu0 %v3759, 110
  %v4090 = vpop.permute.xlu0 %4089
  %4091 = vrot.lane.b32.xlu0 %v3760, 110
  %v4092 = vpop.permute.xlu0 %4091
  %4093 = vrot.lane.b32.xlu0 %v3761, 110
  %v4094 = vpop.permute.xlu0 %4093
  %4095 = vrot.lane.b32.xlu0 %v3762, 110
  %v4096 = vpop.permute.xlu0 %4095
  %4097 = vrot.lane.b32.xlu0 %v3763, 110
  %v4098 = vpop.permute.xlu0 %4097
  %4099 = vrot.lane.b32.xlu0 %v3764, 110
  %v4100 = vpop.permute.xlu0 %4099
  %4101 = vrot.lane.b32.xlu0 %v3765, 110
  %v4102 = vpop.permute.xlu0 %4101
  %v4103 = vsel %vm1153, %v4090, %v4092
  %v4104 = vsel %vm1153, %v4092, %v4094
  %v4105 = vsel %vm1153, %v4094, %v4096
  %v4106 = vsel %vm1153, %v4096, %v4098
  %v4107 = vsel %vm1153, %v4098, %v4100
  %v4108 = vsel %vm1153, %v4100, %v4102
  %v4116 = vsel %vm86, %v4088, 0
  %4118 = vmatpush.msra.mxu0 0.0
  %4119 = vmatpush.msra.mxu0 0.0
  %4120 = vmatpush.msra.mxu0 0.0
  %4121 = vmatpush.msra.mxu0 0.0
  %4122 = vmatpush.msra.mxu0 0.0
  %4123 = vmatpush.msra.mxu0 0.0
  %4124 = vmatpush.msra.mxu0 0.0
  %4125 = vmatpush.msra.mxu0 0.0
  %4126 = vmatpush.msra.mxu0 0.0
  %4127 = vmatpush.msra.mxu0 0.0
  %4128 = vmatpush.msra.mxu0 0.0
  %4129 = vmatpush.msra.mxu0 0.0
  %4130 = vmatpush.msra.mxu0 0.0
  %4131 = vmatpush.msra.mxu0 0.0
  %4132 = vmatpush.msra.mxu0 0.0
  %4133 = vmatpush.msra.mxu0 %v4103
  %4134 = vmatmul.f32.gmra.mxu0 %v4116
  %v4135 = vpop.f32.mrf.mxu0
  %v4136 = vadd.f32 0.0, %v4135
  %4137 = vdwg.mxu0
  %4138 = vmatpush.msra.mxu0 0.0
  %4139 = vmatpush.msra.mxu0 0.0
  %4140 = vmatpush.msra.mxu0 0.0
  %4141 = vmatpush.msra.mxu0 0.0
  %4142 = vmatpush.msra.mxu0 0.0
  %4143 = vmatpush.msra.mxu0 0.0
  %4144 = vmatpush.msra.mxu0 0.0
  %4145 = vmatpush.msra.mxu0 0.0
  %4146 = vmatpush.msra.mxu0 0.0
  %4147 = vmatpush.msra.mxu0 0.0
  %4148 = vmatpush.msra.mxu0 0.0
  %4149 = vmatpush.msra.mxu0 0.0
  %4150 = vmatpush.msra.mxu0 0.0
  %4151 = vmatpush.msra.mxu0 0.0
  %4152 = vmatpush.msra.mxu0 0.0
  %4153 = vmatpush.msra.mxu0 %v4104
  %4154 = vmatmul.f32.gmra.mxu0 %v4116
  %v4155 = vpop.f32.mrf.mxu0
  %v4156 = vadd.f32 0.0, %v4155
  %4157 = vdwg.mxu0
  %4158 = vmatpush.msra.mxu0 0.0
  %4159 = vmatpush.msra.mxu0 0.0
  %4160 = vmatpush.msra.mxu0 0.0
  %4161 = vmatpush.msra.mxu0 0.0
  %4162 = vmatpush.msra.mxu0 0.0
  %4163 = vmatpush.msra.mxu0 0.0
  %4164 = vmatpush.msra.mxu0 0.0
  %4165 = vmatpush.msra.mxu0 0.0
  %4166 = vmatpush.msra.mxu0 0.0
  %4167 = vmatpush.msra.mxu0 0.0
  %4168 = vmatpush.msra.mxu0 0.0
  %4169 = vmatpush.msra.mxu0 0.0
  %4170 = vmatpush.msra.mxu0 0.0
  %4171 = vmatpush.msra.mxu0 0.0
  %4172 = vmatpush.msra.mxu0 0.0
  %4173 = vmatpush.msra.mxu0 %v4105
  %4174 = vmatmul.f32.gmra.mxu0 %v4116
  %v4175 = vpop.f32.mrf.mxu0
  %v4176 = vadd.f32 0.0, %v4175
  %4177 = vdwg.mxu0
  %4178 = vmatpush.msra.mxu0 0.0
  %4179 = vmatpush.msra.mxu0 0.0
  %4180 = vmatpush.msra.mxu0 0.0
  %4181 = vmatpush.msra.mxu0 0.0
  %4182 = vmatpush.msra.mxu0 0.0
  %4183 = vmatpush.msra.mxu0 0.0
  %4184 = vmatpush.msra.mxu0 0.0
  %4185 = vmatpush.msra.mxu0 0.0
  %4186 = vmatpush.msra.mxu0 0.0
  %4187 = vmatpush.msra.mxu0 0.0
  %4188 = vmatpush.msra.mxu0 0.0
  %4189 = vmatpush.msra.mxu0 0.0
  %4190 = vmatpush.msra.mxu0 0.0
  %4191 = vmatpush.msra.mxu0 0.0
  %4192 = vmatpush.msra.mxu0 0.0
  %4193 = vmatpush.msra.mxu0 %v4106
  %4194 = vmatmul.f32.gmra.mxu0 %v4116
  %v4195 = vpop.f32.mrf.mxu0
  %v4196 = vadd.f32 0.0, %v4195
  %4197 = vdwg.mxu0
  %4198 = vmatpush.msra.mxu0 0.0
  %4199 = vmatpush.msra.mxu0 0.0
  %4200 = vmatpush.msra.mxu0 0.0
  %4201 = vmatpush.msra.mxu0 0.0
  %4202 = vmatpush.msra.mxu0 0.0
  %4203 = vmatpush.msra.mxu0 0.0
  %4204 = vmatpush.msra.mxu0 0.0
  %4205 = vmatpush.msra.mxu0 0.0
  %4206 = vmatpush.msra.mxu0 0.0
  %4207 = vmatpush.msra.mxu0 0.0
  %4208 = vmatpush.msra.mxu0 0.0
  %4209 = vmatpush.msra.mxu0 0.0
  %4210 = vmatpush.msra.mxu0 0.0
  %4211 = vmatpush.msra.mxu0 0.0
  %4212 = vmatpush.msra.mxu0 0.0
  %4213 = vmatpush.msra.mxu0 %v4107
  %4214 = vmatmul.f32.gmra.mxu0 %v4116
  %v4215 = vpop.f32.mrf.mxu0
  %v4216 = vadd.f32 0.0, %v4215
  %4217 = vdwg.mxu0
  %4218 = vmatpush.msra.mxu0 0.0
  %4219 = vmatpush.msra.mxu0 0.0
  %4220 = vmatpush.msra.mxu0 0.0
  %4221 = vmatpush.msra.mxu0 0.0
  %4222 = vmatpush.msra.mxu0 0.0
  %4223 = vmatpush.msra.mxu0 0.0
  %4224 = vmatpush.msra.mxu0 0.0
  %4225 = vmatpush.msra.mxu0 0.0
  %4226 = vmatpush.msra.mxu0 0.0
  %4227 = vmatpush.msra.mxu0 0.0
  %4228 = vmatpush.msra.mxu0 0.0
  %4229 = vmatpush.msra.mxu0 0.0
  %4230 = vmatpush.msra.mxu0 0.0
  %4231 = vmatpush.msra.mxu0 0.0
  %4232 = vmatpush.msra.mxu0 0.0
  %4233 = vmatpush.msra.mxu0 %v4108
  %4234 = vmatmul.f32.gmra.mxu0 %v4116
  %v4235 = vpop.f32.mrf.mxu0
  %v4236 = vadd.f32 0.0, %v4235
  %4237 = vdwg.mxu0
  %v4238 = vadd.f32 %v4081, %v4136
  %v4239 = vadd.f32 %v4082, %v4156
  %v4240 = vadd.f32 %v4083, %v4176
  %v4241 = vadd.f32 %v4084, %v4196
  %v4242 = vadd.f32 %v4085, %v4216
  %v4243 = vadd.f32 %v4086, %v4236
  %s4244 = scalar_lea.vmem %s8, 64
  %v4245 = vld [vmem:[%s4244] sm:$0xff]
  %4246 = vrot.lane.b32.xlu0 %v3759, 109
  %v4247 = vpop.permute.xlu0 %4246
  %4248 = vrot.lane.b32.xlu0 %v3760, 109
  %v4249 = vpop.permute.xlu0 %4248
  %4250 = vrot.lane.b32.xlu0 %v3761, 109
  %v4251 = vpop.permute.xlu0 %4250
  %4252 = vrot.lane.b32.xlu0 %v3762, 109
  %v4253 = vpop.permute.xlu0 %4252
  %4254 = vrot.lane.b32.xlu0 %v3763, 109
  %v4255 = vpop.permute.xlu0 %4254
  %4256 = vrot.lane.b32.xlu0 %v3764, 109
  %v4257 = vpop.permute.xlu0 %4256
  %4258 = vrot.lane.b32.xlu0 %v3765, 109
  %v4259 = vpop.permute.xlu0 %4258
  %v4260 = vsel %vm1311, %v4247, %v4249
  %v4261 = vsel %vm1311, %v4249, %v4251
  %v4262 = vsel %vm1311, %v4251, %v4253
  %v4263 = vsel %vm1311, %v4253, %v4255
  %v4264 = vsel %vm1311, %v4255, %v4257
  %v4265 = vsel %vm1311, %v4257, %v4259
  %v4273 = vsel %vm86, %v4245, 0
  %4275 = vmatpush.msra.mxu0 0.0
  %4276 = vmatpush.msra.mxu0 0.0
  %4277 = vmatpush.msra.mxu0 0.0
  %4278 = vmatpush.msra.mxu0 0.0
  %4279 = vmatpush.msra.mxu0 0.0
  %4280 = vmatpush.msra.mxu0 0.0
  %4281 = vmatpush.msra.mxu0 0.0
  %4282 = vmatpush.msra.mxu0 0.0
  %4283 = vmatpush.msra.mxu0 0.0
  %4284 = vmatpush.msra.mxu0 0.0
  %4285 = vmatpush.msra.mxu0 0.0
  %4286 = vmatpush.msra.mxu0 0.0
  %4287 = vmatpush.msra.mxu0 0.0
  %4288 = vmatpush.msra.mxu0 0.0
  %4289 = vmatpush.msra.mxu0 0.0
  %4290 = vmatpush.msra.mxu0 %v4260
  %4291 = vmatmul.f32.gmra.mxu0 %v4273
  %v4292 = vpop.f32.mrf.mxu0
  %v4293 = vadd.f32 0.0, %v4292
  %4294 = vdwg.mxu0
  %4295 = vmatpush.msra.mxu0 0.0
  %4296 = vmatpush.msra.mxu0 0.0
  %4297 = vmatpush.msra.mxu0 0.0
  %4298 = vmatpush.msra.mxu0 0.0
  %4299 = vmatpush.msra.mxu0 0.0
  %4300 = vmatpush.msra.mxu0 0.0
  %4301 = vmatpush.msra.mxu0 0.0
  %4302 = vmatpush.msra.mxu0 0.0
  %4303 = vmatpush.msra.mxu0 0.0
  %4304 = vmatpush.msra.mxu0 0.0
  %4305 = vmatpush.msra.mxu0 0.0
  %4306 = vmatpush.msra.mxu0 0.0
  %4307 = vmatpush.msra.mxu0 0.0
  %4308 = vmatpush.msra.mxu0 0.0
  %4309 = vmatpush.msra.mxu0 0.0
  %4310 = vmatpush.msra.mxu0 %v4261
  %4311 = vmatmul.f32.gmra.mxu0 %v4273
  %v4312 = vpop.f32.mrf.mxu0
  %v4313 = vadd.f32 0.0, %v4312
  %4314 = vdwg.mxu0
  %4315 = vmatpush.msra.mxu0 0.0
  %4316 = vmatpush.msra.mxu0 0.0
  %4317 = vmatpush.msra.mxu0 0.0
  %4318 = vmatpush.msra.mxu0 0.0
  %4319 = vmatpush.msra.mxu0 0.0
  %4320 = vmatpush.msra.mxu0 0.0
  %4321 = vmatpush.msra.mxu0 0.0
  %4322 = vmatpush.msra.mxu0 0.0
  %4323 = vmatpush.msra.mxu0 0.0
  %4324 = vmatpush.msra.mxu0 0.0
  %4325 = vmatpush.msra.mxu0 0.0
  %4326 = vmatpush.msra.mxu0 0.0
  %4327 = vmatpush.msra.mxu0 0.0
  %4328 = vmatpush.msra.mxu0 0.0
  %4329 = vmatpush.msra.mxu0 0.0
  %4330 = vmatpush.msra.mxu0 %v4262
  %4331 = vmatmul.f32.gmra.mxu0 %v4273
  %v4332 = vpop.f32.mrf.mxu0
  %v4333 = vadd.f32 0.0, %v4332
  %4334 = vdwg.mxu0
  %4335 = vmatpush.msra.mxu0 0.0
  %4336 = vmatpush.msra.mxu0 0.0
  %4337 = vmatpush.msra.mxu0 0.0
  %4338 = vmatpush.msra.mxu0 0.0
  %4339 = vmatpush.msra.mxu0 0.0
  %4340 = vmatpush.msra.mxu0 0.0
  %4341 = vmatpush.msra.mxu0 0.0
  %4342 = vmatpush.msra.mxu0 0.0
  %4343 = vmatpush.msra.mxu0 0.0
  %4344 = vmatpush.msra.mxu0 0.0
  %4345 = vmatpush.msra.mxu0 0.0
  %4346 = vmatpush.msra.mxu0 0.0
  %4347 = vmatpush.msra.mxu0 0.0
  %4348 = vmatpush.msra.mxu0 0.0
  %4349 = vmatpush.msra.mxu0 0.0
  %4350 = vmatpush.msra.mxu0 %v4263
  %4351 = vmatmul.f32.gmra.mxu0 %v4273
  %v4352 = vpop.f32.mrf.mxu0
  %v4353 = vadd.f32 0.0, %v4352
  %4354 = vdwg.mxu0
  %4355 = vmatpush.msra.mxu0 0.0
  %4356 = vmatpush.msra.mxu0 0.0
  %4357 = vmatpush.msra.mxu0 0.0
  %4358 = vmatpush.msra.mxu0 0.0
  %4359 = vmatpush.msra.mxu0 0.0
  %4360 = vmatpush.msra.mxu0 0.0
  %4361 = vmatpush.msra.mxu0 0.0
  %4362 = vmatpush.msra.mxu0 0.0
  %4363 = vmatpush.msra.mxu0 0.0
  %4364 = vmatpush.msra.mxu0 0.0
  %4365 = vmatpush.msra.mxu0 0.0
  %4366 = vmatpush.msra.mxu0 0.0
  %4367 = vmatpush.msra.mxu0 0.0
  %4368 = vmatpush.msra.mxu0 0.0
  %4369 = vmatpush.msra.mxu0 0.0
  %4370 = vmatpush.msra.mxu0 %v4264
  %4371 = vmatmul.f32.gmra.mxu0 %v4273
  %v4372 = vpop.f32.mrf.mxu0
  %v4373 = vadd.f32 0.0, %v4372
  %4374 = vdwg.mxu0
  %4375 = vmatpush.msra.mxu0 0.0
  %4376 = vmatpush.msra.mxu0 0.0
  %4377 = vmatpush.msra.mxu0 0.0
  %4378 = vmatpush.msra.mxu0 0.0
  %4379 = vmatpush.msra.mxu0 0.0
  %4380 = vmatpush.msra.mxu0 0.0
  %4381 = vmatpush.msra.mxu0 0.0
  %4382 = vmatpush.msra.mxu0 0.0
  %4383 = vmatpush.msra.mxu0 0.0
  %4384 = vmatpush.msra.mxu0 0.0
  %4385 = vmatpush.msra.mxu0 0.0
  %4386 = vmatpush.msra.mxu0 0.0
  %4387 = vmatpush.msra.mxu0 0.0
  %4388 = vmatpush.msra.mxu0 0.0
  %4389 = vmatpush.msra.mxu0 0.0
  %4390 = vmatpush.msra.mxu0 %v4265
  %4391 = vmatmul.f32.gmra.mxu0 %v4273
  %v4392 = vpop.f32.mrf.mxu0
  %v4393 = vadd.f32 0.0, %v4392
  %4394 = vdwg.mxu0
  %v4395 = vadd.f32 %v4238, %v4293
  %v4396 = vadd.f32 %v4239, %v4313
  %v4397 = vadd.f32 %v4240, %v4333
  %v4398 = vadd.f32 %v4241, %v4353
  %v4399 = vadd.f32 %v4242, %v4373
  %v4400 = vadd.f32 %v4243, %v4393
  %v4401 = vld [vmem:[%s9] sm:$0xff]
  %v4402 = vld [vmem:[%s10] sm:$0xff]
  %v4403 = vld [vmem:[%s11] sm:$0xff]
  %4405 = vset.pattern.permute.xlu0 0
  %4406 = vperm.xlu0 %4405, %v4401
  %v4407 = vpop.permute.xlu0 %4406
  %v4409 = vadd.f32 %v4395, %v4407
  %v4410 = vadd.f32 %v4396, %v4407
  %v4411 = vadd.f32 %v4397, %v4407
  %v4412 = vadd.f32 %v4398, %v4407
  %v4413 = vadd.f32 %v4399, %v4407
  %v4414 = vadd.f32 %v4400, %v4407
  %v4415 = vmul.f32 %v4409, %v2882
  %v4416 = vmul.f32 %v4410, %v2883
  %v4417 = vmul.f32 %v4411, %v2884
  %v4418 = vmul.f32 %v4412, %v2885
  %v4419 = vmul.f32 %v4413, %v2886
  %v4420 = vmul.f32 %v4414, %v2887
  %v4421 = vadd.f32 %v4415, %v4416
  %v4422 = vadd.f32 %v4421, %v4417
  %v4423 = vadd.f32 %v4422, %v4418
  %v4424 = vadd.f32 %v4423, %v4419
  %v4425 = vadd.f32 %v4424, %v4420
  %4426 = vadd.xlane.f32.xlu0 %v4425
  %v4427 = vpop.xlane.xlu0 %4426
  %v4428 = vmul.f32 %v4427, 0.001953125
  %v4429 = vsub.f32 %v4415, %v4428
  %v4430 = vsub.f32 %v4416, %v4428
  %v4431 = vsub.f32 %v4417, %v4428
  %v4432 = vsub.f32 %v4418, %v4428
  %v4433 = vsub.f32 %v4419, %v4428
  %v4434 = vsub.f32 %v4420, %v4428
  %v4435 = vmul.f32 %v4429, %v2882
  %v4436 = vmul.f32 %v4430, %v2883
  %v4437 = vmul.f32 %v4431, %v2884
  %v4438 = vmul.f32 %v4432, %v2885
  %v4439 = vmul.f32 %v4433, %v2886
  %v4440 = vmul.f32 %v4434, %v2887
  %v4441 = vmul.f32 %v4435, %v4435
  %v4442 = vmul.f32 %v4436, %v4436
  %v4443 = vmul.f32 %v4437, %v4437
  %v4444 = vmul.f32 %v4438, %v4438
  %v4445 = vmul.f32 %v4439, %v4439
  %v4446 = vmul.f32 %v4440, %v4440
  %v4447 = vadd.f32 %v4441, %v4442
  %v4448 = vadd.f32 %v4447, %v4443
  %v4449 = vadd.f32 %v4448, %v4444
  %v4450 = vadd.f32 %v4449, %v4445
  %v4451 = vadd.f32 %v4450, %v4446
  %4452 = vadd.xlane.f32.xlu0 %v4451
  %v4453 = vpop.xlane.xlu0 %4452
  %v4454 = vmul.f32 %v4453, 0.001953125
  %v4455 = vadd.f32 %v4454, 1e-05
  %v4456 = vrsqrt.pop %v4455
  %v4457 = vmul.f32 %v4456, %v4455
  %v4458 = vmul.f32 %v4457, %v4456
  %v4459 = vmul.f32 0.5, %v4458
  %v4460 = vsub.f32 1.5, %v4459
  %v4461 = vmul.f32 %v4456, %v4460
  %vm4462 = vweird.f32 %v4455
  %vm4463 = vweird.f32 %v4456
  %vm4464 = vmor %vm4462, %vm4463
  %v4465 = vsel %vm4464, %v4456, %v4461
  %v4466 = vmul.f32 %v4435, %v4465
  %v4467 = vmul.f32 %v4436, %v4465
  %v4468 = vmul.f32 %v4437, %v4465
  %v4469 = vmul.f32 %v4438, %v4465
  %v4470 = vmul.f32 %v4439, %v4465
  %v4471 = vmul.f32 %v4440, %v4465
  %4473 = vset.pattern.permute.xlu0 0
  %4474 = vperm.xlu0 %4473, %v4402
  %v4475 = vpop.permute.xlu0 %4474
  %v4477 = vmul.f32 %v4466, %v4475
  %v4478 = vmul.f32 %v4467, %v4475
  %v4479 = vmul.f32 %v4468, %v4475
  %v4480 = vmul.f32 %v4469, %v4475
  %v4481 = vmul.f32 %v4470, %v4475
  %v4482 = vmul.f32 %v4471, %v4475
  %4484 = vset.pattern.permute.xlu0 0
  %4485 = vperm.xlu0 %4484, %v4403
  %v4486 = vpop.permute.xlu0 %4485
  %v4488 = vadd.f32 %v4477, %v4486
  %v4489 = vadd.f32 %v4478, %v4486
  %v4490 = vadd.f32 %v4479, %v4486
  %v4491 = vadd.f32 %v4480, %v4486
  %v4492 = vadd.f32 %v4481, %v4486
  %v4493 = vadd.f32 %v4482, %v4486
  %v4494 = vmax.f32 %v4488, 0.0
  %v4495 = vmax.f32 %v4489, 0.0
  %v4496 = vmax.f32 %v4490, 0.0
  %v4497 = vmax.f32 %v4491, 0.0
  %v4498 = vmax.f32 %v4492, 0.0
  %v4499 = vmax.f32 %v4493, 0.0
  %v4500 = vmul.f32 %v4494, %v2882
  %v4501 = vmul.f32 %v4495, %v2883
  %v4502 = vmul.f32 %v4496, %v2884
  %v4503 = vmul.f32 %v4497, %v2885
  %v4504 = vmul.f32 %v4498, %v2886
  %v4505 = vmul.f32 %v4499, %v2887
  %4506 = vst [vmem:[%s12] sm:$0xff] %v4500
  %4507 = vst [vmem:[%s12 + $0x8] sm:$0xff] %v4501
  %4508 = vst [vmem:[%s12 + $0x10] sm:$0xff] %v4502
  %4509 = vst [vmem:[%s12 + $0x18] sm:$0xff] %v4503
  %4510 = vst [vmem:[%s12 + $0x20] sm:$0xff] %v4504
  %4511 = vst [vmem:[%s12 + $0x28] sm:$0xff] %v4505
  // Predicated region
  $region50: #{decoder_block_fwd.3} parent=0 // pred_check
    _
  $region51: #{decoder_block_fwd.3} parent=0 // pred_check_branch
    %4513 = sbr.rel (0) target = $region53
  $region52: #{decoder_block_fwd.3} parent=0 // pred_region
    _
  $region53: #{decoder_block_fwd.3} parent=0 // pred_fallthru
    _
  // Predicated region
  $region54: #{decoder_block_fwd.3} parent=0 // pred_check
    _
  $region55: #{decoder_block_fwd.3} parent=0 // pred_check_branch
    %4515 = sbr.rel (0) target = $region57
  $region56: #{decoder_block_fwd.3} parent=0 // pred_region
    _
  $region57: #{decoder_block_fwd.3} parent=0 // pred_fallthru
    _

</llo_original>
